<compile_context>
chip_gen: v5e
topology: v5e:2x2
jax: 0.10.0
libtpu: 0.0.40
codegen_flags: <defaults>
</compile_context>

<pallas_src>
import functools

import jax
import jax.numpy as jnp
from jax.experimental import pallas as pl
from jax.experimental.pallas import tpu as pltpu


_LP = 8            # sublane-aligned interior column offset inside W-haloed scratches
_MAX_TILE_H = 64   # cap on output rows per grid step


def _round_up(x, m):
    return ((x + m - 1) // m) * m


def _pick_tile_h(H, W, tile_h=None):
    """Largest divisor of H that keeps the row tile a reasonable size."""
    if tile_h is not None:
        if H % tile_h != 0:
            raise ValueError(f"tile_h={tile_h} must divide H={H}")
        return tile_h
    cap = max(8, min(_MAX_TILE_H, 8192 // max(W, 1)))
    for cand in (64, 32, 16, 8, 4, 2, 1):
        if cand <= min(H, cap) and H % cand == 0:
            return cand
    return 1


def _vmem_limit_bytes():
    """Generation-aware VMEM budget: ~3/4 of physical (96 MiB v5e/v6e, 48 MiB v7x)."""
    try:
        cap = int(pltpu.get_tpu_info().vmem_capacity_bytes)
    except Exception:
        cap = 64 * 1024 * 1024          # conservative fallback
    return max(32 * 1024 * 1024, (cap * 3) // 4)


def _double_conv_kernel(x_ref, w1_ref, b1_ref, w2_ref, b2_ref, o_ref,
                        xpad_ref, midpad_ref):
    """One (batch, row-tile) grid step.

    x_ref:      (1, H+4, W, Cin)   bf16 padded image (resident across row tiles)
    w1_ref:     (9*Cin, C2)        bf16 stage-1 weights, ky & kx folded into K
    b1_ref:     (1, C2)            f32
    w2_ref:     (3, 3*C2, C3)      bf16 stage-2 weights, kx folded into K, ky looped
    b2_ref:     (1, C3)            f32
    o_ref:      (1, TH, W, C3)     lane-dense output row tile
    xpad_ref:   VMEM (TH+4, W+9, Cin) bf16  W-haloed stage-1 input tile
    midpad_ref: VMEM (TH+2, W+9, C2)  bf16  W-haloed mid-activation tile
    """
    TH = o_ref.shape[1]
    W = o_ref.shape[2]
    C3 = o_ref.shape[3]
    Cin = xpad_ref.shape[-1]
    C2 = midpad_ref.shape[-1]
    Wd = xpad_ref.shape[1]                      # = W + 9

    t = pl.program_id(1)
    row0 = pl.multiple_of(t * TH, TH)           # first padded-x row of this tile

    # ---- stage-1 input tile: halo COLUMNS only zeroed, interior store at aligned
    #      sublane offset 8.  The 2-row receptive-field halo comes pre-zeroed from
    #      the wrapper's H pad, so no row zeroing is needed here.
    xpad_ref[:, _LP - 1:_LP, :] = jnp.zeros((TH + 4, 1, Cin), xpad_ref.dtype)
    xpad_ref[:, _LP + W:_LP + W + 1, :] = jnp.zeros((TH + 4, 1, Cin), xpad_ref.dtype)
    xpad_ref[:, _LP:_LP + W, :] = x_ref[0, pl.ds(row0, TH + 4), :, :]

    # ---- stage 1: one MXU contraction with K = 9*Cin (ky & kx folded) ----
    xcat1 = jnp.concatenate(
        [xpad_ref[ky:ky + TH + 2, _LP - 1 + kx:_LP - 1 + kx + W, :]
         for ky in range(3) for kx in range(3)],
        axis=-1)                                            # (TH+2, W, 9*Cin) bf16
    acc1 = jnp.dot(xcat1.reshape((TH + 2) * W, 9 * Cin), w1_ref[...],
                   preferred_element_type=jnp.float32)      # f32 accumulate
    mid = jnp.maximum(acc1 + b1_ref[...], 0.0)              # f32 bias + ReLU

    # ---- mid activation stays in VMEM (bf16); halo columns zeroed; the two
    #      image-boundary rows (conv2's top/bottom padding) only on edge tiles ----
    midpad_ref[:, _LP - 1:_LP, :] = jnp.zeros((TH + 2, 1, C2), midpad_ref.dtype)
    midpad_ref[:, _LP + W:_LP + W + 1, :] = jnp.zeros((TH + 2, 1, C2), midpad_ref.dtype)
    midpad_ref[:, _LP:_LP + W, :] = (
        mid.reshape(TH + 2, W, C2).astype(midpad_ref.dtype))

    @pl.when(t == 0)
    def _():   # mid row "-1" of the image is conv2's zero padding
        midpad_ref[0:1, :, :] = jnp.zeros((1, Wd, C2), midpad_ref.dtype)

    @pl.when(t == pl.num_programs(1) - 1)
    def _():   # mid row "H" of the image is conv2's zero padding
        midpad_ref[TH + 1:TH + 2, :, :] = jnp.zeros((1, Wd, C2), midpad_ref.dtype)

    # ---- stage 2: kx folded into K = 3*C2 (lane-aligned chunks), ky = 3 fat matmuls
    # TODO(synk): pltpu.roll could produce the kx shifts on the XLU slot instead.
    xcat2 = jnp.concatenate(
        [midpad_ref[:, _LP - 1 + kx:_LP - 1 + kx + W, :] for kx in range(3)],
        axis=-1)                                            # (TH+2, W, 3*C2) bf16
    acc2 = jnp.zeros((TH * W, C3), jnp.float32)
    for ky in range(3):
        acc2 += jnp.dot(xcat2[ky:ky + TH].reshape(TH * W, 3 * C2), w2_ref[ky],
                        preferred_element_type=jnp.float32)
    out = jnp.maximum(acc2 + b2_ref[...], 0.0)              # f32 bias + ReLU
    o_ref[0] = out.reshape(TH, W, C3).astype(o_ref.dtype)


def double_conv_pallas(x_nhwc, w1, b1, w2, b2, *, tile_h=None):
    """x_nhwc: (B,H,W,Cin); w*: (3,3,Ci,Co) HWIO; b*: (Co,). Returns (B,H,W,Cout)."""
    B, H, W, Cin = x_nhwc.shape
    Cmid = w1.shape[-1]
    Cout = w2.shape[-1]
    Cin_p = _round_up(Cin, 8)      # sublane multiple (avoids tiny-lane relayouts)
    C2 = _round_up(Cmid, 128)      # lane-dense mid channels
    C3 = _round_up(Cout, 128)      # lane-dense out channels
    TH = _pick_tile_h(H, W, tile_h)
    T = H // TH

    # Input packing: ONE fused pad+cast pass.  bf16 MXU operand dtype, a 2-row
    # top/bottom zero halo (receptive field of the fused conv pair -> row tiles are
    # self-contained), channels padded to a sublane multiple.  W halo and the mid
    # halo are handled in VMEM inside the kernel.
    x_p = jnp.pad(x_nhwc.astype(jnp.bfloat16),
                  ((0, 0), (2, 2), (0, 0), (0, Cin_p - Cin)))

    # Weight/bias packing (tiny, one-time).  Stage-1: ky & kx folded into the
    # contraction -> (9*Cin_p, C2).  Stage-2: kx folded -> (3, 3*C2, C3).
    w1r = jnp.pad(w1, ((0, 0), (0, 0), (0, Cin_p - Cin), (0, C2 - Cmid))
                  ).astype(jnp.bfloat16).reshape(9 * Cin_p, C2)
    w2r = jnp.pad(w2, ((0, 0), (0, 0), (0, C2 - Cmid), (0, C3 - Cout))
                  ).astype(jnp.bfloat16).reshape(3, 3 * C2, C3)
    b1p = jnp.pad(b1, (0, C2 - Cmid)).astype(jnp.float32).reshape(1, C2)
    b2p = jnp.pad(b2, (0, C3 - Cout)).astype(jnp.float32).reshape(1, C3)

    out = pl.pallas_call(
        _double_conv_kernel,
        out_shape=jax.ShapeDtypeStruct((B, H, W, C3), x_nhwc.dtype),
        grid_spec=pltpu.PrefetchScalarGridSpec(
            num_scalar_prefetch=0,
            grid=(B, T),
            in_specs=[
                # Full padded image per batch element: block index ignores the
                # row-tile axis, so it stays resident in VMEM across row tiles.
                pl.BlockSpec((1, H + 4, W, Cin_p), lambda b, t: (b, 0, 0, 0)),
                pl.BlockSpec((9 * Cin_p, C2), lambda b, t: (0, 0)),
                pl.BlockSpec((1, C2), lambda b, t: (0, 0)),
                pl.BlockSpec((3, 3 * C2, C3), lambda b, t: (0, 0, 0)),
                pl.BlockSpec((1, C3), lambda b, t: (0, 0)),
            ],
            out_specs=pl.BlockSpec((1, TH, W, C3), lambda b, t: (b, t, 0, 0)),
            scratch_shapes=[
                pltpu.VMEM((TH + 4, W + 9, Cin_p), jnp.bfloat16),  # W-haloed input tile
                pltpu.VMEM((TH + 2, W + 9, C2), jnp.bfloat16),     # W-haloed mid act
            ],
        ),
        compiler_params=pltpu.CompilerParams(
            dimension_semantics=("parallel", "parallel"),
            vmem_limit_bytes=_vmem_limit_bytes(),
        ),
    )(x_p, w1r, b1p, w2r, b2p)

    return out[..., :Cout]   # drop lane-padding channels


def init_double_conv_params(key, in_channels, out_channels, mid_channels=None,
                            dtype=jnp.float32):
    """Synthetic init mirroring the PyTorch module's parameter shapes (HWIO weights)."""
    if not mid_channels:
        mid_channels = out_channels
    k1, k2, k3, k4 = jax.random.split(key, 4)

    def _uniform(k, shape, fan_in):
        bound = 1.0 / jnp.sqrt(float(fan_in))
        return jax.random.uniform(k, shape, dtype, minval=-bound, maxval=bound)

    fan_in1 = in_channels * 9
    fan_in2 = mid_channels * 9
    w1 = _uniform(k1, (3, 3, in_channels, mid_channels), fan_in1)
    b1 = _uniform(k2, (mid_channels,), fan_in1)
    w2 = _uniform(k3, (3, 3, mid_channels, out_channels), fan_in2)
    b2 = _uniform(k4, (out_channels,), fan_in2)
    return {"w1": w1, "b1": b1, "w2": w2, "b2": b2}


@functools.partial(jax.jit, static_argnames=("tile_h",))
def double_conv(x_nchw, params, tile_h=None):
    """Forward pass of DoubleConv. x_nchw: (B, Cin, H, W) -> (B, Cout, H, W)."""
    x_nhwc = jnp.transpose(x_nchw, (0, 2, 3, 1))
    y_nhwc = double_conv_pallas(x_nhwc, params["w1"], params["b1"],
                                params["w2"], params["b2"], tile_h=tile_h)
    return jnp.transpose(y_nhwc, (0, 3, 1, 2))


def _reference_double_conv(x_nchw, params):
    """Pure-JAX reference mirroring the kernel numerics (bf16 operands, f32 accum)."""
    def conv(x, w_hwio, b):
        w_oihw = jnp.transpose(w_hwio, (3, 2, 0, 1)).astype(jnp.bfloat16)
        y = jax.lax.conv_general_dilated(
            x.astype(jnp.bfloat16), w_oihw, window_strides=(1, 1),
            padding=((1, 1), (1, 1)),
            dimension_numbers=("NCHW", "OIHW", "NCHW"),
            preferred_element_type=jnp.float32)
        return jnp.maximum(y + b[None, :, None, None].astype(jnp.float32), 0.0)

    h = conv(x_nchw, params["w1"], params["b1"])
    return conv(h, params["w2"], params["b2"])


if __name__ == "__main__":
    key = jax.random.PRNGKey(0)
    kx_, kp = jax.random.split(key)

    B, Cin, H, W = 2, 4, 16, 16
    Cout = 8  # out_channels (mid_channels defaults to out_channels)

    x = jax.random.normal(kx_, (B, Cin, H, W), jnp.float32)
    params = init_double_conv_params(kp, Cin, Cout)

    ref = _reference_double_conv(x, params)

    # Default tiling (single row tile at this size).
    out1 = jax.block_until_ready(double_conv(x, params))
    # Explicit small row tile -> exercises the multi-row-tile halo path.
    out2 = jax.block_until_ready(double_conv(x, params, tile_h=8))

    assert out1.shape == (B, Cout, H, W)
    assert out2.shape == (B, Cout, H, W)
    assert jnp.allclose(out1, ref, atol=2e-2, rtol=2e-2), "mismatch vs reference (default tile)"
    assert jnp.allclose(out2, ref, atol=2e-2, rtol=2e-2), "mismatch vs reference (tile_h=8)"

    print("KERNEL_OK")
</pallas_src>

<mosaic_0001>
module attributes {stable_mosaic.version = 11 : i64} {
  func.func @_double_conv_kernel(%arg0: i32, %arg1: i32, %arg2: memref<1x20x16x8xbf16, #tpu.memory_space<vmem>>, %arg3: memref<72x128xbf16, #tpu.memory_space<vmem>>, %arg4: memref<1x128xf32, #tpu.memory_space<vmem>>, %arg5: memref<3x384x128xbf16, #tpu.memory_space<vmem>>, %arg6: memref<1x128xf32, #tpu.memory_space<vmem>>, %arg7: memref<1x16x16x128xf32, #tpu.memory_space<vmem>>, %arg8: memref<20x25x8xbf16, #tpu.memory_space<vmem>>, %arg9: memref<18x25x128xbf16, #tpu.memory_space<vmem>>) attributes {dimension_semantics = [#tpu.dimension_semantics<parallel>, #tpu.dimension_semantics<parallel>], iteration_bounds = array<i64: 2, 1>, scalar_prefetch = 0 : i64, scratch_operands = 2 : i64, tpu.core_type = #tpu.core_type<tc>, window_params = [{transform_indices = @transform_0, window_bounds = array<i64: 1, 20, 16, 8>}, {pipeline_mode = #tpu.pipeline_mode<synchronous>, transform_indices = @transform_1, window_bounds = array<i64: 72, 128>}, {pipeline_mode = #tpu.pipeline_mode<synchronous>, transform_indices = @transform_2, window_bounds = array<i64: 1, 128>}, {pipeline_mode = #tpu.pipeline_mode<synchronous>, transform_indices = @transform_3, window_bounds = array<i64: 3, 384, 128>}, {pipeline_mode = #tpu.pipeline_mode<synchronous>, transform_indices = @transform_4, window_bounds = array<i64: 1, 128>}, {transform_indices = @transform_5, window_bounds = array<i64: 1, 16, 16, 128>}]} {
    %c16_i32 = arith.constant 16 : i32
    %0 = arith.muli %arg1, %c16_i32 : i32
    %1 = tpu.assume_multiple %0, 16 : i32
    %cst = arith.constant 0.000000e+00 : bf16
    %2 = vector.broadcast %cst : bf16 to vector<20x1x8xbf16>
    %c0 = arith.constant 0 : index
    %c7 = arith.constant 7 : index
    %c0_0 = arith.constant 0 : index
    %3 = vector.load %arg8[%c0, %c7, %c0_0] : memref<20x25x8xbf16, #tpu.memory_space<vmem>>, vector<20x1x8xbf16>
    tpu.vector_store %arg8[%c0, %c7, %c0_0], %2 {strides = array<i32>} : memref<20x25x8xbf16, #tpu.memory_space<vmem>>, vector<20x1x8xbf16>,
    %cst_1 = arith.constant 0.000000e+00 : bf16
    %4 = vector.broadcast %cst_1 : bf16 to vector<20x1x8xbf16>
    %c0_2 = arith.constant 0 : index
    %c24 = arith.constant 24 : index
    %c0_3 = arith.constant 0 : index
    %5 = vector.load %arg8[%c0_2, %c24, %c0_3] : memref<20x25x8xbf16, #tpu.memory_space<vmem>>, vector<20x1x8xbf16>
    tpu.vector_store %arg8[%c0_2, %c24, %c0_3], %4 {strides = array<i32>} : memref<20x25x8xbf16, #tpu.memory_space<vmem>>, vector<20x1x8xbf16>,
    %c0_4 = arith.constant 0 : index
    %6 = arith.index_cast %1 : i32 to index
    %c0_5 = arith.constant 0 : index
    %c0_6 = arith.constant 0 : index
    %7 = vector.load %arg2[%c0_4, %6, %c0_5, %c0_6] : memref<1x20x16x8xbf16, #tpu.memory_space<vmem>>, vector<1x20x16x8xbf16>
    %8 = vector.shape_cast %7 : vector<1x20x16x8xbf16> to vector<20x16x8xbf16>
    %c0_7 = arith.constant 0 : index
    %c8 = arith.constant 8 : index
    %c0_8 = arith.constant 0 : index
    %9 = vector.load %arg8[%c0_7, %c8, %c0_8] : memref<20x25x8xbf16, #tpu.memory_space<vmem>>, vector<20x16x8xbf16>
    tpu.vector_store %arg8[%c0_7, %c8, %c0_8], %8 {strides = array<i32>} : memref<20x25x8xbf16, #tpu.memory_space<vmem>>, vector<20x16x8xbf16>,
    %c0_9 = arith.constant 0 : index
    %c7_10 = arith.constant 7 : index
    %c0_11 = arith.constant 0 : index
    %10 = vector.load %arg8[%c0_9, %c7_10, %c0_11] : memref<20x25x8xbf16, #tpu.memory_space<vmem>>, vector<18x16x8xbf16>
    %c0_12 = arith.constant 0 : index
    %c8_13 = arith.constant 8 : index
    %c0_14 = arith.constant 0 : index
    %11 = vector.load %arg8[%c0_12, %c8_13, %c0_14] : memref<20x25x8xbf16, #tpu.memory_space<vmem>>, vector<18x16x8xbf16>
    %c0_15 = arith.constant 0 : index
    %c9 = arith.constant 9 : index
    %c0_16 = arith.constant 0 : index
    %12 = vector.load %arg8[%c0_15, %c9, %c0_16] : memref<20x25x8xbf16, #tpu.memory_space<vmem>>, vector<18x16x8xbf16>
    %c1 = arith.constant 1 : index
    %c7_17 = arith.constant 7 : index
    %c0_18 = arith.constant 0 : index
    %13 = vector.load %arg8[%c1, %c7_17, %c0_18] : memref<20x25x8xbf16, #tpu.memory_space<vmem>>, vector<18x16x8xbf16>
    %c1_19 = arith.constant 1 : index
    %c8_20 = arith.constant 8 : index
    %c0_21 = arith.constant 0 : index
    %14 = vector.load %arg8[%c1_19, %c8_20, %c0_21] : memref<20x25x8xbf16, #tpu.memory_space<vmem>>, vector<18x16x8xbf16>
    %c1_22 = arith.constant 1 : index
    %c9_23 = arith.constant 9 : index
    %c0_24 = arith.constant 0 : index
    %15 = vector.load %arg8[%c1_22, %c9_23, %c0_24] : memref<20x25x8xbf16, #tpu.memory_space<vmem>>, vector<18x16x8xbf16>
    %c2 = arith.constant 2 : index
    %c7_25 = arith.constant 7 : index
    %c0_26 = arith.constant 0 : index
    %16 = vector.load %arg8[%c2, %c7_25, %c0_26] : memref<20x25x8xbf16, #tpu.memory_space<vmem>>, vector<18x16x8xbf16>
    %c2_27 = arith.constant 2 : index
    %c8_28 = arith.constant 8 : index
    %c0_29 = arith.constant 0 : index
    %17 = vector.load %arg8[%c2_27, %c8_28, %c0_29] : memref<20x25x8xbf16, #tpu.memory_space<vmem>>, vector<18x16x8xbf16>
    %c2_30 = arith.constant 2 : index
    %c9_31 = arith.constant 9 : index
    %c0_32 = arith.constant 0 : index
    %18 = vector.load %arg8[%c2_30, %c9_31, %c0_32] : memref<20x25x8xbf16, #tpu.memory_space<vmem>>, vector<18x16x8xbf16>
    %19 = tpu.concatenate %10, %11, %12, %13, %14, %15, %16, %17, %18 in 2 : vector<18x16x8xbf16>, vector<18x16x8xbf16>, vector<18x16x8xbf16>, vector<18x16x8xbf16>, vector<18x16x8xbf16>, vector<18x16x8xbf16>, vector<18x16x8xbf16>, vector<18x16x8xbf16>, vector<18x16x8xbf16> -> vector<18x16x72xbf16>
    %20 = vector.shape_cast %19 : vector<18x16x72xbf16> to vector<288x72xbf16>
    %c0_33 = arith.constant 0 : index
    %c0_34 = arith.constant 0 : index
    %21 = vector.load %arg3[%c0_33, %c0_34] : memref<72x128xbf16, #tpu.memory_space<vmem>>, vector<72x128xbf16>
    %cst_35 = arith.constant dense<0.000000e+00> : vector<288x128xf32>
    %22 = tpu.matmul %20, %21, %cst_35 {dimension_numbers = #tpu.dot_dimension_numbers<[1], [0], [0], [1], [0, 0, 1, 1], [], []>} : vector<288x72xbf16>, vector<72x128xbf16>, vector<288x128xf32> -> vector<288x128xf32>
    %c0_36 = arith.constant 0 : index
    %c0_37 = arith.constant 0 : index
    %23 = vector.load %arg4[%c0_36, %c0_37] : memref<1x128xf32, #tpu.memory_space<vmem>>, vector<1x128xf32>
    %24 = vector.broadcast %23 : vector<1x128xf32> to vector<288x128xf32>
    %25 = arith.addf %22, %24 : vector<288x128xf32>
    %cst_38 = arith.constant 0.000000e+00 : f32
    %26 = vector.broadcast %cst_38 : f32 to vector<288x128xf32>
    %27 = arith.maximumf %25, %26 : vector<288x128xf32>
    %cst_39 = arith.constant 0.000000e+00 : bf16
    %28 = vector.broadcast %cst_39 : bf16 to vector<18x1x128xbf16>
    %c0_40 = arith.constant 0 : index
    %c7_41 = arith.constant 7 : index
    %c0_42 = arith.constant 0 : index
    %29 = vector.load %arg9[%c0_40, %c7_41, %c0_42] : memref<18x25x128xbf16, #tpu.memory_space<vmem>>, vector<18x1x128xbf16>
    tpu.vector_store %arg9[%c0_40, %c7_41, %c0_42], %28 {strides = array<i32>} : memref<18x25x128xbf16, #tpu.memory_space<vmem>>, vector<18x1x128xbf16>,
    %cst_43 = arith.constant 0.000000e+00 : bf16
    %30 = vector.broadcast %cst_43 : bf16 to vector<18x1x128xbf16>
    %c0_44 = arith.constant 0 : index
    %c24_45 = arith.constant 24 : index
    %c0_46 = arith.constant 0 : index
    %31 = vector.load %arg9[%c0_44, %c24_45, %c0_46] : memref<18x25x128xbf16, #tpu.memory_space<vmem>>, vector<18x1x128xbf16>
    tpu.vector_store %arg9[%c0_44, %c24_45, %c0_46], %30 {strides = array<i32>} : memref<18x25x128xbf16, #tpu.memory_space<vmem>>, vector<18x1x128xbf16>,
    %32 = vector.shape_cast %27 : vector<288x128xf32> to vector<18x16x128xf32>
    %33 = arith.truncf %32 : vector<18x16x128xf32> to vector<18x16x128xbf16>
    %c0_47 = arith.constant 0 : index
    %c8_48 = arith.constant 8 : index
    %c0_49 = arith.constant 0 : index
    %34 = vector.load %arg9[%c0_47, %c8_48, %c0_49] : memref<18x25x128xbf16, #tpu.memory_space<vmem>>, vector<18x16x128xbf16>
    tpu.vector_store %arg9[%c0_47, %c8_48, %c0_49], %33 {strides = array<i32>} : memref<18x25x128xbf16, #tpu.memory_space<vmem>>, vector<18x16x128xbf16>,
    %c0_i32 = arith.constant 0 : i32
    %35 = arith.cmpi eq, %arg1, %c0_i32 : i32
    %36 = arith.extui %35 : i1 to i32
    %c0_i32_50 = arith.constant 0 : i32
    %37 = arith.cmpi ne, %36, %c0_i32_50 : i32
    scf.if %37 {
      %cst_82 = arith.constant 0.000000e+00 : bf16
      %73 = vector.broadcast %cst_82 : bf16 to vector<1x25x128xbf16>
      %c0_83 = arith.constant 0 : index
      %c0_84 = arith.constant 0 : index
      %c0_85 = arith.constant 0 : index
      %74 = vector.load %arg9[%c0_83, %c0_84, %c0_85] : memref<18x25x128xbf16, #tpu.memory_space<vmem>>, vector<1x25x128xbf16>
      tpu.vector_store %arg9[%c0_83, %c0_84, %c0_85], %73 {strides = array<i32>} : memref<18x25x128xbf16, #tpu.memory_space<vmem>>, vector<1x25x128xbf16>,
    } else {
    }
    %c0_i32_51 = arith.constant 0 : i32
    %38 = arith.cmpi eq, %arg1, %c0_i32_51 : i32
    %39 = arith.extui %38 : i1 to i32
    %c0_i32_52 = arith.constant 0 : i32
    %40 = arith.cmpi ne, %39, %c0_i32_52 : i32
    scf.if %40 {
      %cst_82 = arith.constant 0.000000e+00 : bf16
      %73 = vector.broadcast %cst_82 : bf16 to vector<1x25x128xbf16>
      %c17 = arith.constant 17 : index
      %c0_83 = arith.constant 0 : index
      %c0_84 = arith.constant 0 : index
      %74 = vector.load %arg9[%c17, %c0_83, %c0_84] : memref<18x25x128xbf16, #tpu.memory_space<vmem>>, vector<1x25x128xbf16>
      tpu.vector_store %arg9[%c17, %c0_83, %c0_84], %73 {strides = array<i32>} : memref<18x25x128xbf16, #tpu.memory_space<vmem>>, vector<1x25x128xbf16>,
    } else {
    }
    %c0_53 = arith.constant 0 : index
    %c7_54 = arith.constant 7 : index
    %c0_55 = arith.constant 0 : index
    %41 = vector.load %arg9[%c0_53, %c7_54, %c0_55] : memref<18x25x128xbf16, #tpu.memory_space<vmem>>, vector<18x16x128xbf16>
    %c0_56 = arith.constant 0 : index
    %c8_57 = arith.constant 8 : index
    %c0_58 = arith.constant 0 : index
    %42 = vector.load %arg9[%c0_56, %c8_57, %c0_58] : memref<18x25x128xbf16, #tpu.memory_space<vmem>>, vector<18x16x128xbf16>
    %c0_59 = arith.constant 0 : index
    %c9_60 = arith.constant 9 : index
    %c0_61 = arith.constant 0 : index
    %43 = vector.load %arg9[%c0_59, %c9_60, %c0_61] : memref<18x25x128xbf16, #tpu.memory_space<vmem>>, vector<18x16x128xbf16>
    %44 = tpu.concatenate %41, %42, %43 in 2 : vector<18x16x128xbf16>, vector<18x16x128xbf16>, vector<18x16x128xbf16> -> vector<18x16x384xbf16>
    %cst_62 = arith.constant 0.000000e+00 : f32
    %45 = vector.broadcast %cst_62 : f32 to vector<256x128xf32>
    %46 = vector.extract_strided_slice %44 {offsets = [0, 0, 0], sizes = [16, 16, 384], strides = [1, 1, 1]} : vector<18x16x384xbf16> to vector<16x16x384xbf16>
    %47 = vector.shape_cast %46 : vector<16x16x384xbf16> to vector<256x384xbf16>
    %c0_63 = arith.constant 0 : index
    %c0_64 = arith.constant 0 : index
    %c0_65 = arith.constant 0 : index
    %48 = vector.load %arg5[%c0_63, %c0_64, %c0_65] : memref<3x384x128xbf16, #tpu.memory_space<vmem>>, vector<1x384x128xbf16>
    %49 = vector.shape_cast %48 : vector<1x384x128xbf16> to vector<384x128xbf16>
    %cst_66 = arith.constant dense<0.000000e+00> : vector<256x128xf32>
    %50 = tpu.matmul %47, %49, %cst_66 {dimension_numbers = #tpu.dot_dimension_numbers<[1], [0], [0], [1], [0, 0, 1, 1], [], []>} : vector<256x384xbf16>, vector<384x128xbf16>, vector<256x128xf32> -> vector<256x128xf32>
    %51 = arith.addf %45, %50 : vector<256x128xf32>
    %52 = vector.extract_strided_slice %44 {offsets = [1, 0, 0], sizes = [16, 16, 384], strides = [1, 1, 1]} : vector<18x16x384xbf16> to vector<16x16x384xbf16>
    %53 = vector.shape_cast %52 : vector<16x16x384xbf16> to vector<256x384xbf16>
    %c1_67 = arith.constant 1 : index
    %c0_68 = arith.constant 0 : index
    %c0_69 = arith.constant 0 : index
    %54 = vector.load %arg5[%c1_67, %c0_68, %c0_69] : memref<3x384x128xbf16, #tpu.memory_space<vmem>>, vector<1x384x128xbf16>
    %55 = vector.shape_cast %54 : vector<1x384x128xbf16> to vector<384x128xbf16>
    %cst_70 = arith.constant dense<0.000000e+00> : vector<256x128xf32>
    %56 = tpu.matmul %53, %55, %cst_70 {dimension_numbers = #tpu.dot_dimension_numbers<[1], [0], [0], [1], [0, 0, 1, 1], [], []>} : vector<256x384xbf16>, vector<384x128xbf16>, vector<256x128xf32> -> vector<256x128xf32>
    %57 = arith.addf %51, %56 : vector<256x128xf32>
    %58 = vector.extract_strided_slice %44 {offsets = [2, 0, 0], sizes = [16, 16, 384], strides = [1, 1, 1]} : vector<18x16x384xbf16> to vector<16x16x384xbf16>
    %59 = vector.shape_cast %58 : vector<16x16x384xbf16> to vector<256x384xbf16>
    %c2_71 = arith.constant 2 : index
    %c0_72 = arith.constant 0 : index
    %c0_73 = arith.constant 0 : index
    %60 = vector.load %arg5[%c2_71, %c0_72, %c0_73] : memref<3x384x128xbf16, #tpu.memory_space<vmem>>, vector<1x384x128xbf16>
    %61 = vector.shape_cast %60 : vector<1x384x128xbf16> to vector<384x128xbf16>
    %cst_74 = arith.constant dense<0.000000e+00> : vector<256x128xf32>
    %62 = tpu.matmul %59, %61, %cst_74 {dimension_numbers = #tpu.dot_dimension_numbers<[1], [0], [0], [1], [0, 0, 1, 1], [], []>} : vector<256x384xbf16>, vector<384x128xbf16>, vector<256x128xf32> -> vector<256x128xf32>
    %63 = arith.addf %57, %62 : vector<256x128xf32>
    %c0_75 = arith.constant 0 : index
    %c0_76 = arith.constant 0 : index
    %64 = vector.load %arg6[%c0_75, %c0_76] : memref<1x128xf32, #tpu.memory_space<vmem>>, vector<1x128xf32>
    %65 = vector.broadcast %64 : vector<1x128xf32> to vector<256x128xf32>
    %66 = arith.addf %63, %65 : vector<256x128xf32>
    %cst_77 = arith.constant 0.000000e+00 : f32
    %67 = vector.broadcast %cst_77 : f32 to vector<256x128xf32>
    %68 = arith.maximumf %66, %67 : vector<256x128xf32>
    %69 = vector.shape_cast %68 : vector<256x128xf32> to vector<16x16x128xf32>
    %c0_78 = arith.constant 0 : index
    %c0_79 = arith.constant 0 : index
    %c0_80 = arith.constant 0 : index
    %c0_81 = arith.constant 0 : index
    %70 = vector.load %arg7[%c0_78, %c0_79, %c0_80, %c0_81] : memref<1x16x16x128xf32, #tpu.memory_space<vmem>>, vector<1x16x16x128xf32>
    %71 = vector.shape_cast %70 : vector<1x16x16x128xf32> to vector<16x16x128xf32>
    %72 = vector.shape_cast %69 : vector<16x16x128xf32> to vector<1x16x16x128xf32>
    tpu.vector_store %arg7[%c0_78, %c0_79, %c0_80, %c0_81], %72 {strides = array<i32>} : memref<1x16x16x128xf32, #tpu.memory_space<vmem>>, vector<1x16x16x128xf32>,
    return
  }
  func.func @transform_0(%arg0: i32, %arg1: i32) -> (i32, i32, i32, i32) {
    %c0_i32 = arith.constant 0 : i32
    %c0_i32_0 = arith.constant 0 : i32
    %c0_i32_1 = arith.constant 0 : i32
    %c0_i32_2 = arith.constant 0 : i32
    return %arg0, %c0_i32, %c0_i32_0, %c0_i32_1 : i32, i32, i32, i32
  }
  func.func @transform_1(%arg0: i32, %arg1: i32) -> (i32, i32) {
    %c0_i32 = arith.constant 0 : i32
    %c0_i32_0 = arith.constant 0 : i32
    %c0_i32_1 = arith.constant 0 : i32
    return %c0_i32, %c0_i32_0 : i32, i32
  }
  func.func @transform_2(%arg0: i32, %arg1: i32) -> (i32, i32) {
    %c0_i32 = arith.constant 0 : i32
    %c0_i32_0 = arith.constant 0 : i32
    %c0_i32_1 = arith.constant 0 : i32
    return %c0_i32, %c0_i32_0 : i32, i32
  }
  func.func @transform_3(%arg0: i32, %arg1: i32) -> (i32, i32, i32) {
    %c0_i32 = arith.constant 0 : i32
    %c0_i32_0 = arith.constant 0 : i32
    %c0_i32_1 = arith.constant 0 : i32
    %c0_i32_2 = arith.constant 0 : i32
    return %c0_i32, %c0_i32_0, %c0_i32_1 : i32, i32, i32
  }
  func.func @transform_4(%arg0: i32, %arg1: i32) -> (i32, i32) {
    %c0_i32 = arith.constant 0 : i32
    %c0_i32_0 = arith.constant 0 : i32
    %c0_i32_1 = arith.constant 0 : i32
    return %c0_i32, %c0_i32_0 : i32, i32
  }
  func.func @transform_5(%arg0: i32, %arg1: i32) -> (i32, i32, i32, i32) {
    %c0_i32 = arith.constant 0 : i32
    %c0_i32_0 = arith.constant 0 : i32
    %c0_i32_1 = arith.constant 0 : i32
    return %arg0, %arg1, %c0_i32, %c0_i32_0 : i32, i32, i32, i32
  }
}

</mosaic_0001>

<llo_original>
// kernel: double_conv.1
$region0: #{double_conv.1}
  #allocation0 [shape = 'u32[]', space=smem, size = 0x4, offset = 0x4, fixed_abs, tag = 'smem constant byte address 0x4 - core index']
  #allocation1 [shape = 'u32[72,128]{1,0:T(1,128)}', space=vmem, size = 0x9000, scoped, tag = 'internal scratch']
  #allocation2 [shape = 'bf16[20,25,8]{2,1,0:T(8,128)(2,1)}', space=vmem, size = 0x28000, scoped, tag = 'scratch operand']
  #allocation3 [shape = 'bf16[18,25,128]{2,1,0:T(8,128)(2,1)}', space=vmem, size = 0x24000, scoped, tag = 'scratch operand']
  %s0 = inlined_call_operand.vmem [shape: bf16[2,20,16,8], index: 0, kind: input, shape index: {}]
  %s1 = inlined_call_operand.vmem [shape: bf16[72,128], index: 1, kind: input, shape index: {}]
  %s2 = inlined_call_operand.vmem [shape: f32[1,128], index: 2, kind: input, shape index: {}]
  %s3 = inlined_call_operand.vmem [shape: bf16[3,384,128], index: 3, kind: input, shape index: {}]
  %s4 = inlined_call_operand.vmem [shape: f32[1,128], index: 4, kind: input, shape index: {}]
  %s5 = inlined_call_operand.vmem [shape: f32[2,16,16,128], index: 5, kind: output, shape index: {}]
  %s6 = sld [smem:[#allocation0]]
  $region57: #{double_conv.1} parent=0
    _
  %s8 = ssub.s32 1, %s6
  %s9 = scalar_select 0, %s8, %s6
  loop: start=0, step=1, limit=4
  $region2: #{double_conv.1} parent=0 // loop_pre_header
    _
  $region3: #{double_conv.1} parent=0 // loop_header
    %s11 = sphi 0, %s15
    %p12 = scmp.ge.s32.totalorder %s11, 4
    %s18 = sphi 0, %s30
    %s19 = sphi 0, %s26
    %s20 = sphi 0, %s18
    %s21 = sphi 0, %s19
    %s22 = sphi 0, %s20
    %s23 = sphi 0, %s21
    %s33 = sphi 0, %s35
    %s36 = sphi 0, %s33
    %s37 = sphi 0, %s36
    %s53 = sphi 0, %s37
    %s57 = sphi 0, %s57
    %s59 = sphi 0, %s57
    %s60 = sphi 0, %s59
    %s74 = sphi 0, %s60
    %s78 = sphi 0, %s78
    %s80 = sphi 0, %s78
    %s81 = sphi 0, %s80
    %s95 = sphi 0, %s81
    %s99 = sphi 0, %s99
    %s101 = sphi 0, %s99
    %s102 = sphi 0, %s101
    %s116 = sphi 0, %s102
    %s120 = sphi 0, %s120
    %s122 = sphi 0, %s120
    %s123 = sphi 0, %s122
    %s137 = sphi 0, %s123
    %s145 = sphi 0, %s147
    %s148 = sphi 0, %s145
    %s149 = sphi 0, %s148
    %s165 = sphi 0, %s149
  $region4: #{double_conv.1} parent=0 // loop_header_branch
    %14 = sbr.rel (%p12) target = $region8
  $region5: #{double_conv.1} parent=0 // loop_body
    %s16 = ssub.s32 %s11, 1
    %s17 = ssub.s32 %s11, 2
    %s24 = sadd.s32 1, %s19
    %p25 = scmp.ge.s32.totalorder %s24, 1
    %s26 = scalar_select %p25, 0, %s24
    %s27 = sadd.s32 1, %s18
    %s28 = scalar_select %p25, %s27, %s18
    %p29 = scmp.ge.s32.totalorder %s28, 2
    %s30 = scalar_select %p29, 0, %s28
    %s31 = ssub.s32 %s18, %s30
    %p32 = scmp.eq.s32.totalorder %s31, 0
    %s34 = sadd.s32 %s33, 1
    %s35 = scalar_select %p32, %s33, %s34
    %p38 = pneg %p32
    %p39 = scmp.eq.s32.totalorder %s11, 1
    %p40 = por %p38, %p39
    %p41 = scmp.ne.s32.totalorder %s33, %s36
    %p42 = scmp.eq.s32.totalorder %s11, 0
    %p43 = por %p41, %p42
    %p44 = scmp.ne.s32.totalorder %s33, %s36
    %p45 = scmp.eq.s32.totalorder %s16, 1
    %p46 = por %p44, %p45
    %p47 = scmp.ne.s32.totalorder %s36, %s37
    %p48 = scmp.eq.s32.totalorder %s16, 0
    %p49 = por %p47, %p48
    %p50 = scmp.ne.s32.totalorder %s36, %s37
    %p51 = scmp.eq.s32.totalorder %s17, 1
    %p52 = por %p50, %p51
    %p54 = scmp.ne.s32.totalorder %s37, %s53
    %p55 = scmp.eq.s32.totalorder %s17, 0
    %p56 = por %p54, %p55
    %s58 = sadd.s32 %s57, 1
    %p61 = scmp.eq.s32.totalorder %s11, 1
    %p62 = scmp.ne.s32.totalorder %s57, %s59
    %p63 = scmp.eq.s32.totalorder %s11, 0
    %p64 = por %p62, %p63
    %p65 = scmp.ne.s32.totalorder %s57, %s59
    %p66 = scmp.eq.s32.totalorder %s16, 1
    %p67 = por %p65, %p66
    %p68 = scmp.ne.s32.totalorder %s59, %s60
    %p69 = scmp.eq.s32.totalorder %s16, 0
    %p70 = por %p68, %p69
    %p71 = scmp.ne.s32.totalorder %s59, %s60
    %p72 = scmp.eq.s32.totalorder %s17, 1
    %p73 = por %p71, %p72
    %p75 = scmp.ne.s32.totalorder %s60, %s74
    %p76 = scmp.eq.s32.totalorder %s17, 0
    %p77 = por %p75, %p76
    %s79 = sadd.s32 %s78, 1
    %p82 = scmp.eq.s32.totalorder %s11, 1
    %p83 = scmp.ne.s32.totalorder %s78, %s80
    %p84 = scmp.eq.s32.totalorder %s11, 0
    %p85 = por %p83, %p84
    %p86 = scmp.ne.s32.totalorder %s78, %s80
    %p87 = scmp.eq.s32.totalorder %s16, 1
    %p88 = por %p86, %p87
    %p89 = scmp.ne.s32.totalorder %s80, %s81
    %p90 = scmp.eq.s32.totalorder %s16, 0
    %p91 = por %p89, %p90
    %p92 = scmp.ne.s32.totalorder %s80, %s81
    %p93 = scmp.eq.s32.totalorder %s17, 1
    %p94 = por %p92, %p93
    %p96 = scmp.ne.s32.totalorder %s81, %s95
    %p97 = scmp.eq.s32.totalorder %s17, 0
    %p98 = por %p96, %p97
    %s100 = sadd.s32 %s99, 1
    %p103 = scmp.eq.s32.totalorder %s11, 1
    %p104 = scmp.ne.s32.totalorder %s99, %s101
    %p105 = scmp.eq.s32.totalorder %s11, 0
    %p106 = por %p104, %p105
    %p107 = scmp.ne.s32.totalorder %s99, %s101
    %p108 = scmp.eq.s32.totalorder %s16, 1
    %p109 = por %p107, %p108
    %p110 = scmp.ne.s32.totalorder %s101, %s102
    %p111 = scmp.eq.s32.totalorder %s16, 0
    %p112 = por %p110, %p111
    %p113 = scmp.ne.s32.totalorder %s101, %s102
    %p114 = scmp.eq.s32.totalorder %s17, 1
    %p115 = por %p113, %p114
    %p117 = scmp.ne.s32.totalorder %s102, %s116
    %p118 = scmp.eq.s32.totalorder %s17, 0
    %p119 = por %p117, %p118
    %s121 = sadd.s32 %s120, 1
    %p124 = scmp.eq.s32.totalorder %s11, 1
    %p125 = scmp.ne.s32.totalorder %s120, %s122
    %p126 = scmp.eq.s32.totalorder %s11, 0
    %p127 = por %p125, %p126
    %p128 = scmp.ne.s32.totalorder %s120, %s122
    %p129 = scmp.eq.s32.totalorder %s16, 1
    %p130 = por %p128, %p129
    %p131 = scmp.ne.s32.totalorder %s122, %s123
    %p132 = scmp.eq.s32.totalorder %s16, 0
    %p133 = por %p131, %p132
    %p134 = scmp.ne.s32.totalorder %s122, %s123
    %p135 = scmp.eq.s32.totalorder %s17, 1
    %p136 = por %p134, %p135
    %p138 = scmp.ne.s32.totalorder %s123, %s137
    %p139 = scmp.eq.s32.totalorder %s17, 0
    %p140 = por %p138, %p139
    %s141 = ssub.s32 %s18, %s30
    %s142 = ssub.s32 %s19, %s26
    %s143 = sor.u32 %s141, %s142
    %p144 = scmp.eq.s32.totalorder %s143, 0
    %s146 = sadd.s32 %s145, 1
    %s147 = scalar_select %p144, %s145, %s146
    %p150 = pneg %p144
    %p151 = scmp.eq.s32.totalorder %s11, 1
    %p152 = por %p150, %p151
    %p153 = scmp.ne.s32.totalorder %s145, %s148
    %p154 = scmp.eq.s32.totalorder %s11, 0
    %p155 = por %p153, %p154
    %p156 = scmp.ne.s32.totalorder %s145, %s148
    %p157 = scmp.eq.s32.totalorder %s16, 1
    %p158 = por %p156, %p157
    %p159 = scmp.ne.s32.totalorder %s148, %s149
    %p160 = scmp.eq.s32.totalorder %s16, 0
    %p161 = por %p159, %p160
    %p162 = scmp.ne.s32.totalorder %s148, %s149
    %p163 = scmp.eq.s32.totalorder %s17, 1
    %p164 = por %p162, %p163
    %p166 = scmp.ne.s32.totalorder %s149, %s165
    %p167 = scmp.eq.s32.totalorder %s17, 0
    %p168 = por %p166, %p167
    %p169 = scmp.le.s32.totalorder 1, %s11
    %p170 = scmp.lt.s32.totalorder %s11, 3
    %p171 = pnand %p169, %p170
    %p172 = pneg %p171
    // Predicated region
    $region9: #{double_conv.1} parent=5 // pred_check
      _
    $region10: #{double_conv.1} parent=5 // pred_check_branch
      %174 = sbr.rel (%p171) target = $region12
    $region11: #{double_conv.1} parent=5 // pred_region
      %s175 = ssub.s32 %s11, 1
      // Predicated region
      $region13: #{double_conv.1} parent=11 // pred_check
        %p176 = pneg %p70
      $region14: #{double_conv.1} parent=11 // pred_check_branch
        %178 = sbr.rel (%p176) target = $region16
      $region15: #{double_conv.1} parent=11 // pred_region
        _
      $region16: #{double_conv.1} parent=11 // pred_fallthru
        _
      // Predicated region
      $region17: #{double_conv.1} parent=11 // pred_check
        %p179 = pneg %p91
      $region18: #{double_conv.1} parent=11 // pred_check_branch
        %181 = sbr.rel (%p179) target = $region20
      $region19: #{double_conv.1} parent=11 // pred_region
        _
      $region20: #{double_conv.1} parent=11 // pred_fallthru
        _
      // Predicated region
      $region21: #{double_conv.1} parent=11 // pred_check
        %p182 = pneg %p112
      $region22: #{double_conv.1} parent=11 // pred_check_branch
        %184 = sbr.rel (%p182) target = $region24
      $region23: #{double_conv.1} parent=11 // pred_region
        _
      $region24: #{double_conv.1} parent=11 // pred_fallthru
        _
      // Predicated region
      $region25: #{double_conv.1} parent=11 // pred_check
        %p185 = pneg %p133
      $region26: #{double_conv.1} parent=11 // pred_check_branch
        %187 = sbr.rel (%p185) target = $region28
      $region27: #{double_conv.1} parent=11 // pred_region
        _
      $region28: #{double_conv.1} parent=11 // pred_fallthru
        _
    $region12: #{double_conv.1} parent=5 // pred_fallthru
      _
    %p188 = scmp.lt.s32.totalorder %s11, 2
    // Predicated region
    $region29: #{double_conv.1} parent=5 // pred_check
      %p189 = pneg %p188
    $region30: #{double_conv.1} parent=5 // pred_check_branch
      %191 = sbr.rel (%p189) target = $region32
    $region31: #{double_conv.1} parent=5 // pred_region
      // Predicated region
      $region33: #{double_conv.1} parent=31 // pred_check
        %p192 = pneg %p43
      $region34: #{double_conv.1} parent=31 // pred_check_branch
        %194 = sbr.rel (%p192) target = $region36
      $region35: #{double_conv.1} parent=31 // pred_region
        %p195 = scmp.lt.s32.totalorder %s18, 1
        %s196 = scalar_select %p195, %s18, 1
        %s197 = smul.addr %s196, 40
        %s198 = smul.addr %s197, 4
        %s199 = scalar_lea.vmem %s0, %s198
      $region36: #{double_conv.1} parent=31 // pred_fallthru
        _
    $region32: #{double_conv.1} parent=5 // pred_fallthru
      _
    %p200 = scmp.le.s32.totalorder 1, %s11
    %p201 = scmp.lt.s32.totalorder %s11, 3
    %p202 = pnand %p200, %p201
    %p203 = pneg %p202
    // Predicated region
    $region37: #{double_conv.1} parent=5 // pred_check
      _
    $region38: #{double_conv.1} parent=5 // pred_check_branch
      %205 = sbr.rel (%p202) target = $region40
    $region39: #{double_conv.1} parent=5 // pred_region
      %s206 = ssub.s32 %s11, 1
      %p207 = scmp.lt.s32.totalorder %s20, 1
      %s208 = scalar_select %p207, %s20, 1
      %s209 = smul.addr %s208, 40
      %s210 = smul.addr %s209, 4
      %s211 = scalar_lea.vmem %s0, %s210
      %p212 = pneg %p49
      %p213 = pneg %p46
      %p214 = pneg %p70
      %p215 = pneg %p67
      %p216 = pneg %p91
      %p217 = pneg %p88
      %p218 = pneg %p112
      %p219 = pneg %p109
      %p220 = pneg %p133
      %p221 = pneg %p130
      %p222 = pneg %p161
      %p223 = pneg %p158
      %s224 = smul.u32 16, %s21
      %p225 = scmp.lt.s32.totalorder %s20, 1
      %s226 = scalar_select %p225, %s20, 1
      %p227 = scmp.lt.s32.totalorder %s224, 15
      %s228 = scalar_select %p227, %s224, 15
      %s229 = smul.addr %s228, 2
      %s230 = smul.addr %s226, 32
      %s231 = sadd.s32 %s229, %s230
      %s232 = smul.addr %s231, 8
      %s233 = scalar_lea.vmem %s5, %s232
      %p234 = scmp.lt.s32.totalorder %s20, 1
      %s235 = scalar_select %p234, %s20, 1
      %s236 = smul.addr %s235, 40
      %s237 = smul.addr %s236, 4
      %s238 = scalar_lea.vmem %s0, %s237
      %s239 = smul.u32 16, %s21
      %p240 = scmp.lt.s32.totalorder %s20, 1
      %s241 = scalar_select %p240, %s20, 1
      %p242 = scmp.lt.s32.totalorder %s239, 15
      %s243 = scalar_select %p242, %s239, 15
      %s244 = smul.addr %s243, 2
      %s245 = smul.addr %s241, 32
      %s246 = sadd.s32 %s244, %s245
      %s247 = smul.addr %s246, 8
      %s248 = scalar_lea.vmem %s5, %s247
      %s249 = smul.u32 16, %s21
      %s251 = smul.u32 %s21, 16
      %vm252 = vcmask 60419
      %vm253 = vsmask.f32 7950
      %vm254 = vmand %vm252, %vm253
      %v255 = vld [vmem:[#allocation2] sm:$0x8]
      %v256 = vsel %vm254, 0, %v255
      %257 = vst [vmem:[#allocation2] sm:$0x8] %v256
      %v258 = vld [vmem:[#allocation2 + $0x10] sm:$0x8]
      %v259 = vsel %vm254, 0, %v258
      %260 = vst [vmem:[#allocation2 + $0x10] sm:$0x8] %v259
      %v261 = vld [vmem:[#allocation2 + $0x20] sm:$0x8]
      %v262 = vsel %vm254, 0, %v261
      %263 = vst [vmem:[#allocation2 + $0x20] sm:$0x8] %v262
      %v264 = vld [vmem:[#allocation2 + $0x30] sm:$0x8]
      %v265 = vsel %vm254, 0, %v264
      %266 = vst [vmem:[#allocation2 + $0x30] sm:$0x8] %v265
      %v267 = vld [vmem:[#allocation2 + $0x40] sm:$0x8]
      %v268 = vsel %vm254, 0, %v267
      %269 = vst [vmem:[#allocation2 + $0x40] sm:$0x8] %v268
      %v270 = vld [vmem:[#allocation2 + $0x50] sm:$0x8]
      %v271 = vsel %vm254, 0, %v270
      %272 = vst [vmem:[#allocation2 + $0x50] sm:$0x8] %v271
      %v273 = vld [vmem:[#allocation2 + $0x60] sm:$0x8]
      %v274 = vsel %vm254, 0, %v273
      %275 = vst [vmem:[#allocation2 + $0x60] sm:$0x8] %v274
      %v276 = vld [vmem:[#allocation2 + $0x70] sm:$0x8]
      %v277 = vsel %vm254, 0, %v276
      %278 = vst [vmem:[#allocation2 + $0x70] sm:$0x8] %v277
      %v279 = vld [vmem:[#allocation2 + $0x80] sm:$0x8]
      %v280 = vsel %vm254, 0, %v279
      %281 = vst [vmem:[#allocation2 + $0x80] sm:$0x8] %v280
      %v282 = vld [vmem:[#allocation2 + $0x90] sm:$0x8]
      %v283 = vsel %vm254, 0, %v282
      %284 = vst [vmem:[#allocation2 + $0x90] sm:$0x8] %v283
      %v285 = vld [vmem:[#allocation2 + $0xa0] sm:$0x8]
      %v286 = vsel %vm254, 0, %v285
      %287 = vst [vmem:[#allocation2 + $0xa0] sm:$0x8] %v286
      %v288 = vld [vmem:[#allocation2 + $0xb0] sm:$0x8]
      %v289 = vsel %vm254, 0, %v288
      %290 = vst [vmem:[#allocation2 + $0xb0] sm:$0x8] %v289
      %v291 = vld [vmem:[#allocation2 + $0xc0] sm:$0x8]
      %v292 = vsel %vm254, 0, %v291
      %293 = vst [vmem:[#allocation2 + $0xc0] sm:$0x8] %v292
      %v294 = vld [vmem:[#allocation2 + $0xd0] sm:$0x8]
      %v295 = vsel %vm254, 0, %v294
      %296 = vst [vmem:[#allocation2 + $0xd0] sm:$0x8] %v295
      %v297 = vld [vmem:[#allocation2 + $0xe0] sm:$0x8]
      %v298 = vsel %vm254, 0, %v297
      %299 = vst [vmem:[#allocation2 + $0xe0] sm:$0x8] %v298
      %v300 = vld [vmem:[#allocation2 + $0xf0] sm:$0x8]
      %v301 = vsel %vm254, 0, %v300
      %302 = vst [vmem:[#allocation2 + $0xf0] sm:$0x8] %v301
      %v303 = vld [vmem:[#allocation2 + $0x100] sm:$0x8]
      %v304 = vsel %vm254, 0, %v303
      %305 = vst [vmem:[#allocation2 + $0x100] sm:$0x8] %v304
      %v306 = vld [vmem:[#allocation2 + $0x110] sm:$0x8]
      %v307 = vsel %vm254, 0, %v306
      %308 = vst [vmem:[#allocation2 + $0x110] sm:$0x8] %v307
      %v309 = vld [vmem:[#allocation2 + $0x120] sm:$0x8]
      %v310 = vsel %vm254, 0, %v309
      %311 = vst [vmem:[#allocation2 + $0x120] sm:$0x8] %v310
      %v312 = vld [vmem:[#allocation2 + $0x130] sm:$0x8]
      %v313 = vsel %vm254, 0, %v312
      %314 = vst [vmem:[#allocation2 + $0x130] sm:$0x8] %v313
      %vm315 = vcmask 57344
      %vm316 = vsmask.f32 256
      %vm317 = vmand %vm315, %vm316
      %v318 = vld [vmem:[#allocation2 + $0xc] sm:$0x1]
      %v319 = vsel %vm317, 0, %v318
      %320 = vst [vmem:[#allocation2 + $0xc] sm:$0x1] %v319
      %v321 = vld [vmem:[#allocation2 + $0x1c] sm:$0x1]
      %v322 = vsel %vm317, 0, %v321
      %323 = vst [vmem:[#allocation2 + $0x1c] sm:$0x1] %v322
      %v324 = vld [vmem:[#allocation2 + $0x2c] sm:$0x1]
      %v325 = vsel %vm317, 0, %v324
      %326 = vst [vmem:[#allocation2 + $0x2c] sm:$0x1] %v325
      %v327 = vld [vmem:[#allocation2 + $0x3c] sm:$0x1]
      %v328 = vsel %vm317, 0, %v327
      %329 = vst [vmem:[#allocation2 + $0x3c] sm:$0x1] %v328
      %v330 = vld [vmem:[#allocation2 + $0x4c] sm:$0x1]
      %v331 = vsel %vm317, 0, %v330
      %332 = vst [vmem:[#allocation2 + $0x4c] sm:$0x1] %v331
      %v333 = vld [vmem:[#allocation2 + $0x5c] sm:$0x1]
      %v334 = vsel %vm317, 0, %v333
      %335 = vst [vmem:[#allocation2 + $0x5c] sm:$0x1] %v334
      %v336 = vld [vmem:[#allocation2 + $0x6c] sm:$0x1]
      %v337 = vsel %vm317, 0, %v336
      %338 = vst [vmem:[#allocation2 + $0x6c] sm:$0x1] %v337
      %v339 = vld [vmem:[#allocation2 + $0x7c] sm:$0x1]
      %v340 = vsel %vm317, 0, %v339
      %341 = vst [vmem:[#allocation2 + $0x7c] sm:$0x1] %v340
      %v342 = vld [vmem:[#allocation2 + $0x8c] sm:$0x1]
      %v343 = vsel %vm317, 0, %v342
      %344 = vst [vmem:[#allocation2 + $0x8c] sm:$0x1] %v343
      %v345 = vld [vmem:[#allocation2 + $0x9c] sm:$0x1]
      %v346 = vsel %vm317, 0, %v345
      %347 = vst [vmem:[#allocation2 + $0x9c] sm:$0x1] %v346
      %v348 = vld [vmem:[#allocation2 + $0xac] sm:$0x1]
      %v349 = vsel %vm317, 0, %v348
      %350 = vst [vmem:[#allocation2 + $0xac] sm:$0x1] %v349
      %v351 = vld [vmem:[#allocation2 + $0xbc] sm:$0x1]
      %v352 = vsel %vm317, 0, %v351
      %353 = vst [vmem:[#allocation2 + $0xbc] sm:$0x1] %v352
      %v354 = vld [vmem:[#allocation2 + $0xcc] sm:$0x1]
      %v355 = vsel %vm317, 0, %v354
      %356 = vst [vmem:[#allocation2 + $0xcc] sm:$0x1] %v355
      %v357 = vld [vmem:[#allocation2 + $0xdc] sm:$0x1]
      %v358 = vsel %vm317, 0, %v357
      %359 = vst [vmem:[#allocation2 + $0xdc] sm:$0x1] %v358
      %v360 = vld [vmem:[#allocation2 + $0xec] sm:$0x1]
      %v361 = vsel %vm317, 0, %v360
      %362 = vst [vmem:[#allocation2 + $0xec] sm:$0x1] %v361
      %v363 = vld [vmem:[#allocation2 + $0xfc] sm:$0x1]
      %v364 = vsel %vm317, 0, %v363
      %365 = vst [vmem:[#allocation2 + $0xfc] sm:$0x1] %v364
      %v366 = vld [vmem:[#allocation2 + $0x10c] sm:$0x1]
      %v367 = vsel %vm317, 0, %v366
      %368 = vst [vmem:[#allocation2 + $0x10c] sm:$0x1] %v367
      %v369 = vld [vmem:[#allocation2 + $0x11c] sm:$0x1]
      %v370 = vsel %vm317, 0, %v369
      %371 = vst [vmem:[#allocation2 + $0x11c] sm:$0x1] %v370
      %v372 = vld [vmem:[#allocation2 + $0x12c] sm:$0x1]
      %v373 = vsel %vm317, 0, %v372
      %374 = vst [vmem:[#allocation2 + $0x12c] sm:$0x1] %v373
      %v375 = vld [vmem:[#allocation2 + $0x13c] sm:$0x1]
      %v376 = vsel %vm317, 0, %v375
      %377 = vst [vmem:[#allocation2 + $0x13c] sm:$0x1] %v376
      %s378 = smul.u32 %s251, 2
      %s379 = smul.addr %s378, 4
      %s380 = scalar_lea.vmem %s238, %s379
      %v381 = vld [vmem:[%s380] sm:$0xf]
      %v382 = vld [vmem:[%s380 + $0x4] sm:$0xf]
      %v383 = vld [vmem:[%s380 + $0x8] sm:$0xf]
      %v384 = vld [vmem:[%s380 + $0xc] sm:$0xf]
      %v385 = vld [vmem:[%s380 + $0x10] sm:$0xf]
      %v386 = vld [vmem:[%s380 + $0x14] sm:$0xf]
      %v387 = vld [vmem:[%s380 + $0x18] sm:$0xf]
      %v388 = vld [vmem:[%s380 + $0x1c] sm:$0xf]
      %v389 = vld [vmem:[%s380 + $0x20] sm:$0xf]
      %v390 = vld [vmem:[%s380 + $0x24] sm:$0xf]
      %v391 = vld [vmem:[%s380 + $0x28] sm:$0xf]
      %v392 = vld [vmem:[%s380 + $0x2c] sm:$0xf]
      %v393 = vld [vmem:[%s380 + $0x30] sm:$0xf]
      %v394 = vld [vmem:[%s380 + $0x34] sm:$0xf]
      %v395 = vld [vmem:[%s380 + $0x38] sm:$0xf]
      %v396 = vld [vmem:[%s380 + $0x3c] sm:$0xf]
      %v397 = vld [vmem:[%s380 + $0x40] sm:$0xf]
      %v398 = vld [vmem:[%s380 + $0x44] sm:$0xf]
      %v399 = vld [vmem:[%s380 + $0x48] sm:$0xf]
      %v400 = vld [vmem:[%s380 + $0x4c] sm:$0xf]
      %v401 = vld [vmem:[%s380 + $0x50] sm:$0xf]
      %v402 = vld [vmem:[%s380 + $0x54] sm:$0xf]
      %v403 = vld [vmem:[%s380 + $0x58] sm:$0xf]
      %v404 = vld [vmem:[%s380 + $0x5c] sm:$0xf]
      %v405 = vld [vmem:[%s380 + $0x60] sm:$0xf]
      %v406 = vld [vmem:[%s380 + $0x64] sm:$0xf]
      %v407 = vld [vmem:[%s380 + $0x68] sm:$0xf]
      %v408 = vld [vmem:[%s380 + $0x6c] sm:$0xf]
      %v409 = vld [vmem:[%s380 + $0x70] sm:$0xf]
      %v410 = vld [vmem:[%s380 + $0x74] sm:$0xf]
      %v411 = vld [vmem:[%s380 + $0x78] sm:$0xf]
      %v412 = vld [vmem:[%s380 + $0x7c] sm:$0xf]
      %v413 = vld [vmem:[%s380 + $0x80] sm:$0xf]
      %v414 = vld [vmem:[%s380 + $0x84] sm:$0xf]
      %v415 = vld [vmem:[%s380 + $0x88] sm:$0xf]
      %v416 = vld [vmem:[%s380 + $0x8c] sm:$0xf]
      %v417 = vld [vmem:[%s380 + $0x90] sm:$0xf]
      %v418 = vld [vmem:[%s380 + $0x94] sm:$0xf]
      %v419 = vld [vmem:[%s380 + $0x98] sm:$0xf]
      %v420 = vld [vmem:[%s380 + $0x9c] sm:$0xf]
      %vm421 = vcmask 60416
      %422 = vst.msk [vmem:[#allocation2 + $0x4] sm:$0xf] %vm421, %v381
      %423 = vst.msk [vmem:[#allocation2 + $0x8] sm:$0xf] %vm421, %v382
      %424 = vst.msk [vmem:[#allocation2 + $0x14] sm:$0xf] %vm421, %v383
      %425 = vst.msk [vmem:[#allocation2 + $0x18] sm:$0xf] %vm421, %v384
      %426 = vst.msk [vmem:[#allocation2 + $0x24] sm:$0xf] %vm421, %v385
      %427 = vst.msk [vmem:[#allocation2 + $0x28] sm:$0xf] %vm421, %v386
      %428 = vst.msk [vmem:[#allocation2 + $0x34] sm:$0xf] %vm421, %v387
      %429 = vst.msk [vmem:[#allocation2 + $0x38] sm:$0xf] %vm421, %v388
      %430 = vst.msk [vmem:[#allocation2 + $0x44] sm:$0xf] %vm421, %v389
      %431 = vst.msk [vmem:[#allocation2 + $0x48] sm:$0xf] %vm421, %v390
      %432 = vst.msk [vmem:[#allocation2 + $0x54] sm:$0xf] %vm421, %v391
      %433 = vst.msk [vmem:[#allocation2 + $0x58] sm:$0xf] %vm421, %v392
      %434 = vst.msk [vmem:[#allocation2 + $0x64] sm:$0xf] %vm421, %v393
      %435 = vst.msk [vmem:[#allocation2 + $0x68] sm:$0xf] %vm421, %v394
      %436 = vst.msk [vmem:[#allocation2 + $0x74] sm:$0xf] %vm421, %v395
      %437 = vst.msk [vmem:[#allocation2 + $0x78] sm:$0xf] %vm421, %v396
      %438 = vst.msk [vmem:[#allocation2 + $0x84] sm:$0xf] %vm421, %v397
      %439 = vst.msk [vmem:[#allocation2 + $0x88] sm:$0xf] %vm421, %v398
      %440 = vst.msk [vmem:[#allocation2 + $0x94] sm:$0xf] %vm421, %v399
      %441 = vst.msk [vmem:[#allocation2 + $0x98] sm:$0xf] %vm421, %v400
      %442 = vst.msk [vmem:[#allocation2 + $0xa4] sm:$0xf] %vm421, %v401
      %443 = vst.msk [vmem:[#allocation2 + $0xa8] sm:$0xf] %vm421, %v402
      %444 = vst.msk [vmem:[#allocation2 + $0xb4] sm:$0xf] %vm421, %v403
      %445 = vst.msk [vmem:[#allocation2 + $0xb8] sm:$0xf] %vm421, %v404
      %446 = vst.msk [vmem:[#allocation2 + $0xc4] sm:$0xf] %vm421, %v405
      %447 = vst.msk [vmem:[#allocation2 + $0xc8] sm:$0xf] %vm421, %v406
      %448 = vst.msk [vmem:[#allocation2 + $0xd4] sm:$0xf] %vm421, %v407
      %449 = vst.msk [vmem:[#allocation2 + $0xd8] sm:$0xf] %vm421, %v408
      %450 = vst.msk [vmem:[#allocation2 + $0xe4] sm:$0xf] %vm421, %v409
      %451 = vst.msk [vmem:[#allocation2 + $0xe8] sm:$0xf] %vm421, %v410
      %452 = vst.msk [vmem:[#allocation2 + $0xf4] sm:$0xf] %vm421, %v411
      %453 = vst.msk [vmem:[#allocation2 + $0xf8] sm:$0xf] %vm421, %v412
      %454 = vst.msk [vmem:[#allocation2 + $0x104] sm:$0xf] %vm421, %v413
      %455 = vst.msk [vmem:[#allocation2 + $0x108] sm:$0xf] %vm421, %v414
      %456 = vst.msk [vmem:[#allocation2 + $0x114] sm:$0xf] %vm421, %v415
      %457 = vst.msk [vmem:[#allocation2 + $0x118] sm:$0xf] %vm421, %v416
      %458 = vst.msk [vmem:[#allocation2 + $0x124] sm:$0xf] %vm421, %v417
      %459 = vst.msk [vmem:[#allocation2 + $0x128] sm:$0xf] %vm421, %v418
      %460 = vst.msk [vmem:[#allocation2 + $0x134] sm:$0xf] %vm421, %v419
      %461 = vst.msk [vmem:[#allocation2 + $0x138] sm:$0xf] %vm421, %v420
      %v462 = vld [vmem:[#allocation2] sm:$0x8]
      %v463 = vld [vmem:[#allocation2 + $0x4] sm:$0xf]
      %v464 = vld [vmem:[#allocation2 + $0x8] sm:$0xf]
      %v465 = vld [vmem:[#allocation2 + $0x10] sm:$0x8]
      %v466 = vld [vmem:[#allocation2 + $0x14] sm:$0xf]
      %v467 = vld [vmem:[#allocation2 + $0x18] sm:$0xf]
      %v468 = vld [vmem:[#allocation2 + $0x20] sm:$0x8]
      %v469 = vld [vmem:[#allocation2 + $0x24] sm:$0xf]
      %v470 = vld [vmem:[#allocation2 + $0x28] sm:$0xf]
      %v471 = vld [vmem:[#allocation2 + $0x30] sm:$0x8]
      %v472 = vld [vmem:[#allocation2 + $0x34] sm:$0xf]
      %v473 = vld [vmem:[#allocation2 + $0x38] sm:$0xf]
      %v474 = vld [vmem:[#allocation2 + $0x40] sm:$0x8]
      %v475 = vld [vmem:[#allocation2 + $0x44] sm:$0xf]
      %v476 = vld [vmem:[#allocation2 + $0x48] sm:$0xf]
      %v477 = vld [vmem:[#allocation2 + $0x50] sm:$0x8]
      %v478 = vld [vmem:[#allocation2 + $0x54] sm:$0xf]
      %v479 = vld [vmem:[#allocation2 + $0x58] sm:$0xf]
      %v480 = vld [vmem:[#allocation2 + $0x60] sm:$0x8]
      %v481 = vld [vmem:[#allocation2 + $0x64] sm:$0xf]
      %v482 = vld [vmem:[#allocation2 + $0x68] sm:$0xf]
      %v483 = vld [vmem:[#allocation2 + $0x70] sm:$0x8]
      %v484 = vld [vmem:[#allocation2 + $0x74] sm:$0xf]
      %v485 = vld [vmem:[#allocation2 + $0x78] sm:$0xf]
      %v486 = vld [vmem:[#allocation2 + $0x80] sm:$0x8]
      %v487 = vld [vmem:[#allocation2 + $0x84] sm:$0xf]
      %v488 = vld [vmem:[#allocation2 + $0x88] sm:$0xf]
      %v489 = vld [vmem:[#allocation2 + $0x90] sm:$0x8]
      %v490 = vld [vmem:[#allocation2 + $0x94] sm:$0xf]
      %v491 = vld [vmem:[#allocation2 + $0x98] sm:$0xf]
      %v492 = vld [vmem:[#allocation2 + $0xa0] sm:$0x8]
      %v493 = vld [vmem:[#allocation2 + $0xa4] sm:$0xf]
      %v494 = vld [vmem:[#allocation2 + $0xa8] sm:$0xf]
      %v495 = vld [vmem:[#allocation2 + $0xb0] sm:$0x8]
      %v496 = vld [vmem:[#allocation2 + $0xb4] sm:$0xf]
      %v497 = vld [vmem:[#allocation2 + $0xb8] sm:$0xf]
      %v498 = vld [vmem:[#allocation2 + $0xc0] sm:$0x8]
      %v499 = vld [vmem:[#allocation2 + $0xc4] sm:$0xf]
      %v500 = vld [vmem:[#allocation2 + $0xc8] sm:$0xf]
      %v501 = vld [vmem:[#allocation2 + $0xd0] sm:$0x8]
      %v502 = vld [vmem:[#allocation2 + $0xd4] sm:$0xf]
      %v503 = vld [vmem:[#allocation2 + $0xd8] sm:$0xf]
      %v504 = vld [vmem:[#allocation2 + $0xe0] sm:$0x8]
      %v505 = vld [vmem:[#allocation2 + $0xe4] sm:$0xf]
      %v506 = vld [vmem:[#allocation2 + $0xe8] sm:$0xf]
      %v507 = vld [vmem:[#allocation2 + $0xf0] sm:$0x8]
      %v508 = vld [vmem:[#allocation2 + $0xf4] sm:$0xf]
      %v509 = vld [vmem:[#allocation2 + $0xf8] sm:$0xf]
      %v510 = vld [vmem:[#allocation2 + $0x100] sm:$0x8]
      %v511 = vld [vmem:[#allocation2 + $0x104] sm:$0xf]
      %v512 = vld [vmem:[#allocation2 + $0x108] sm:$0xf]
      %v513 = vld [vmem:[#allocation2 + $0x110] sm:$0x8]
      %v514 = vld [vmem:[#allocation2 + $0x114] sm:$0xf]
      %v515 = vld [vmem:[#allocation2 + $0x118] sm:$0xf]
      %v516 = vld [vmem:[#allocation2 + $0xc] sm:$0x1]
      %v517 = vld [vmem:[#allocation2 + $0x1c] sm:$0x1]
      %v518 = vld [vmem:[#allocation2 + $0x2c] sm:$0x1]
      %v519 = vld [vmem:[#allocation2 + $0x3c] sm:$0x1]
      %v520 = vld [vmem:[#allocation2 + $0x4c] sm:$0x1]
      %v521 = vld [vmem:[#allocation2 + $0x5c] sm:$0x1]
      %v522 = vld [vmem:[#allocation2 + $0x6c] sm:$0x1]
      %v523 = vld [vmem:[#allocation2 + $0x7c] sm:$0x1]
      %v524 = vld [vmem:[#allocation2 + $0x8c] sm:$0x1]
      %v525 = vld [vmem:[#allocation2 + $0x9c] sm:$0x1]
      %v526 = vld [vmem:[#allocation2 + $0xac] sm:$0x1]
      %v527 = vld [vmem:[#allocation2 + $0xbc] sm:$0x1]
      %v528 = vld [vmem:[#allocation2 + $0xcc] sm:$0x1]
      %v529 = vld [vmem:[#allocation2 + $0xdc] sm:$0x1]
      %v530 = vld [vmem:[#allocation2 + $0xec] sm:$0x1]
      %v531 = vld [vmem:[#allocation2 + $0xfc] sm:$0x1]
      %v532 = vld [vmem:[#allocation2 + $0x10c] sm:$0x1]
      %v533 = vld [vmem:[#allocation2 + $0x11c] sm:$0x1]
      %s534 = scalar_lea.vmem [#allocation2], 16
      %v535 = vld [vmem:[%s534] sm:$0x8]
      %v536 = vld [vmem:[%s534 + $0x4] sm:$0xf]
      %v537 = vld [vmem:[%s534 + $0x8] sm:$0xf]
      %v538 = vld [vmem:[%s534 + $0x10] sm:$0x8]
      %v539 = vld [vmem:[%s534 + $0x14] sm:$0xf]
      %v540 = vld [vmem:[%s534 + $0x18] sm:$0xf]
      %v541 = vld [vmem:[%s534 + $0x20] sm:$0x8]
      %v542 = vld [vmem:[%s534 + $0x24] sm:$0xf]
      %v543 = vld [vmem:[%s534 + $0x28] sm:$0xf]
      %v544 = vld [vmem:[%s534 + $0x30] sm:$0x8]
      %v545 = vld [vmem:[%s534 + $0x34] sm:$0xf]
      %v546 = vld [vmem:[%s534 + $0x38] sm:$0xf]
      %v547 = vld [vmem:[%s534 + $0x40] sm:$0x8]
      %v548 = vld [vmem:[%s534 + $0x44] sm:$0xf]
      %v549 = vld [vmem:[%s534 + $0x48] sm:$0xf]
      %v550 = vld [vmem:[%s534 + $0x50] sm:$0x8]
      %v551 = vld [vmem:[%s534 + $0x54] sm:$0xf]
      %v552 = vld [vmem:[%s534 + $0x58] sm:$0xf]
      %v553 = vld [vmem:[%s534 + $0x60] sm:$0x8]
      %v554 = vld [vmem:[%s534 + $0x64] sm:$0xf]
      %v555 = vld [vmem:[%s534 + $0x68] sm:$0xf]
      %v556 = vld [vmem:[%s534 + $0x70] sm:$0x8]
      %v557 = vld [vmem:[%s534 + $0x74] sm:$0xf]
      %v558 = vld [vmem:[%s534 + $0x78] sm:$0xf]
      %v559 = vld [vmem:[%s534 + $0x80] sm:$0x8]
      %v560 = vld [vmem:[%s534 + $0x84] sm:$0xf]
      %v561 = vld [vmem:[%s534 + $0x88] sm:$0xf]
      %v562 = vld [vmem:[%s534 + $0x90] sm:$0x8]
      %v563 = vld [vmem:[%s534 + $0x94] sm:$0xf]
      %v564 = vld [vmem:[%s534 + $0x98] sm:$0xf]
      %v565 = vld [vmem:[%s534 + $0xa0] sm:$0x8]
      %v566 = vld [vmem:[%s534 + $0xa4] sm:$0xf]
      %v567 = vld [vmem:[%s534 + $0xa8] sm:$0xf]
      %v568 = vld [vmem:[%s534 + $0xb0] sm:$0x8]
      %v569 = vld [vmem:[%s534 + $0xb4] sm:$0xf]
      %v570 = vld [vmem:[%s534 + $0xb8] sm:$0xf]
      %v571 = vld [vmem:[%s534 + $0xc0] sm:$0x8]
      %v572 = vld [vmem:[%s534 + $0xc4] sm:$0xf]
      %v573 = vld [vmem:[%s534 + $0xc8] sm:$0xf]
      %v574 = vld [vmem:[%s534 + $0xd0] sm:$0x8]
      %v575 = vld [vmem:[%s534 + $0xd4] sm:$0xf]
      %v576 = vld [vmem:[%s534 + $0xd8] sm:$0xf]
      %v577 = vld [vmem:[%s534 + $0xe0] sm:$0x8]
      %v578 = vld [vmem:[%s534 + $0xe4] sm:$0xf]
      %v579 = vld [vmem:[%s534 + $0xe8] sm:$0xf]
      %v580 = vld [vmem:[%s534 + $0xf0] sm:$0x8]
      %v581 = vld [vmem:[%s534 + $0xf4] sm:$0xf]
      %v582 = vld [vmem:[%s534 + $0xf8] sm:$0xf]
      %v583 = vld [vmem:[%s534 + $0x100] sm:$0x8]
      %v584 = vld [vmem:[%s534 + $0x104] sm:$0xf]
      %v585 = vld [vmem:[%s534 + $0x108] sm:$0xf]
      %v586 = vld [vmem:[%s534 + $0x110] sm:$0x8]
      %v587 = vld [vmem:[%s534 + $0x114] sm:$0xf]
      %v588 = vld [vmem:[%s534 + $0x118] sm:$0xf]
      %v589 = vld [vmem:[%s534 + $0xc] sm:$0x1]
      %v590 = vld [vmem:[%s534 + $0x1c] sm:$0x1]
      %v591 = vld [vmem:[%s534 + $0x2c] sm:$0x1]
      %v592 = vld [vmem:[%s534 + $0x3c] sm:$0x1]
      %v593 = vld [vmem:[%s534 + $0x4c] sm:$0x1]
      %v594 = vld [vmem:[%s534 + $0x5c] sm:$0x1]
      %v595 = vld [vmem:[%s534 + $0x6c] sm:$0x1]
      %v596 = vld [vmem:[%s534 + $0x7c] sm:$0x1]
      %v597 = vld [vmem:[%s534 + $0x8c] sm:$0x1]
      %v598 = vld [vmem:[%s534 + $0x9c] sm:$0x1]
      %v599 = vld [vmem:[%s534 + $0xac] sm:$0x1]
      %v600 = vld [vmem:[%s534 + $0xbc] sm:$0x1]
      %v601 = vld [vmem:[%s534 + $0xcc] sm:$0x1]
      %v602 = vld [vmem:[%s534 + $0xdc] sm:$0x1]
      %v603 = vld [vmem:[%s534 + $0xec] sm:$0x1]
      %v604 = vld [vmem:[%s534 + $0xfc] sm:$0x1]
      %v605 = vld [vmem:[%s534 + $0x10c] sm:$0x1]
      %v606 = vld [vmem:[%s534 + $0x11c] sm:$0x1]
      %s607 = scalar_lea.vmem [#allocation2], 32
      %v608 = vld [vmem:[%s607] sm:$0x8]
      %v609 = vld [vmem:[%s607 + $0x4] sm:$0xf]
      %v610 = vld [vmem:[%s607 + $0x8] sm:$0xf]
      %v611 = vld [vmem:[%s607 + $0x10] sm:$0x8]
      %v612 = vld [vmem:[%s607 + $0x14] sm:$0xf]
      %v613 = vld [vmem:[%s607 + $0x18] sm:$0xf]
      %v614 = vld [vmem:[%s607 + $0x20] sm:$0x8]
      %v615 = vld [vmem:[%s607 + $0x24] sm:$0xf]
      %v616 = vld [vmem:[%s607 + $0x28] sm:$0xf]
      %v617 = vld [vmem:[%s607 + $0x30] sm:$0x8]
      %v618 = vld [vmem:[%s607 + $0x34] sm:$0xf]
      %v619 = vld [vmem:[%s607 + $0x38] sm:$0xf]
      %v620 = vld [vmem:[%s607 + $0x40] sm:$0x8]
      %v621 = vld [vmem:[%s607 + $0x44] sm:$0xf]
      %v622 = vld [vmem:[%s607 + $0x48] sm:$0xf]
      %v623 = vld [vmem:[%s607 + $0x50] sm:$0x8]
      %v624 = vld [vmem:[%s607 + $0x54] sm:$0xf]
      %v625 = vld [vmem:[%s607 + $0x58] sm:$0xf]
      %v626 = vld [vmem:[%s607 + $0x60] sm:$0x8]
      %v627 = vld [vmem:[%s607 + $0x64] sm:$0xf]
      %v628 = vld [vmem:[%s607 + $0x68] sm:$0xf]
      %v629 = vld [vmem:[%s607 + $0x70] sm:$0x8]
      %v630 = vld [vmem:[%s607 + $0x74] sm:$0xf]
      %v631 = vld [vmem:[%s607 + $0x78] sm:$0xf]
      %v632 = vld [vmem:[%s607 + $0x80] sm:$0x8]
      %v633 = vld [vmem:[%s607 + $0x84] sm:$0xf]
      %v634 = vld [vmem:[%s607 + $0x88] sm:$0xf]
      %v635 = vld [vmem:[%s607 + $0x90] sm:$0x8]
      %v636 = vld [vmem:[%s607 + $0x94] sm:$0xf]
      %v637 = vld [vmem:[%s607 + $0x98] sm:$0xf]
      %v638 = vld [vmem:[%s607 + $0xa0] sm:$0x8]
      %v639 = vld [vmem:[%s607 + $0xa4] sm:$0xf]
      %v640 = vld [vmem:[%s607 + $0xa8] sm:$0xf]
      %v641 = vld [vmem:[%s607 + $0xb0] sm:$0x8]
      %v642 = vld [vmem:[%s607 + $0xb4] sm:$0xf]
      %v643 = vld [vmem:[%s607 + $0xb8] sm:$0xf]
      %v644 = vld [vmem:[%s607 + $0xc0] sm:$0x8]
      %v645 = vld [vmem:[%s607 + $0xc4] sm:$0xf]
      %v646 = vld [vmem:[%s607 + $0xc8] sm:$0xf]
      %v647 = vld [vmem:[%s607 + $0xd0] sm:$0x8]
      %v648 = vld [vmem:[%s607 + $0xd4] sm:$0xf]
      %v649 = vld [vmem:[%s607 + $0xd8] sm:$0xf]
      %v650 = vld [vmem:[%s607 + $0xe0] sm:$0x8]
      %v651 = vld [vmem:[%s607 + $0xe4] sm:$0xf]
      %v652 = vld [vmem:[%s607 + $0xe8] sm:$0xf]
      %v653 = vld [vmem:[%s607 + $0xf0] sm:$0x8]
      %v654 = vld [vmem:[%s607 + $0xf4] sm:$0xf]
      %v655 = vld [vmem:[%s607 + $0xf8] sm:$0xf]
      %v656 = vld [vmem:[%s607 + $0x100] sm:$0x8]
      %v657 = vld [vmem:[%s607 + $0x104] sm:$0xf]
      %v658 = vld [vmem:[%s607 + $0x108] sm:$0xf]
      %v659 = vld [vmem:[%s607 + $0x110] sm:$0x8]
      %v660 = vld [vmem:[%s607 + $0x114] sm:$0xf]
      %v661 = vld [vmem:[%s607 + $0x118] sm:$0xf]
      %v662 = vld [vmem:[%s607 + $0xc] sm:$0x1]
      %v663 = vld [vmem:[%s607 + $0x1c] sm:$0x1]
      %v664 = vld [vmem:[%s607 + $0x2c] sm:$0x1]
      %v665 = vld [vmem:[%s607 + $0x3c] sm:$0x1]
      %v666 = vld [vmem:[%s607 + $0x4c] sm:$0x1]
      %v667 = vld [vmem:[%s607 + $0x5c] sm:$0x1]
      %v668 = vld [vmem:[%s607 + $0x6c] sm:$0x1]
      %v669 = vld [vmem:[%s607 + $0x7c] sm:$0x1]
      %v670 = vld [vmem:[%s607 + $0x8c] sm:$0x1]
      %v671 = vld [vmem:[%s607 + $0x9c] sm:$0x1]
      %v672 = vld [vmem:[%s607 + $0xac] sm:$0x1]
      %v673 = vld [vmem:[%s607 + $0xbc] sm:$0x1]
      %v674 = vld [vmem:[%s607 + $0xcc] sm:$0x1]
      %v675 = vld [vmem:[%s607 + $0xdc] sm:$0x1]
      %v676 = vld [vmem:[%s607 + $0xec] sm:$0x1]
      %v677 = vld [vmem:[%s607 + $0xfc] sm:$0x1]
      %v678 = vld [vmem:[%s607 + $0x10c] sm:$0x1]
      %v679 = vld [vmem:[%s607 + $0x11c] sm:$0x1]
      %v734 = vunpack.c.l.b16 %v462
      %v735 = vunpack.c.l.b16 %v463
      %v736 = vunpack.c.l.b16 %v464
      %v737 = vunpack.c.l.b16 %v465
      %v738 = vunpack.c.l.b16 %v466
      %v739 = vunpack.c.l.b16 %v467
      %v740 = vunpack.c.l.b16 %v468
      %v741 = vunpack.c.l.b16 %v469
      %v742 = vunpack.c.l.b16 %v470
      %v743 = vunpack.c.l.b16 %v471
      %v744 = vunpack.c.l.b16 %v472
      %v745 = vunpack.c.l.b16 %v473
      %v746 = vunpack.c.l.b16 %v474
      %v747 = vunpack.c.l.b16 %v475
      %v748 = vunpack.c.l.b16 %v476
      %v749 = vunpack.c.l.b16 %v477
      %v750 = vunpack.c.l.b16 %v478
      %v751 = vunpack.c.l.b16 %v479
      %v752 = vunpack.c.l.b16 %v480
      %v753 = vunpack.c.l.b16 %v481
      %v754 = vunpack.c.l.b16 %v482
      %v755 = vunpack.c.l.b16 %v483
      %v756 = vunpack.c.l.b16 %v484
      %v757 = vunpack.c.l.b16 %v485
      %v758 = vunpack.c.l.b16 %v486
      %v759 = vunpack.c.l.b16 %v487
      %v760 = vunpack.c.l.b16 %v488
      %v761 = vunpack.c.l.b16 %v489
      %v762 = vunpack.c.l.b16 %v490
      %v763 = vunpack.c.l.b16 %v491
      %v764 = vunpack.c.l.b16 %v492
      %v765 = vunpack.c.l.b16 %v493
      %v766 = vunpack.c.l.b16 %v494
      %v767 = vunpack.c.l.b16 %v495
      %v768 = vunpack.c.l.b16 %v496
      %v769 = vunpack.c.l.b16 %v497
      %v770 = vunpack.c.l.b16 %v498
      %v771 = vunpack.c.l.b16 %v499
      %v772 = vunpack.c.l.b16 %v500
      %v773 = vunpack.c.l.b16 %v501
      %v774 = vunpack.c.l.b16 %v502
      %v775 = vunpack.c.l.b16 %v503
      %v776 = vunpack.c.l.b16 %v504
      %v777 = vunpack.c.l.b16 %v505
      %v778 = vunpack.c.l.b16 %v506
      %v779 = vunpack.c.l.b16 %v507
      %v780 = vunpack.c.l.b16 %v508
      %v781 = vunpack.c.l.b16 %v509
      %v782 = vunpack.c.l.b16 %v510
      %v783 = vunpack.c.l.b16 %v511
      %v784 = vunpack.c.l.b16 %v512
      %v785 = vunpack.c.l.b16 %v513
      %v786 = vunpack.c.l.b16 %v514
      %v787 = vunpack.c.l.b16 %v515
      %v788 = vpack.c.b16 %v735, %v734
      %v789 = vpack.c.b16 %v736, %v736
      %v790 = vpack.c.b16 %v738, %v737
      %v791 = vpack.c.b16 %v739, %v739
      %v792 = vpack.c.b16 %v741, %v740
      %v793 = vpack.c.b16 %v742, %v742
      %v794 = vpack.c.b16 %v744, %v743
      %v795 = vpack.c.b16 %v745, %v745
      %v796 = vpack.c.b16 %v747, %v746
      %v797 = vpack.c.b16 %v748, %v748
      %v798 = vpack.c.b16 %v750, %v749
      %v799 = vpack.c.b16 %v751, %v751
      %v800 = vpack.c.b16 %v753, %v752
      %v801 = vpack.c.b16 %v754, %v754
      %v802 = vpack.c.b16 %v756, %v755
      %v803 = vpack.c.b16 %v757, %v757
      %v804 = vpack.c.b16 %v759, %v758
      %v805 = vpack.c.b16 %v760, %v760
      %v806 = vpack.c.b16 %v762, %v761
      %v807 = vpack.c.b16 %v763, %v763
      %v808 = vpack.c.b16 %v765, %v764
      %v809 = vpack.c.b16 %v766, %v766
      %v810 = vpack.c.b16 %v768, %v767
      %v811 = vpack.c.b16 %v769, %v769
      %v812 = vpack.c.b16 %v771, %v770
      %v813 = vpack.c.b16 %v772, %v772
      %v814 = vpack.c.b16 %v774, %v773
      %v815 = vpack.c.b16 %v775, %v775
      %v816 = vpack.c.b16 %v777, %v776
      %v817 = vpack.c.b16 %v778, %v778
      %v818 = vpack.c.b16 %v780, %v779
      %v819 = vpack.c.b16 %v781, %v781
      %v820 = vpack.c.b16 %v783, %v782
      %v821 = vpack.c.b16 %v784, %v784
      %v822 = vpack.c.b16 %v786, %v785
      %v823 = vpack.c.b16 %v787, %v787
      %v824 = vpack.c.b16 %v736, %v735
      %v825 = vpack.c.b16 %v739, %v738
      %v826 = vpack.c.b16 %v742, %v741
      %v827 = vpack.c.b16 %v745, %v744
      %v828 = vpack.c.b16 %v748, %v747
      %v829 = vpack.c.b16 %v751, %v750
      %v830 = vpack.c.b16 %v754, %v753
      %v831 = vpack.c.b16 %v757, %v756
      %v832 = vpack.c.b16 %v760, %v759
      %v833 = vpack.c.b16 %v763, %v762
      %v834 = vpack.c.b16 %v766, %v765
      %v835 = vpack.c.b16 %v769, %v768
      %v836 = vpack.c.b16 %v772, %v771
      %v837 = vpack.c.b16 %v775, %v774
      %v838 = vpack.c.b16 %v778, %v777
      %v839 = vpack.c.b16 %v781, %v780
      %v840 = vpack.c.b16 %v784, %v783
      %v841 = vpack.c.b16 %v787, %v786
      %v843 = vshrl.u32 %v824, 16
      %v845 = vrot.slane %v843, 4
      %v846 = vshll.u32 %v824, 16
      %v848 = vrot.slane %v846, 5
      %v849 = vor.u32 %v845, %v848
      %v851 = vshrl.u32 %v825, 16
      %v853 = vrot.slane %v851, 4
      %v854 = vshll.u32 %v825, 16
      %v856 = vrot.slane %v854, 5
      %v857 = vor.u32 %v853, %v856
      %v859 = vshrl.u32 %v826, 16
      %v861 = vrot.slane %v859, 4
      %v862 = vshll.u32 %v826, 16
      %v864 = vrot.slane %v862, 5
      %v865 = vor.u32 %v861, %v864
      %v867 = vshrl.u32 %v827, 16
      %v869 = vrot.slane %v867, 4
      %v870 = vshll.u32 %v827, 16
      %v872 = vrot.slane %v870, 5
      %v873 = vor.u32 %v869, %v872
      %v875 = vshrl.u32 %v828, 16
      %v877 = vrot.slane %v875, 4
      %v878 = vshll.u32 %v828, 16
      %v880 = vrot.slane %v878, 5
      %v881 = vor.u32 %v877, %v880
      %v883 = vshrl.u32 %v829, 16
      %v885 = vrot.slane %v883, 4
      %v886 = vshll.u32 %v829, 16
      %v888 = vrot.slane %v886, 5
      %v889 = vor.u32 %v885, %v888
      %v891 = vshrl.u32 %v830, 16
      %v893 = vrot.slane %v891, 4
      %v894 = vshll.u32 %v830, 16
      %v896 = vrot.slane %v894, 5
      %v897 = vor.u32 %v893, %v896
      %v899 = vshrl.u32 %v831, 16
      %v901 = vrot.slane %v899, 4
      %v902 = vshll.u32 %v831, 16
      %v904 = vrot.slane %v902, 5
      %v905 = vor.u32 %v901, %v904
      %v907 = vshrl.u32 %v832, 16
      %v909 = vrot.slane %v907, 4
      %v910 = vshll.u32 %v832, 16
      %v912 = vrot.slane %v910, 5
      %v913 = vor.u32 %v909, %v912
      %v915 = vshrl.u32 %v833, 16
      %v917 = vrot.slane %v915, 4
      %v918 = vshll.u32 %v833, 16
      %v920 = vrot.slane %v918, 5
      %v921 = vor.u32 %v917, %v920
      %v923 = vshrl.u32 %v834, 16
      %v925 = vrot.slane %v923, 4
      %v926 = vshll.u32 %v834, 16
      %v928 = vrot.slane %v926, 5
      %v929 = vor.u32 %v925, %v928
      %v931 = vshrl.u32 %v835, 16
      %v933 = vrot.slane %v931, 4
      %v934 = vshll.u32 %v835, 16
      %v936 = vrot.slane %v934, 5
      %v937 = vor.u32 %v933, %v936
      %v939 = vshrl.u32 %v836, 16
      %v941 = vrot.slane %v939, 4
      %v942 = vshll.u32 %v836, 16
      %v944 = vrot.slane %v942, 5
      %v945 = vor.u32 %v941, %v944
      %v947 = vshrl.u32 %v837, 16
      %v949 = vrot.slane %v947, 4
      %v950 = vshll.u32 %v837, 16
      %v952 = vrot.slane %v950, 5
      %v953 = vor.u32 %v949, %v952
      %v955 = vshrl.u32 %v838, 16
      %v957 = vrot.slane %v955, 4
      %v958 = vshll.u32 %v838, 16
      %v960 = vrot.slane %v958, 5
      %v961 = vor.u32 %v957, %v960
      %v963 = vshrl.u32 %v839, 16
      %v965 = vrot.slane %v963, 4
      %v966 = vshll.u32 %v839, 16
      %v968 = vrot.slane %v966, 5
      %v969 = vor.u32 %v965, %v968
      %v971 = vshrl.u32 %v840, 16
      %v973 = vrot.slane %v971, 4
      %v974 = vshll.u32 %v840, 16
      %v976 = vrot.slane %v974, 5
      %v977 = vor.u32 %v973, %v976
      %v979 = vshrl.u32 %v841, 16
      %v981 = vrot.slane %v979, 4
      %v982 = vshll.u32 %v841, 16
      %v984 = vrot.slane %v982, 5
      %v985 = vor.u32 %v981, %v984
      %986 = vrot.lane.b32.xlu0 %v849, 8
      %v987 = vpop.permute.xlu0 %986
      %988 = vrot.lane.b32.xlu0 %v857, 8
      %v989 = vpop.permute.xlu0 %988
      %990 = vrot.lane.b32.xlu0 %v865, 8
      %v991 = vpop.permute.xlu0 %990
      %992 = vrot.lane.b32.xlu0 %v873, 8
      %v993 = vpop.permute.xlu0 %992
      %994 = vrot.lane.b32.xlu0 %v881, 8
      %v995 = vpop.permute.xlu0 %994
      %996 = vrot.lane.b32.xlu0 %v889, 8
      %v997 = vpop.permute.xlu0 %996
      %998 = vrot.lane.b32.xlu0 %v897, 8
      %v999 = vpop.permute.xlu0 %998
      %1000 = vrot.lane.b32.xlu0 %v905, 8
      %v1001 = vpop.permute.xlu0 %1000
      %1002 = vrot.lane.b32.xlu0 %v913, 8
      %v1003 = vpop.permute.xlu0 %1002
      %1004 = vrot.lane.b32.xlu0 %v921, 8
      %v1005 = vpop.permute.xlu0 %1004
      %1006 = vrot.lane.b32.xlu0 %v929, 8
      %v1007 = vpop.permute.xlu0 %1006
      %1008 = vrot.lane.b32.xlu0 %v937, 8
      %v1009 = vpop.permute.xlu0 %1008
      %1010 = vrot.lane.b32.xlu0 %v945, 8
      %v1011 = vpop.permute.xlu0 %1010
      %1012 = vrot.lane.b32.xlu0 %v953, 8
      %v1013 = vpop.permute.xlu0 %1012
      %1014 = vrot.lane.b32.xlu0 %v961, 8
      %v1015 = vpop.permute.xlu0 %1014
      %1016 = vrot.lane.b32.xlu0 %v969, 8
      %v1017 = vpop.permute.xlu0 %1016
      %1018 = vrot.lane.b32.xlu0 %v977, 8
      %v1019 = vpop.permute.xlu0 %1018
      %1020 = vrot.lane.b32.xlu0 %v985, 8
      %v1021 = vpop.permute.xlu0 %1020
      %v1040 = vunpack.c.l.b16 %v516
      %v1041 = vunpack.c.l.b16 %v517
      %v1042 = vunpack.c.l.b16 %v518
      %v1043 = vunpack.c.l.b16 %v519
      %v1044 = vunpack.c.l.b16 %v520
      %v1045 = vunpack.c.l.b16 %v521
      %v1046 = vunpack.c.l.b16 %v522
      %v1047 = vunpack.c.l.b16 %v523
      %v1048 = vunpack.c.l.b16 %v524
      %v1049 = vunpack.c.l.b16 %v525
      %v1050 = vunpack.c.l.b16 %v526
      %v1051 = vunpack.c.l.b16 %v527
      %v1052 = vunpack.c.l.b16 %v528
      %v1053 = vunpack.c.l.b16 %v529
      %v1054 = vunpack.c.l.b16 %v530
      %v1055 = vunpack.c.l.b16 %v531
      %v1056 = vunpack.c.l.b16 %v532
      %v1057 = vunpack.c.l.b16 %v533
      %v1058 = vpack.c.b16 %v1040, %v1040
      %v1059 = vpack.c.b16 %v1041, %v1041
      %v1060 = vpack.c.b16 %v1042, %v1042
      %v1061 = vpack.c.b16 %v1043, %v1043
      %v1062 = vpack.c.b16 %v1044, %v1044
      %v1063 = vpack.c.b16 %v1045, %v1045
      %v1064 = vpack.c.b16 %v1046, %v1046
      %v1065 = vpack.c.b16 %v1047, %v1047
      %v1066 = vpack.c.b16 %v1048, %v1048
      %v1067 = vpack.c.b16 %v1049, %v1049
      %v1068 = vpack.c.b16 %v1050, %v1050
      %v1069 = vpack.c.b16 %v1051, %v1051
      %v1070 = vpack.c.b16 %v1052, %v1052
      %v1071 = vpack.c.b16 %v1053, %v1053
      %v1072 = vpack.c.b16 %v1054, %v1054
      %v1073 = vpack.c.b16 %v1055, %v1055
      %v1074 = vpack.c.b16 %v1056, %v1056
      %v1075 = vpack.c.b16 %v1057, %v1057
      %vm1076 = vcmask 1042432
      %v1077 = vrot.slane %v824, 5
      %v1078 = vrot.slane %v1058, 5
      %v1079 = vsel %vm1076, %v1077, %v1078
      %v1080 = vrot.slane %v825, 5
      %v1081 = vrot.slane %v1059, 5
      %v1082 = vsel %vm1076, %v1080, %v1081
      %v1083 = vrot.slane %v826, 5
      %v1084 = vrot.slane %v1060, 5
      %v1085 = vsel %vm1076, %v1083, %v1084
      %v1086 = vrot.slane %v827, 5
      %v1087 = vrot.slane %v1061, 5
      %v1088 = vsel %vm1076, %v1086, %v1087
      %v1089 = vrot.slane %v828, 5
      %v1090 = vrot.slane %v1062, 5
      %v1091 = vsel %vm1076, %v1089, %v1090
      %v1092 = vrot.slane %v829, 5
      %v1093 = vrot.slane %v1063, 5
      %v1094 = vsel %vm1076, %v1092, %v1093
      %v1095 = vrot.slane %v830, 5
      %v1096 = vrot.slane %v1064, 5
      %v1097 = vsel %vm1076, %v1095, %v1096
      %v1098 = vrot.slane %v831, 5
      %v1099 = vrot.slane %v1065, 5
      %v1100 = vsel %vm1076, %v1098, %v1099
      %v1101 = vrot.slane %v832, 5
      %v1102 = vrot.slane %v1066, 5
      %v1103 = vsel %vm1076, %v1101, %v1102
      %v1104 = vrot.slane %v833, 5
      %v1105 = vrot.slane %v1067, 5
      %v1106 = vsel %vm1076, %v1104, %v1105
      %v1107 = vrot.slane %v834, 5
      %v1108 = vrot.slane %v1068, 5
      %v1109 = vsel %vm1076, %v1107, %v1108
      %v1110 = vrot.slane %v835, 5
      %v1111 = vrot.slane %v1069, 5
      %v1112 = vsel %vm1076, %v1110, %v1111
      %v1113 = vrot.slane %v836, 5
      %v1114 = vrot.slane %v1070, 5
      %v1115 = vsel %vm1076, %v1113, %v1114
      %v1116 = vrot.slane %v837, 5
      %v1117 = vrot.slane %v1071, 5
      %v1118 = vsel %vm1076, %v1116, %v1117
      %v1119 = vrot.slane %v838, 5
      %v1120 = vrot.slane %v1072, 5
      %v1121 = vsel %vm1076, %v1119, %v1120
      %v1122 = vrot.slane %v839, 5
      %v1123 = vrot.slane %v1073, 5
      %v1124 = vsel %vm1076, %v1122, %v1123
      %v1125 = vrot.slane %v840, 5
      %v1126 = vrot.slane %v1074, 5
      %v1127 = vsel %vm1076, %v1125, %v1126
      %v1128 = vrot.slane %v841, 5
      %v1129 = vrot.slane %v1075, 5
      %v1130 = vsel %vm1076, %v1128, %v1129
      %1131 = vrot.lane.b32.xlu0 %v1077, 16
      %v1132 = vpop.permute.xlu0 %1131
      %1133 = vrot.lane.b32.xlu0 %v1079, 16
      %v1134 = vpop.permute.xlu0 %1133
      %1135 = vrot.lane.b32.xlu0 %v1080, 16
      %v1136 = vpop.permute.xlu0 %1135
      %1137 = vrot.lane.b32.xlu0 %v1082, 16
      %v1138 = vpop.permute.xlu0 %1137
      %1139 = vrot.lane.b32.xlu0 %v1083, 16
      %v1140 = vpop.permute.xlu0 %1139
      %1141 = vrot.lane.b32.xlu0 %v1085, 16
      %v1142 = vpop.permute.xlu0 %1141
      %1143 = vrot.lane.b32.xlu0 %v1086, 16
      %v1144 = vpop.permute.xlu0 %1143
      %1145 = vrot.lane.b32.xlu0 %v1088, 16
      %v1146 = vpop.permute.xlu0 %1145
      %1147 = vrot.lane.b32.xlu0 %v1089, 16
      %v1148 = vpop.permute.xlu0 %1147
      %1149 = vrot.lane.b32.xlu0 %v1091, 16
      %v1150 = vpop.permute.xlu0 %1149
      %1151 = vrot.lane.b32.xlu0 %v1092, 16
      %v1152 = vpop.permute.xlu0 %1151
      %1153 = vrot.lane.b32.xlu0 %v1094, 16
      %v1154 = vpop.permute.xlu0 %1153
      %1155 = vrot.lane.b32.xlu0 %v1095, 16
      %v1156 = vpop.permute.xlu0 %1155
      %1157 = vrot.lane.b32.xlu0 %v1097, 16
      %v1158 = vpop.permute.xlu0 %1157
      %1159 = vrot.lane.b32.xlu0 %v1098, 16
      %v1160 = vpop.permute.xlu0 %1159
      %1161 = vrot.lane.b32.xlu0 %v1100, 16
      %v1162 = vpop.permute.xlu0 %1161
      %1163 = vrot.lane.b32.xlu0 %v1101, 16
      %v1164 = vpop.permute.xlu0 %1163
      %1165 = vrot.lane.b32.xlu0 %v1103, 16
      %v1166 = vpop.permute.xlu0 %1165
      %1167 = vrot.lane.b32.xlu0 %v1104, 16
      %v1168 = vpop.permute.xlu0 %1167
      %1169 = vrot.lane.b32.xlu0 %v1106, 16
      %v1170 = vpop.permute.xlu0 %1169
      %1171 = vrot.lane.b32.xlu0 %v1107, 16
      %v1172 = vpop.permute.xlu0 %1171
      %1173 = vrot.lane.b32.xlu0 %v1109, 16
      %v1174 = vpop.permute.xlu0 %1173
      %1175 = vrot.lane.b32.xlu0 %v1110, 16
      %v1176 = vpop.permute.xlu0 %1175
      %1177 = vrot.lane.b32.xlu0 %v1112, 16
      %v1178 = vpop.permute.xlu0 %1177
      %1179 = vrot.lane.b32.xlu0 %v1113, 16
      %v1180 = vpop.permute.xlu0 %1179
      %1181 = vrot.lane.b32.xlu0 %v1115, 16
      %v1182 = vpop.permute.xlu0 %1181
      %1183 = vrot.lane.b32.xlu0 %v1116, 16
      %v1184 = vpop.permute.xlu0 %1183
      %1185 = vrot.lane.b32.xlu0 %v1118, 16
      %v1186 = vpop.permute.xlu0 %1185
      %1187 = vrot.lane.b32.xlu0 %v1119, 16
      %v1188 = vpop.permute.xlu0 %1187
      %1189 = vrot.lane.b32.xlu0 %v1121, 16
      %v1190 = vpop.permute.xlu0 %1189
      %1191 = vrot.lane.b32.xlu0 %v1122, 16
      %v1192 = vpop.permute.xlu0 %1191
      %1193 = vrot.lane.b32.xlu0 %v1124, 16
      %v1194 = vpop.permute.xlu0 %1193
      %1195 = vrot.lane.b32.xlu0 %v1125, 16
      %v1196 = vpop.permute.xlu0 %1195
      %1197 = vrot.lane.b32.xlu0 %v1127, 16
      %v1198 = vpop.permute.xlu0 %1197
      %1199 = vrot.lane.b32.xlu0 %v1128, 16
      %v1200 = vpop.permute.xlu0 %1199
      %1201 = vrot.lane.b32.xlu0 %v1130, 16
      %v1202 = vpop.permute.xlu0 %1201
      %v1257 = vunpack.c.l.b16 %v535
      %v1258 = vunpack.c.l.b16 %v536
      %v1259 = vunpack.c.l.b16 %v537
      %v1260 = vunpack.c.l.b16 %v538
      %v1261 = vunpack.c.l.b16 %v539
      %v1262 = vunpack.c.l.b16 %v540
      %v1263 = vunpack.c.l.b16 %v541
      %v1264 = vunpack.c.l.b16 %v542
      %v1265 = vunpack.c.l.b16 %v543
      %v1266 = vunpack.c.l.b16 %v544
      %v1267 = vunpack.c.l.b16 %v545
      %v1268 = vunpack.c.l.b16 %v546
      %v1269 = vunpack.c.l.b16 %v547
      %v1270 = vunpack.c.l.b16 %v548
      %v1271 = vunpack.c.l.b16 %v549
      %v1272 = vunpack.c.l.b16 %v550
      %v1273 = vunpack.c.l.b16 %v551
      %v1274 = vunpack.c.l.b16 %v552
      %v1275 = vunpack.c.l.b16 %v553
      %v1276 = vunpack.c.l.b16 %v554
      %v1277 = vunpack.c.l.b16 %v555
      %v1278 = vunpack.c.l.b16 %v556
      %v1279 = vunpack.c.l.b16 %v557
      %v1280 = vunpack.c.l.b16 %v558
      %v1281 = vunpack.c.l.b16 %v559
      %v1282 = vunpack.c.l.b16 %v560
      %v1283 = vunpack.c.l.b16 %v561
      %v1284 = vunpack.c.l.b16 %v562
      %v1285 = vunpack.c.l.b16 %v563
      %v1286 = vunpack.c.l.b16 %v564
      %v1287 = vunpack.c.l.b16 %v565
      %v1288 = vunpack.c.l.b16 %v566
      %v1289 = vunpack.c.l.b16 %v567
      %v1290 = vunpack.c.l.b16 %v568
      %v1291 = vunpack.c.l.b16 %v569
      %v1292 = vunpack.c.l.b16 %v570
      %v1293 = vunpack.c.l.b16 %v571
      %v1294 = vunpack.c.l.b16 %v572
      %v1295 = vunpack.c.l.b16 %v573
      %v1296 = vunpack.c.l.b16 %v574
      %v1297 = vunpack.c.l.b16 %v575
      %v1298 = vunpack.c.l.b16 %v576
      %v1299 = vunpack.c.l.b16 %v577
      %v1300 = vunpack.c.l.b16 %v578
      %v1301 = vunpack.c.l.b16 %v579
      %v1302 = vunpack.c.l.b16 %v580
      %v1303 = vunpack.c.l.b16 %v581
      %v1304 = vunpack.c.l.b16 %v582
      %v1305 = vunpack.c.l.b16 %v583
      %v1306 = vunpack.c.l.b16 %v584
      %v1307 = vunpack.c.l.b16 %v585
      %v1308 = vunpack.c.l.b16 %v586
      %v1309 = vunpack.c.l.b16 %v587
      %v1310 = vunpack.c.l.b16 %v588
      %v1311 = vpack.c.b16 %v1258, %v1257
      %v1312 = vpack.c.b16 %v1259, %v1259
      %v1313 = vpack.c.b16 %v1261, %v1260
      %v1314 = vpack.c.b16 %v1262, %v1262
      %v1315 = vpack.c.b16 %v1264, %v1263
      %v1316 = vpack.c.b16 %v1265, %v1265
      %v1317 = vpack.c.b16 %v1267, %v1266
      %v1318 = vpack.c.b16 %v1268, %v1268
      %v1319 = vpack.c.b16 %v1270, %v1269
      %v1320 = vpack.c.b16 %v1271, %v1271
      %v1321 = vpack.c.b16 %v1273, %v1272
      %v1322 = vpack.c.b16 %v1274, %v1274
      %v1323 = vpack.c.b16 %v1276, %v1275
      %v1324 = vpack.c.b16 %v1277, %v1277
      %v1325 = vpack.c.b16 %v1279, %v1278
      %v1326 = vpack.c.b16 %v1280, %v1280
      %v1327 = vpack.c.b16 %v1282, %v1281
      %v1328 = vpack.c.b16 %v1283, %v1283
      %v1329 = vpack.c.b16 %v1285, %v1284
      %v1330 = vpack.c.b16 %v1286, %v1286
      %v1331 = vpack.c.b16 %v1288, %v1287
      %v1332 = vpack.c.b16 %v1289, %v1289
      %v1333 = vpack.c.b16 %v1291, %v1290
      %v1334 = vpack.c.b16 %v1292, %v1292
      %v1335 = vpack.c.b16 %v1294, %v1293
      %v1336 = vpack.c.b16 %v1295, %v1295
      %v1337 = vpack.c.b16 %v1297, %v1296
      %v1338 = vpack.c.b16 %v1298, %v1298
      %v1339 = vpack.c.b16 %v1300, %v1299
      %v1340 = vpack.c.b16 %v1301, %v1301
      %v1341 = vpack.c.b16 %v1303, %v1302
      %v1342 = vpack.c.b16 %v1304, %v1304
      %v1343 = vpack.c.b16 %v1306, %v1305
      %v1344 = vpack.c.b16 %v1307, %v1307
      %v1345 = vpack.c.b16 %v1309, %v1308
      %v1346 = vpack.c.b16 %v1310, %v1310
      %1347 = vrot.lane.b32.xlu0 %v1311, 24
      %v1348 = vpop.permute.xlu0 %1347
      %1349 = vrot.lane.b32.xlu0 %v1312, 24
      %v1350 = vpop.permute.xlu0 %1349
      %1351 = vrot.lane.b32.xlu0 %v1313, 24
      %v1352 = vpop.permute.xlu0 %1351
      %1353 = vrot.lane.b32.xlu0 %v1314, 24
      %v1354 = vpop.permute.xlu0 %1353
      %1355 = vrot.lane.b32.xlu0 %v1315, 24
      %v1356 = vpop.permute.xlu0 %1355
      %1357 = vrot.lane.b32.xlu0 %v1316, 24
      %v1358 = vpop.permute.xlu0 %1357
      %1359 = vrot.lane.b32.xlu0 %v1317, 24
      %v1360 = vpop.permute.xlu0 %1359
      %1361 = vrot.lane.b32.xlu0 %v1318, 24
      %v1362 = vpop.permute.xlu0 %1361
      %1363 = vrot.lane.b32.xlu0 %v1319, 24
      %v1364 = vpop.permute.xlu0 %1363
      %1365 = vrot.lane.b32.xlu0 %v1320, 24
      %v1366 = vpop.permute.xlu0 %1365
      %1367 = vrot.lane.b32.xlu0 %v1321, 24
      %v1368 = vpop.permute.xlu0 %1367
      %1369 = vrot.lane.b32.xlu0 %v1322, 24
      %v1370 = vpop.permute.xlu0 %1369
      %1371 = vrot.lane.b32.xlu0 %v1323, 24
      %v1372 = vpop.permute.xlu0 %1371
      %1373 = vrot.lane.b32.xlu0 %v1324, 24
      %v1374 = vpop.permute.xlu0 %1373
      %1375 = vrot.lane.b32.xlu0 %v1325, 24
      %v1376 = vpop.permute.xlu0 %1375
      %1377 = vrot.lane.b32.xlu0 %v1326, 24
      %v1378 = vpop.permute.xlu0 %1377
      %1379 = vrot.lane.b32.xlu0 %v1327, 24
      %v1380 = vpop.permute.xlu0 %1379
      %1381 = vrot.lane.b32.xlu0 %v1328, 24
      %v1382 = vpop.permute.xlu0 %1381
      %1383 = vrot.lane.b32.xlu0 %v1329, 24
      %v1384 = vpop.permute.xlu0 %1383
      %1385 = vrot.lane.b32.xlu0 %v1330, 24
      %v1386 = vpop.permute.xlu0 %1385
      %1387 = vrot.lane.b32.xlu0 %v1331, 24
      %v1388 = vpop.permute.xlu0 %1387
      %1389 = vrot.lane.b32.xlu0 %v1332, 24
      %v1390 = vpop.permute.xlu0 %1389
      %1391 = vrot.lane.b32.xlu0 %v1333, 24
      %v1392 = vpop.permute.xlu0 %1391
      %1393 = vrot.lane.b32.xlu0 %v1334, 24
      %v1394 = vpop.permute.xlu0 %1393
      %1395 = vrot.lane.b32.xlu0 %v1335, 24
      %v1396 = vpop.permute.xlu0 %1395
      %1397 = vrot.lane.b32.xlu0 %v1336, 24
      %v1398 = vpop.permute.xlu0 %1397
      %1399 = vrot.lane.b32.xlu0 %v1337, 24
      %v1400 = vpop.permute.xlu0 %1399
      %1401 = vrot.lane.b32.xlu0 %v1338, 24
      %v1402 = vpop.permute.xlu0 %1401
      %1403 = vrot.lane.b32.xlu0 %v1339, 24
      %v1404 = vpop.permute.xlu0 %1403
      %1405 = vrot.lane.b32.xlu0 %v1340, 24
      %v1406 = vpop.permute.xlu0 %1405
      %1407 = vrot.lane.b32.xlu0 %v1341, 24
      %v1408 = vpop.permute.xlu0 %1407
      %1409 = vrot.lane.b32.xlu0 %v1342, 24
      %v1410 = vpop.permute.xlu0 %1409
      %1411 = vrot.lane.b32.xlu0 %v1343, 24
      %v1412 = vpop.permute.xlu0 %1411
      %1413 = vrot.lane.b32.xlu0 %v1344, 24
      %v1414 = vpop.permute.xlu0 %1413
      %1415 = vrot.lane.b32.xlu0 %v1345, 24
      %v1416 = vpop.permute.xlu0 %1415
      %1417 = vrot.lane.b32.xlu0 %v1346, 24
      %v1418 = vpop.permute.xlu0 %1417
      %v1419 = vpack.c.b16 %v1259, %v1258
      %v1420 = vpack.c.b16 %v1262, %v1261
      %v1421 = vpack.c.b16 %v1265, %v1264
      %v1422 = vpack.c.b16 %v1268, %v1267
      %v1423 = vpack.c.b16 %v1271, %v1270
      %v1424 = vpack.c.b16 %v1274, %v1273
      %v1425 = vpack.c.b16 %v1277, %v1276
      %v1426 = vpack.c.b16 %v1280, %v1279
      %v1427 = vpack.c.b16 %v1283, %v1282
      %v1428 = vpack.c.b16 %v1286, %v1285
      %v1429 = vpack.c.b16 %v1289, %v1288
      %v1430 = vpack.c.b16 %v1292, %v1291
      %v1431 = vpack.c.b16 %v1295, %v1294
      %v1432 = vpack.c.b16 %v1298, %v1297
      %v1433 = vpack.c.b16 %v1301, %v1300
      %v1434 = vpack.c.b16 %v1304, %v1303
      %v1435 = vpack.c.b16 %v1307, %v1306
      %v1436 = vpack.c.b16 %v1310, %v1309
      %v1438 = vshrl.u32 %v1419, 16
      %v1440 = vrot.slane %v1438, 4
      %v1441 = vshll.u32 %v1419, 16
      %v1443 = vrot.slane %v1441, 5
      %v1444 = vor.u32 %v1440, %v1443
      %v1446 = vshrl.u32 %v1420, 16
      %v1448 = vrot.slane %v1446, 4
      %v1449 = vshll.u32 %v1420, 16
      %v1451 = vrot.slane %v1449, 5
      %v1452 = vor.u32 %v1448, %v1451
      %v1454 = vshrl.u32 %v1421, 16
      %v1456 = vrot.slane %v1454, 4
      %v1457 = vshll.u32 %v1421, 16
      %v1459 = vrot.slane %v1457, 5
      %v1460 = vor.u32 %v1456, %v1459
      %v1462 = vshrl.u32 %v1422, 16
      %v1464 = vrot.slane %v1462, 4
      %v1465 = vshll.u32 %v1422, 16
      %v1467 = vrot.slane %v1465, 5
      %v1468 = vor.u32 %v1464, %v1467
      %v1470 = vshrl.u32 %v1423, 16
      %v1472 = vrot.slane %v1470, 4
      %v1473 = vshll.u32 %v1423, 16
      %v1475 = vrot.slane %v1473, 5
      %v1476 = vor.u32 %v1472, %v1475
      %v1478 = vshrl.u32 %v1424, 16
      %v1480 = vrot.slane %v1478, 4
      %v1481 = vshll.u32 %v1424, 16
      %v1483 = vrot.slane %v1481, 5
      %v1484 = vor.u32 %v1480, %v1483
      %v1486 = vshrl.u32 %v1425, 16
      %v1488 = vrot.slane %v1486, 4
      %v1489 = vshll.u32 %v1425, 16
      %v1491 = vrot.slane %v1489, 5
      %v1492 = vor.u32 %v1488, %v1491
      %v1494 = vshrl.u32 %v1426, 16
      %v1496 = vrot.slane %v1494, 4
      %v1497 = vshll.u32 %v1426, 16
      %v1499 = vrot.slane %v1497, 5
      %v1500 = vor.u32 %v1496, %v1499
      %v1502 = vshrl.u32 %v1427, 16
      %v1504 = vrot.slane %v1502, 4
      %v1505 = vshll.u32 %v1427, 16
      %v1507 = vrot.slane %v1505, 5
      %v1508 = vor.u32 %v1504, %v1507
      %v1510 = vshrl.u32 %v1428, 16
      %v1512 = vrot.slane %v1510, 4
      %v1513 = vshll.u32 %v1428, 16
      %v1515 = vrot.slane %v1513, 5
      %v1516 = vor.u32 %v1512, %v1515
      %v1518 = vshrl.u32 %v1429, 16
      %v1520 = vrot.slane %v1518, 4
      %v1521 = vshll.u32 %v1429, 16
      %v1523 = vrot.slane %v1521, 5
      %v1524 = vor.u32 %v1520, %v1523
      %v1526 = vshrl.u32 %v1430, 16
      %v1528 = vrot.slane %v1526, 4
      %v1529 = vshll.u32 %v1430, 16
      %v1531 = vrot.slane %v1529, 5
      %v1532 = vor.u32 %v1528, %v1531
      %v1534 = vshrl.u32 %v1431, 16
      %v1536 = vrot.slane %v1534, 4
      %v1537 = vshll.u32 %v1431, 16
      %v1539 = vrot.slane %v1537, 5
      %v1540 = vor.u32 %v1536, %v1539
      %v1542 = vshrl.u32 %v1432, 16
      %v1544 = vrot.slane %v1542, 4
      %v1545 = vshll.u32 %v1432, 16
      %v1547 = vrot.slane %v1545, 5
      %v1548 = vor.u32 %v1544, %v1547
      %v1550 = vshrl.u32 %v1433, 16
      %v1552 = vrot.slane %v1550, 4
      %v1553 = vshll.u32 %v1433, 16
      %v1555 = vrot.slane %v1553, 5
      %v1556 = vor.u32 %v1552, %v1555
      %v1558 = vshrl.u32 %v1434, 16
      %v1560 = vrot.slane %v1558, 4
      %v1561 = vshll.u32 %v1434, 16
      %v1563 = vrot.slane %v1561, 5
      %v1564 = vor.u32 %v1560, %v1563
      %v1566 = vshrl.u32 %v1435, 16
      %v1568 = vrot.slane %v1566, 4
      %v1569 = vshll.u32 %v1435, 16
      %v1571 = vrot.slane %v1569, 5
      %v1572 = vor.u32 %v1568, %v1571
      %v1574 = vshrl.u32 %v1436, 16
      %v1576 = vrot.slane %v1574, 4
      %v1577 = vshll.u32 %v1436, 16
      %v1579 = vrot.slane %v1577, 5
      %v1580 = vor.u32 %v1576, %v1579
      %1581 = vrot.lane.b32.xlu0 %v1444, 32
      %v1582 = vpop.permute.xlu0 %1581
      %1583 = vrot.lane.b32.xlu0 %v1452, 32
      %v1584 = vpop.permute.xlu0 %1583
      %1585 = vrot.lane.b32.xlu0 %v1460, 32
      %v1586 = vpop.permute.xlu0 %1585
      %1587 = vrot.lane.b32.xlu0 %v1468, 32
      %v1588 = vpop.permute.xlu0 %1587
      %1589 = vrot.lane.b32.xlu0 %v1476, 32
      %v1590 = vpop.permute.xlu0 %1589
      %1591 = vrot.lane.b32.xlu0 %v1484, 32
      %v1592 = vpop.permute.xlu0 %1591
      %1593 = vrot.lane.b32.xlu0 %v1492, 32
      %v1594 = vpop.permute.xlu0 %1593
      %1595 = vrot.lane.b32.xlu0 %v1500, 32
      %v1596 = vpop.permute.xlu0 %1595
      %1597 = vrot.lane.b32.xlu0 %v1508, 32
      %v1598 = vpop.permute.xlu0 %1597
      %1599 = vrot.lane.b32.xlu0 %v1516, 32
      %v1600 = vpop.permute.xlu0 %1599
      %1601 = vrot.lane.b32.xlu0 %v1524, 32
      %v1602 = vpop.permute.xlu0 %1601
      %1603 = vrot.lane.b32.xlu0 %v1532, 32
      %v1604 = vpop.permute.xlu0 %1603
      %1605 = vrot.lane.b32.xlu0 %v1540, 32
      %v1606 = vpop.permute.xlu0 %1605
      %1607 = vrot.lane.b32.xlu0 %v1548, 32
      %v1608 = vpop.permute.xlu0 %1607
      %1609 = vrot.lane.b32.xlu0 %v1556, 32
      %v1610 = vpop.permute.xlu0 %1609
      %1611 = vrot.lane.b32.xlu0 %v1564, 32
      %v1612 = vpop.permute.xlu0 %1611
      %1613 = vrot.lane.b32.xlu0 %v1572, 32
      %v1614 = vpop.permute.xlu0 %1613
      %1615 = vrot.lane.b32.xlu0 %v1580, 32
      %v1616 = vpop.permute.xlu0 %1615
      %v1635 = vunpack.c.l.b16 %v589
      %v1636 = vunpack.c.l.b16 %v590
      %v1637 = vunpack.c.l.b16 %v591
      %v1638 = vunpack.c.l.b16 %v592
      %v1639 = vunpack.c.l.b16 %v593
      %v1640 = vunpack.c.l.b16 %v594
      %v1641 = vunpack.c.l.b16 %v595
      %v1642 = vunpack.c.l.b16 %v596
      %v1643 = vunpack.c.l.b16 %v597
      %v1644 = vunpack.c.l.b16 %v598
      %v1645 = vunpack.c.l.b16 %v599
      %v1646 = vunpack.c.l.b16 %v600
      %v1647 = vunpack.c.l.b16 %v601
      %v1648 = vunpack.c.l.b16 %v602
      %v1649 = vunpack.c.l.b16 %v603
      %v1650 = vunpack.c.l.b16 %v604
      %v1651 = vunpack.c.l.b16 %v605
      %v1652 = vunpack.c.l.b16 %v606
      %v1653 = vpack.c.b16 %v1635, %v1635
      %v1654 = vpack.c.b16 %v1636, %v1636
      %v1655 = vpack.c.b16 %v1637, %v1637
      %v1656 = vpack.c.b16 %v1638, %v1638
      %v1657 = vpack.c.b16 %v1639, %v1639
      %v1658 = vpack.c.b16 %v1640, %v1640
      %v1659 = vpack.c.b16 %v1641, %v1641
      %v1660 = vpack.c.b16 %v1642, %v1642
      %v1661 = vpack.c.b16 %v1643, %v1643
      %v1662 = vpack.c.b16 %v1644, %v1644
      %v1663 = vpack.c.b16 %v1645, %v1645
      %v1664 = vpack.c.b16 %v1646, %v1646
      %v1665 = vpack.c.b16 %v1647, %v1647
      %v1666 = vpack.c.b16 %v1648, %v1648
      %v1667 = vpack.c.b16 %v1649, %v1649
      %v1668 = vpack.c.b16 %v1650, %v1650
      %v1669 = vpack.c.b16 %v1651, %v1651
      %v1670 = vpack.c.b16 %v1652, %v1652
      %v1671 = vrot.slane %v1419, 5
      %v1672 = vrot.slane %v1653, 5
      %v1673 = vsel %vm1076, %v1671, %v1672
      %v1674 = vrot.slane %v1420, 5
      %v1675 = vrot.slane %v1654, 5
      %v1676 = vsel %vm1076, %v1674, %v1675
      %v1677 = vrot.slane %v1421, 5
      %v1678 = vrot.slane %v1655, 5
      %v1679 = vsel %vm1076, %v1677, %v1678
      %v1680 = vrot.slane %v1422, 5
      %v1681 = vrot.slane %v1656, 5
      %v1682 = vsel %vm1076, %v1680, %v1681
      %v1683 = vrot.slane %v1423, 5
      %v1684 = vrot.slane %v1657, 5
      %v1685 = vsel %vm1076, %v1683, %v1684
      %v1686 = vrot.slane %v1424, 5
      %v1687 = vrot.slane %v1658, 5
      %v1688 = vsel %vm1076, %v1686, %v1687
      %v1689 = vrot.slane %v1425, 5
      %v1690 = vrot.slane %v1659, 5
      %v1691 = vsel %vm1076, %v1689, %v1690
      %v1692 = vrot.slane %v1426, 5
      %v1693 = vrot.slane %v1660, 5
      %v1694 = vsel %vm1076, %v1692, %v1693
      %v1695 = vrot.slane %v1427, 5
      %v1696 = vrot.slane %v1661, 5
      %v1697 = vsel %vm1076, %v1695, %v1696
      %v1698 = vrot.slane %v1428, 5
      %v1699 = vrot.slane %v1662, 5
      %v1700 = vsel %vm1076, %v1698, %v1699
      %v1701 = vrot.slane %v1429, 5
      %v1702 = vrot.slane %v1663, 5
      %v1703 = vsel %vm1076, %v1701, %v1702
      %v1704 = vrot.slane %v1430, 5
      %v1705 = vrot.slane %v1664, 5
      %v1706 = vsel %vm1076, %v1704, %v1705
      %v1707 = vrot.slane %v1431, 5
      %v1708 = vrot.slane %v1665, 5
      %v1709 = vsel %vm1076, %v1707, %v1708
      %v1710 = vrot.slane %v1432, 5
      %v1711 = vrot.slane %v1666, 5
      %v1712 = vsel %vm1076, %v1710, %v1711
      %v1713 = vrot.slane %v1433, 5
      %v1714 = vrot.slane %v1667, 5
      %v1715 = vsel %vm1076, %v1713, %v1714
      %v1716 = vrot.slane %v1434, 5
      %v1717 = vrot.slane %v1668, 5
      %v1718 = vsel %vm1076, %v1716, %v1717
      %v1719 = vrot.slane %v1435, 5
      %v1720 = vrot.slane %v1669, 5
      %v1721 = vsel %vm1076, %v1719, %v1720
      %v1722 = vrot.slane %v1436, 5
      %v1723 = vrot.slane %v1670, 5
      %v1724 = vsel %vm1076, %v1722, %v1723
      %1725 = vrot.lane.b32.xlu0 %v1671, 40
      %v1726 = vpop.permute.xlu0 %1725
      %1727 = vrot.lane.b32.xlu0 %v1673, 40
      %v1728 = vpop.permute.xlu0 %1727
      %1729 = vrot.lane.b32.xlu0 %v1674, 40
      %v1730 = vpop.permute.xlu0 %1729
      %1731 = vrot.lane.b32.xlu0 %v1676, 40
      %v1732 = vpop.permute.xlu0 %1731
      %1733 = vrot.lane.b32.xlu0 %v1677, 40
      %v1734 = vpop.permute.xlu0 %1733
      %1735 = vrot.lane.b32.xlu0 %v1679, 40
      %v1736 = vpop.permute.xlu0 %1735
      %1737 = vrot.lane.b32.xlu0 %v1680, 40
      %v1738 = vpop.permute.xlu0 %1737
      %1739 = vrot.lane.b32.xlu0 %v1682, 40
      %v1740 = vpop.permute.xlu0 %1739
      %1741 = vrot.lane.b32.xlu0 %v1683, 40
      %v1742 = vpop.permute.xlu0 %1741
      %1743 = vrot.lane.b32.xlu0 %v1685, 40
      %v1744 = vpop.permute.xlu0 %1743
      %1745 = vrot.lane.b32.xlu0 %v1686, 40
      %v1746 = vpop.permute.xlu0 %1745
      %1747 = vrot.lane.b32.xlu0 %v1688, 40
      %v1748 = vpop.permute.xlu0 %1747
      %1749 = vrot.lane.b32.xlu0 %v1689, 40
      %v1750 = vpop.permute.xlu0 %1749
      %1751 = vrot.lane.b32.xlu0 %v1691, 40
      %v1752 = vpop.permute.xlu0 %1751
      %1753 = vrot.lane.b32.xlu0 %v1692, 40
      %v1754 = vpop.permute.xlu0 %1753
      %1755 = vrot.lane.b32.xlu0 %v1694, 40
      %v1756 = vpop.permute.xlu0 %1755
      %1757 = vrot.lane.b32.xlu0 %v1695, 40
      %v1758 = vpop.permute.xlu0 %1757
      %1759 = vrot.lane.b32.xlu0 %v1697, 40
      %v1760 = vpop.permute.xlu0 %1759
      %1761 = vrot.lane.b32.xlu0 %v1698, 40
      %v1762 = vpop.permute.xlu0 %1761
      %1763 = vrot.lane.b32.xlu0 %v1700, 40
      %v1764 = vpop.permute.xlu0 %1763
      %1765 = vrot.lane.b32.xlu0 %v1701, 40
      %v1766 = vpop.permute.xlu0 %1765
      %1767 = vrot.lane.b32.xlu0 %v1703, 40
      %v1768 = vpop.permute.xlu0 %1767
      %1769 = vrot.lane.b32.xlu0 %v1704, 40
      %v1770 = vpop.permute.xlu0 %1769
      %1771 = vrot.lane.b32.xlu0 %v1706, 40
      %v1772 = vpop.permute.xlu0 %1771
      %1773 = vrot.lane.b32.xlu0 %v1707, 40
      %v1774 = vpop.permute.xlu0 %1773
      %1775 = vrot.lane.b32.xlu0 %v1709, 40
      %v1776 = vpop.permute.xlu0 %1775
      %1777 = vrot.lane.b32.xlu0 %v1710, 40
      %v1778 = vpop.permute.xlu0 %1777
      %1779 = vrot.lane.b32.xlu0 %v1712, 40
      %v1780 = vpop.permute.xlu0 %1779
      %1781 = vrot.lane.b32.xlu0 %v1713, 40
      %v1782 = vpop.permute.xlu0 %1781
      %1783 = vrot.lane.b32.xlu0 %v1715, 40
      %v1784 = vpop.permute.xlu0 %1783
      %1785 = vrot.lane.b32.xlu0 %v1716, 40
      %v1786 = vpop.permute.xlu0 %1785
      %1787 = vrot.lane.b32.xlu0 %v1718, 40
      %v1788 = vpop.permute.xlu0 %1787
      %1789 = vrot.lane.b32.xlu0 %v1719, 40
      %v1790 = vpop.permute.xlu0 %1789
      %1791 = vrot.lane.b32.xlu0 %v1721, 40
      %v1792 = vpop.permute.xlu0 %1791
      %1793 = vrot.lane.b32.xlu0 %v1722, 40
      %v1794 = vpop.permute.xlu0 %1793
      %1795 = vrot.lane.b32.xlu0 %v1724, 40
      %v1796 = vpop.permute.xlu0 %1795
      %v1851 = vunpack.c.l.b16 %v608
      %v1852 = vunpack.c.l.b16 %v609
      %v1853 = vunpack.c.l.b16 %v610
      %v1854 = vunpack.c.l.b16 %v611
      %v1855 = vunpack.c.l.b16 %v612
      %v1856 = vunpack.c.l.b16 %v613
      %v1857 = vunpack.c.l.b16 %v614
      %v1858 = vunpack.c.l.b16 %v615
      %v1859 = vunpack.c.l.b16 %v616
      %v1860 = vunpack.c.l.b16 %v617
      %v1861 = vunpack.c.l.b16 %v618
      %v1862 = vunpack.c.l.b16 %v619
      %v1863 = vunpack.c.l.b16 %v620
      %v1864 = vunpack.c.l.b16 %v621
      %v1865 = vunpack.c.l.b16 %v622
      %v1866 = vunpack.c.l.b16 %v623
      %v1867 = vunpack.c.l.b16 %v624
      %v1868 = vunpack.c.l.b16 %v625
      %v1869 = vunpack.c.l.b16 %v626
      %v1870 = vunpack.c.l.b16 %v627
      %v1871 = vunpack.c.l.b16 %v628
      %v1872 = vunpack.c.l.b16 %v629
      %v1873 = vunpack.c.l.b16 %v630
      %v1874 = vunpack.c.l.b16 %v631
      %v1875 = vunpack.c.l.b16 %v632
      %v1876 = vunpack.c.l.b16 %v633
      %v1877 = vunpack.c.l.b16 %v634
      %v1878 = vunpack.c.l.b16 %v635
      %v1879 = vunpack.c.l.b16 %v636
      %v1880 = vunpack.c.l.b16 %v637
      %v1881 = vunpack.c.l.b16 %v638
      %v1882 = vunpack.c.l.b16 %v639
      %v1883 = vunpack.c.l.b16 %v640
      %v1884 = vunpack.c.l.b16 %v641
      %v1885 = vunpack.c.l.b16 %v642
      %v1886 = vunpack.c.l.b16 %v643
      %v1887 = vunpack.c.l.b16 %v644
      %v1888 = vunpack.c.l.b16 %v645
      %v1889 = vunpack.c.l.b16 %v646
      %v1890 = vunpack.c.l.b16 %v647
      %v1891 = vunpack.c.l.b16 %v648
      %v1892 = vunpack.c.l.b16 %v649
      %v1893 = vunpack.c.l.b16 %v650
      %v1894 = vunpack.c.l.b16 %v651
      %v1895 = vunpack.c.l.b16 %v652
      %v1896 = vunpack.c.l.b16 %v653
      %v1897 = vunpack.c.l.b16 %v654
      %v1898 = vunpack.c.l.b16 %v655
      %v1899 = vunpack.c.l.b16 %v656
      %v1900 = vunpack.c.l.b16 %v657
      %v1901 = vunpack.c.l.b16 %v658
      %v1902 = vunpack.c.l.b16 %v659
      %v1903 = vunpack.c.l.b16 %v660
      %v1904 = vunpack.c.l.b16 %v661
      %v1905 = vpack.c.b16 %v1852, %v1851
      %v1906 = vpack.c.b16 %v1853, %v1853
      %v1907 = vpack.c.b16 %v1855, %v1854
      %v1908 = vpack.c.b16 %v1856, %v1856
      %v1909 = vpack.c.b16 %v1858, %v1857
      %v1910 = vpack.c.b16 %v1859, %v1859
      %v1911 = vpack.c.b16 %v1861, %v1860
      %v1912 = vpack.c.b16 %v1862, %v1862
      %v1913 = vpack.c.b16 %v1864, %v1863
      %v1914 = vpack.c.b16 %v1865, %v1865
      %v1915 = vpack.c.b16 %v1867, %v1866
      %v1916 = vpack.c.b16 %v1868, %v1868
      %v1917 = vpack.c.b16 %v1870, %v1869
      %v1918 = vpack.c.b16 %v1871, %v1871
      %v1919 = vpack.c.b16 %v1873, %v1872
      %v1920 = vpack.c.b16 %v1874, %v1874
      %v1921 = vpack.c.b16 %v1876, %v1875
      %v1922 = vpack.c.b16 %v1877, %v1877
      %v1923 = vpack.c.b16 %v1879, %v1878
      %v1924 = vpack.c.b16 %v1880, %v1880
      %v1925 = vpack.c.b16 %v1882, %v1881
      %v1926 = vpack.c.b16 %v1883, %v1883
      %v1927 = vpack.c.b16 %v1885, %v1884
      %v1928 = vpack.c.b16 %v1886, %v1886
      %v1929 = vpack.c.b16 %v1888, %v1887
      %v1930 = vpack.c.b16 %v1889, %v1889
      %v1931 = vpack.c.b16 %v1891, %v1890
      %v1932 = vpack.c.b16 %v1892, %v1892
      %v1933 = vpack.c.b16 %v1894, %v1893
      %v1934 = vpack.c.b16 %v1895, %v1895
      %v1935 = vpack.c.b16 %v1897, %v1896
      %v1936 = vpack.c.b16 %v1898, %v1898
      %v1937 = vpack.c.b16 %v1900, %v1899
      %v1938 = vpack.c.b16 %v1901, %v1901
      %v1939 = vpack.c.b16 %v1903, %v1902
      %v1940 = vpack.c.b16 %v1904, %v1904
      %1941 = vrot.lane.b32.xlu0 %v1905, 48
      %v1942 = vpop.permute.xlu0 %1941
      %1943 = vrot.lane.b32.xlu0 %v1906, 48
      %v1944 = vpop.permute.xlu0 %1943
      %1945 = vrot.lane.b32.xlu0 %v1907, 48
      %v1946 = vpop.permute.xlu0 %1945
      %1947 = vrot.lane.b32.xlu0 %v1908, 48
      %v1948 = vpop.permute.xlu0 %1947
      %1949 = vrot.lane.b32.xlu0 %v1909, 48
      %v1950 = vpop.permute.xlu0 %1949
      %1951 = vrot.lane.b32.xlu0 %v1910, 48
      %v1952 = vpop.permute.xlu0 %1951
      %1953 = vrot.lane.b32.xlu0 %v1911, 48
      %v1954 = vpop.permute.xlu0 %1953
      %1955 = vrot.lane.b32.xlu0 %v1912, 48
      %v1956 = vpop.permute.xlu0 %1955
      %1957 = vrot.lane.b32.xlu0 %v1913, 48
      %v1958 = vpop.permute.xlu0 %1957
      %1959 = vrot.lane.b32.xlu0 %v1914, 48
      %v1960 = vpop.permute.xlu0 %1959
      %1961 = vrot.lane.b32.xlu0 %v1915, 48
      %v1962 = vpop.permute.xlu0 %1961
      %1963 = vrot.lane.b32.xlu0 %v1916, 48
      %v1964 = vpop.permute.xlu0 %1963
      %1965 = vrot.lane.b32.xlu0 %v1917, 48
      %v1966 = vpop.permute.xlu0 %1965
      %1967 = vrot.lane.b32.xlu0 %v1918, 48
      %v1968 = vpop.permute.xlu0 %1967
      %1969 = vrot.lane.b32.xlu0 %v1919, 48
      %v1970 = vpop.permute.xlu0 %1969
      %1971 = vrot.lane.b32.xlu0 %v1920, 48
      %v1972 = vpop.permute.xlu0 %1971
      %1973 = vrot.lane.b32.xlu0 %v1921, 48
      %v1974 = vpop.permute.xlu0 %1973
      %1975 = vrot.lane.b32.xlu0 %v1922, 48
      %v1976 = vpop.permute.xlu0 %1975
      %1977 = vrot.lane.b32.xlu0 %v1923, 48
      %v1978 = vpop.permute.xlu0 %1977
      %1979 = vrot.lane.b32.xlu0 %v1924, 48
      %v1980 = vpop.permute.xlu0 %1979
      %1981 = vrot.lane.b32.xlu0 %v1925, 48
      %v1982 = vpop.permute.xlu0 %1981
      %1983 = vrot.lane.b32.xlu0 %v1926, 48
      %v1984 = vpop.permute.xlu0 %1983
      %1985 = vrot.lane.b32.xlu0 %v1927, 48
      %v1986 = vpop.permute.xlu0 %1985
      %1987 = vrot.lane.b32.xlu0 %v1928, 48
      %v1988 = vpop.permute.xlu0 %1987
      %1989 = vrot.lane.b32.xlu0 %v1929, 48
      %v1990 = vpop.permute.xlu0 %1989
      %1991 = vrot.lane.b32.xlu0 %v1930, 48
      %v1992 = vpop.permute.xlu0 %1991
      %1993 = vrot.lane.b32.xlu0 %v1931, 48
      %v1994 = vpop.permute.xlu0 %1993
      %1995 = vrot.lane.b32.xlu0 %v1932, 48
      %v1996 = vpop.permute.xlu0 %1995
      %1997 = vrot.lane.b32.xlu0 %v1933, 48
      %v1998 = vpop.permute.xlu0 %1997
      %1999 = vrot.lane.b32.xlu0 %v1934, 48
      %v2000 = vpop.permute.xlu0 %1999
      %2001 = vrot.lane.b32.xlu0 %v1935, 48
      %v2002 = vpop.permute.xlu0 %2001
      %2003 = vrot.lane.b32.xlu0 %v1936, 48
      %v2004 = vpop.permute.xlu0 %2003
      %2005 = vrot.lane.b32.xlu0 %v1937, 48
      %v2006 = vpop.permute.xlu0 %2005
      %2007 = vrot.lane.b32.xlu0 %v1938, 48
      %v2008 = vpop.permute.xlu0 %2007
      %2009 = vrot.lane.b32.xlu0 %v1939, 48
      %v2010 = vpop.permute.xlu0 %2009
      %2011 = vrot.lane.b32.xlu0 %v1940, 48
      %v2012 = vpop.permute.xlu0 %2011
      %v2013 = vpack.c.b16 %v1853, %v1852
      %v2014 = vpack.c.b16 %v1856, %v1855
      %v2015 = vpack.c.b16 %v1859, %v1858
      %v2016 = vpack.c.b16 %v1862, %v1861
      %v2017 = vpack.c.b16 %v1865, %v1864
      %v2018 = vpack.c.b16 %v1868, %v1867
      %v2019 = vpack.c.b16 %v1871, %v1870
      %v2020 = vpack.c.b16 %v1874, %v1873
      %v2021 = vpack.c.b16 %v1877, %v1876
      %v2022 = vpack.c.b16 %v1880, %v1879
      %v2023 = vpack.c.b16 %v1883, %v1882
      %v2024 = vpack.c.b16 %v1886, %v1885
      %v2025 = vpack.c.b16 %v1889, %v1888
      %v2026 = vpack.c.b16 %v1892, %v1891
      %v2027 = vpack.c.b16 %v1895, %v1894
      %v2028 = vpack.c.b16 %v1898, %v1897
      %v2029 = vpack.c.b16 %v1901, %v1900
      %v2030 = vpack.c.b16 %v1904, %v1903
      %v2032 = vshrl.u32 %v2013, 16
      %v2034 = vrot.slane %v2032, 4
      %v2035 = vshll.u32 %v2013, 16
      %v2037 = vrot.slane %v2035, 5
      %v2038 = vor.u32 %v2034, %v2037
      %v2040 = vshrl.u32 %v2014, 16
      %v2042 = vrot.slane %v2040, 4
      %v2043 = vshll.u32 %v2014, 16
      %v2045 = vrot.slane %v2043, 5
      %v2046 = vor.u32 %v2042, %v2045
      %v2048 = vshrl.u32 %v2015, 16
      %v2050 = vrot.slane %v2048, 4
      %v2051 = vshll.u32 %v2015, 16
      %v2053 = vrot.slane %v2051, 5
      %v2054 = vor.u32 %v2050, %v2053
      %v2056 = vshrl.u32 %v2016, 16
      %v2058 = vrot.slane %v2056, 4
      %v2059 = vshll.u32 %v2016, 16
      %v2061 = vrot.slane %v2059, 5
      %v2062 = vor.u32 %v2058, %v2061
      %v2064 = vshrl.u32 %v2017, 16
      %v2066 = vrot.slane %v2064, 4
      %v2067 = vshll.u32 %v2017, 16
      %v2069 = vrot.slane %v2067, 5
      %v2070 = vor.u32 %v2066, %v2069
      %v2072 = vshrl.u32 %v2018, 16
      %v2074 = vrot.slane %v2072, 4
      %v2075 = vshll.u32 %v2018, 16
      %v2077 = vrot.slane %v2075, 5
      %v2078 = vor.u32 %v2074, %v2077
      %v2080 = vshrl.u32 %v2019, 16
      %v2082 = vrot.slane %v2080, 4
      %v2083 = vshll.u32 %v2019, 16
      %v2085 = vrot.slane %v2083, 5
      %v2086 = vor.u32 %v2082, %v2085
      %v2088 = vshrl.u32 %v2020, 16
      %v2090 = vrot.slane %v2088, 4
      %v2091 = vshll.u32 %v2020, 16
      %v2093 = vrot.slane %v2091, 5
      %v2094 = vor.u32 %v2090, %v2093
      %v2096 = vshrl.u32 %v2021, 16
      %v2098 = vrot.slane %v2096, 4
      %v2099 = vshll.u32 %v2021, 16
      %v2101 = vrot.slane %v2099, 5
      %v2102 = vor.u32 %v2098, %v2101
      %v2104 = vshrl.u32 %v2022, 16
      %v2106 = vrot.slane %v2104, 4
      %v2107 = vshll.u32 %v2022, 16
      %v2109 = vrot.slane %v2107, 5
      %v2110 = vor.u32 %v2106, %v2109
      %v2112 = vshrl.u32 %v2023, 16
      %v2114 = vrot.slane %v2112, 4
      %v2115 = vshll.u32 %v2023, 16
      %v2117 = vrot.slane %v2115, 5
      %v2118 = vor.u32 %v2114, %v2117
      %v2120 = vshrl.u32 %v2024, 16
      %v2122 = vrot.slane %v2120, 4
      %v2123 = vshll.u32 %v2024, 16
      %v2125 = vrot.slane %v2123, 5
      %v2126 = vor.u32 %v2122, %v2125
      %v2128 = vshrl.u32 %v2025, 16
      %v2130 = vrot.slane %v2128, 4
      %v2131 = vshll.u32 %v2025, 16
      %v2133 = vrot.slane %v2131, 5
      %v2134 = vor.u32 %v2130, %v2133
      %v2136 = vshrl.u32 %v2026, 16
      %v2138 = vrot.slane %v2136, 4
      %v2139 = vshll.u32 %v2026, 16
      %v2141 = vrot.slane %v2139, 5
      %v2142 = vor.u32 %v2138, %v2141
      %v2144 = vshrl.u32 %v2027, 16
      %v2146 = vrot.slane %v2144, 4
      %v2147 = vshll.u32 %v2027, 16
      %v2149 = vrot.slane %v2147, 5
      %v2150 = vor.u32 %v2146, %v2149
      %v2152 = vshrl.u32 %v2028, 16
      %v2154 = vrot.slane %v2152, 4
      %v2155 = vshll.u32 %v2028, 16
      %v2157 = vrot.slane %v2155, 5
      %v2158 = vor.u32 %v2154, %v2157
      %v2160 = vshrl.u32 %v2029, 16
      %v2162 = vrot.slane %v2160, 4
      %v2163 = vshll.u32 %v2029, 16
      %v2165 = vrot.slane %v2163, 5
      %v2166 = vor.u32 %v2162, %v2165
      %v2168 = vshrl.u32 %v2030, 16
      %v2170 = vrot.slane %v2168, 4
      %v2171 = vshll.u32 %v2030, 16
      %v2173 = vrot.slane %v2171, 5
      %v2174 = vor.u32 %v2170, %v2173
      %2175 = vrot.lane.b32.xlu0 %v2038, 56
      %v2176 = vpop.permute.xlu0 %2175
      %2177 = vrot.lane.b32.xlu0 %v2046, 56
      %v2178 = vpop.permute.xlu0 %2177
      %2179 = vrot.lane.b32.xlu0 %v2054, 56
      %v2180 = vpop.permute.xlu0 %2179
      %2181 = vrot.lane.b32.xlu0 %v2062, 56
      %v2182 = vpop.permute.xlu0 %2181
      %2183 = vrot.lane.b32.xlu0 %v2070, 56
      %v2184 = vpop.permute.xlu0 %2183
      %2185 = vrot.lane.b32.xlu0 %v2078, 56
      %v2186 = vpop.permute.xlu0 %2185
      %2187 = vrot.lane.b32.xlu0 %v2086, 56
      %v2188 = vpop.permute.xlu0 %2187
      %2189 = vrot.lane.b32.xlu0 %v2094, 56
      %v2190 = vpop.permute.xlu0 %2189
      %2191 = vrot.lane.b32.xlu0 %v2102, 56
      %v2192 = vpop.permute.xlu0 %2191
      %2193 = vrot.lane.b32.xlu0 %v2110, 56
      %v2194 = vpop.permute.xlu0 %2193
      %2195 = vrot.lane.b32.xlu0 %v2118, 56
      %v2196 = vpop.permute.xlu0 %2195
      %2197 = vrot.lane.b32.xlu0 %v2126, 56
      %v2198 = vpop.permute.xlu0 %2197
      %2199 = vrot.lane.b32.xlu0 %v2134, 56
      %v2200 = vpop.permute.xlu0 %2199
      %2201 = vrot.lane.b32.xlu0 %v2142, 56
      %v2202 = vpop.permute.xlu0 %2201
      %2203 = vrot.lane.b32.xlu0 %v2150, 56
      %v2204 = vpop.permute.xlu0 %2203
      %2205 = vrot.lane.b32.xlu0 %v2158, 56
      %v2206 = vpop.permute.xlu0 %2205
      %2207 = vrot.lane.b32.xlu0 %v2166, 56
      %v2208 = vpop.permute.xlu0 %2207
      %2209 = vrot.lane.b32.xlu0 %v2174, 56
      %v2210 = vpop.permute.xlu0 %2209
      %v2229 = vunpack.c.l.b16 %v662
      %v2230 = vunpack.c.l.b16 %v663
      %v2231 = vunpack.c.l.b16 %v664
      %v2232 = vunpack.c.l.b16 %v665
      %v2233 = vunpack.c.l.b16 %v666
      %v2234 = vunpack.c.l.b16 %v667
      %v2235 = vunpack.c.l.b16 %v668
      %v2236 = vunpack.c.l.b16 %v669
      %v2237 = vunpack.c.l.b16 %v670
      %v2238 = vunpack.c.l.b16 %v671
      %v2239 = vunpack.c.l.b16 %v672
      %v2240 = vunpack.c.l.b16 %v673
      %v2241 = vunpack.c.l.b16 %v674
      %v2242 = vunpack.c.l.b16 %v675
      %v2243 = vunpack.c.l.b16 %v676
      %v2244 = vunpack.c.l.b16 %v677
      %v2245 = vunpack.c.l.b16 %v678
      %v2246 = vunpack.c.l.b16 %v679
      %v2247 = vpack.c.b16 %v2229, %v2229
      %v2248 = vpack.c.b16 %v2230, %v2230
      %v2249 = vpack.c.b16 %v2231, %v2231
      %v2250 = vpack.c.b16 %v2232, %v2232
      %v2251 = vpack.c.b16 %v2233, %v2233
      %v2252 = vpack.c.b16 %v2234, %v2234
      %v2253 = vpack.c.b16 %v2235, %v2235
      %v2254 = vpack.c.b16 %v2236, %v2236
      %v2255 = vpack.c.b16 %v2237, %v2237
      %v2256 = vpack.c.b16 %v2238, %v2238
      %v2257 = vpack.c.b16 %v2239, %v2239
      %v2258 = vpack.c.b16 %v2240, %v2240
      %v2259 = vpack.c.b16 %v2241, %v2241
      %v2260 = vpack.c.b16 %v2242, %v2242
      %v2261 = vpack.c.b16 %v2243, %v2243
      %v2262 = vpack.c.b16 %v2244, %v2244
      %v2263 = vpack.c.b16 %v2245, %v2245
      %v2264 = vpack.c.b16 %v2246, %v2246
      %v2265 = vrot.slane %v2013, 5
      %v2266 = vrot.slane %v2247, 5
      %v2267 = vsel %vm1076, %v2265, %v2266
      %v2268 = vrot.slane %v2014, 5
      %v2269 = vrot.slane %v2248, 5
      %v2270 = vsel %vm1076, %v2268, %v2269
      %v2271 = vrot.slane %v2015, 5
      %v2272 = vrot.slane %v2249, 5
      %v2273 = vsel %vm1076, %v2271, %v2272
      %v2274 = vrot.slane %v2016, 5
      %v2275 = vrot.slane %v2250, 5
      %v2276 = vsel %vm1076, %v2274, %v2275
      %v2277 = vrot.slane %v2017, 5
      %v2278 = vrot.slane %v2251, 5
      %v2279 = vsel %vm1076, %v2277, %v2278
      %v2280 = vrot.slane %v2018, 5
      %v2281 = vrot.slane %v2252, 5
      %v2282 = vsel %vm1076, %v2280, %v2281
      %v2283 = vrot.slane %v2019, 5
      %v2284 = vrot.slane %v2253, 5
      %v2285 = vsel %vm1076, %v2283, %v2284
      %v2286 = vrot.slane %v2020, 5
      %v2287 = vrot.slane %v2254, 5
      %v2288 = vsel %vm1076, %v2286, %v2287
      %v2289 = vrot.slane %v2021, 5
      %v2290 = vrot.slane %v2255, 5
      %v2291 = vsel %vm1076, %v2289, %v2290
      %v2292 = vrot.slane %v2022, 5
      %v2293 = vrot.slane %v2256, 5
      %v2294 = vsel %vm1076, %v2292, %v2293
      %v2295 = vrot.slane %v2023, 5
      %v2296 = vrot.slane %v2257, 5
      %v2297 = vsel %vm1076, %v2295, %v2296
      %v2298 = vrot.slane %v2024, 5
      %v2299 = vrot.slane %v2258, 5
      %v2300 = vsel %vm1076, %v2298, %v2299
      %v2301 = vrot.slane %v2025, 5
      %v2302 = vrot.slane %v2259, 5
      %v2303 = vsel %vm1076, %v2301, %v2302
      %v2304 = vrot.slane %v2026, 5
      %v2305 = vrot.slane %v2260, 5
      %v2306 = vsel %vm1076, %v2304, %v2305
      %v2307 = vrot.slane %v2027, 5
      %v2308 = vrot.slane %v2261, 5
      %v2309 = vsel %vm1076, %v2307, %v2308
      %v2310 = vrot.slane %v2028, 5
      %v2311 = vrot.slane %v2262, 5
      %v2312 = vsel %vm1076, %v2310, %v2311
      %v2313 = vrot.slane %v2029, 5
      %v2314 = vrot.slane %v2263, 5
      %v2315 = vsel %vm1076, %v2313, %v2314
      %v2316 = vrot.slane %v2030, 5
      %v2317 = vrot.slane %v2264, 5
      %v2318 = vsel %vm1076, %v2316, %v2317
      %2319 = vrot.lane.b32.xlu0 %v2265, 64
      %v2320 = vpop.permute.xlu0 %2319
      %2321 = vrot.lane.b32.xlu0 %v2267, 64
      %v2322 = vpop.permute.xlu0 %2321
      %2323 = vrot.lane.b32.xlu0 %v2268, 64
      %v2324 = vpop.permute.xlu0 %2323
      %2325 = vrot.lane.b32.xlu0 %v2270, 64
      %v2326 = vpop.permute.xlu0 %2325
      %2327 = vrot.lane.b32.xlu0 %v2271, 64
      %v2328 = vpop.permute.xlu0 %2327
      %2329 = vrot.lane.b32.xlu0 %v2273, 64
      %v2330 = vpop.permute.xlu0 %2329
      %2331 = vrot.lane.b32.xlu0 %v2274, 64
      %v2332 = vpop.permute.xlu0 %2331
      %2333 = vrot.lane.b32.xlu0 %v2276, 64
      %v2334 = vpop.permute.xlu0 %2333
      %2335 = vrot.lane.b32.xlu0 %v2277, 64
      %v2336 = vpop.permute.xlu0 %2335
      %2337 = vrot.lane.b32.xlu0 %v2279, 64
      %v2338 = vpop.permute.xlu0 %2337
      %2339 = vrot.lane.b32.xlu0 %v2280, 64
      %v2340 = vpop.permute.xlu0 %2339
      %2341 = vrot.lane.b32.xlu0 %v2282, 64
      %v2342 = vpop.permute.xlu0 %2341
      %2343 = vrot.lane.b32.xlu0 %v2283, 64
      %v2344 = vpop.permute.xlu0 %2343
      %2345 = vrot.lane.b32.xlu0 %v2285, 64
      %v2346 = vpop.permute.xlu0 %2345
      %2347 = vrot.lane.b32.xlu0 %v2286, 64
      %v2348 = vpop.permute.xlu0 %2347
      %2349 = vrot.lane.b32.xlu0 %v2288, 64
      %v2350 = vpop.permute.xlu0 %2349
      %2351 = vrot.lane.b32.xlu0 %v2289, 64
      %v2352 = vpop.permute.xlu0 %2351
      %2353 = vrot.lane.b32.xlu0 %v2291, 64
      %v2354 = vpop.permute.xlu0 %2353
      %2355 = vrot.lane.b32.xlu0 %v2292, 64
      %v2356 = vpop.permute.xlu0 %2355
      %2357 = vrot.lane.b32.xlu0 %v2294, 64
      %v2358 = vpop.permute.xlu0 %2357
      %2359 = vrot.lane.b32.xlu0 %v2295, 64
      %v2360 = vpop.permute.xlu0 %2359
      %2361 = vrot.lane.b32.xlu0 %v2297, 64
      %v2362 = vpop.permute.xlu0 %2361
      %2363 = vrot.lane.b32.xlu0 %v2298, 64
      %v2364 = vpop.permute.xlu0 %2363
      %2365 = vrot.lane.b32.xlu0 %v2300, 64
      %v2366 = vpop.permute.xlu0 %2365
      %2367 = vrot.lane.b32.xlu0 %v2301, 64
      %v2368 = vpop.permute.xlu0 %2367
      %2369 = vrot.lane.b32.xlu0 %v2303, 64
      %v2370 = vpop.permute.xlu0 %2369
      %2371 = vrot.lane.b32.xlu0 %v2304, 64
      %v2372 = vpop.permute.xlu0 %2371
      %2373 = vrot.lane.b32.xlu0 %v2306, 64
      %v2374 = vpop.permute.xlu0 %2373
      %2375 = vrot.lane.b32.xlu0 %v2307, 64
      %v2376 = vpop.permute.xlu0 %2375
      %2377 = vrot.lane.b32.xlu0 %v2309, 64
      %v2378 = vpop.permute.xlu0 %2377
      %2379 = vrot.lane.b32.xlu0 %v2310, 64
      %v2380 = vpop.permute.xlu0 %2379
      %2381 = vrot.lane.b32.xlu0 %v2312, 64
      %v2382 = vpop.permute.xlu0 %2381
      %2383 = vrot.lane.b32.xlu0 %v2313, 64
      %v2384 = vpop.permute.xlu0 %2383
      %2385 = vrot.lane.b32.xlu0 %v2315, 64
      %v2386 = vpop.permute.xlu0 %2385
      %2387 = vrot.lane.b32.xlu0 %v2316, 64
      %v2388 = vpop.permute.xlu0 %2387
      %2389 = vrot.lane.b32.xlu0 %v2318, 64
      %v2390 = vpop.permute.xlu0 %2389
      %vm2391 = vcmask 64512
      %v2394 = vsel %vm2391, %v788, %v987
      %v2396 = vsel %vm2391, %v789, %v987
      %v2399 = vsel %vm2391, %v790, %v989
      %v2401 = vsel %vm2391, %v791, %v989
      %v2404 = vsel %vm2391, %v792, %v991
      %v2406 = vsel %vm2391, %v793, %v991
      %v2409 = vsel %vm2391, %v794, %v993
      %v2411 = vsel %vm2391, %v795, %v993
      %v2414 = vsel %vm2391, %v796, %v995
      %v2416 = vsel %vm2391, %v797, %v995
      %v2419 = vsel %vm2391, %v798, %v997
      %v2421 = vsel %vm2391, %v799, %v997
      %v2424 = vsel %vm2391, %v800, %v999
      %v2426 = vsel %vm2391, %v801, %v999
      %v2429 = vsel %vm2391, %v802, %v1001
      %v2431 = vsel %vm2391, %v803, %v1001
      %v2434 = vsel %vm2391, %v804, %v1003
      %v2436 = vsel %vm2391, %v805, %v1003
      %v2439 = vsel %vm2391, %v806, %v1005
      %v2441 = vsel %vm2391, %v807, %v1005
      %v2444 = vsel %vm2391, %v808, %v1007
      %v2446 = vsel %vm2391, %v809, %v1007
      %v2449 = vsel %vm2391, %v810, %v1009
      %v2451 = vsel %vm2391, %v811, %v1009
      %v2454 = vsel %vm2391, %v812, %v1011
      %v2456 = vsel %vm2391, %v813, %v1011
      %v2459 = vsel %vm2391, %v814, %v1013
      %v2461 = vsel %vm2391, %v815, %v1013
      %v2464 = vsel %vm2391, %v816, %v1015
      %v2466 = vsel %vm2391, %v817, %v1015
      %v2469 = vsel %vm2391, %v818, %v1017
      %v2471 = vsel %vm2391, %v819, %v1017
      %v2474 = vsel %vm2391, %v820, %v1019
      %v2476 = vsel %vm2391, %v821, %v1019
      %v2479 = vsel %vm2391, %v822, %v1021
      %v2481 = vsel %vm2391, %v823, %v1021
      %vm2482 = vcmask 130048
      %v2484 = vsel %vm2482, %v2394, %v1132
      %v2486 = vsel %vm2482, %v2396, %v1134
      %v2488 = vsel %vm2482, %v2399, %v1136
      %v2490 = vsel %vm2482, %v2401, %v1138
      %v2492 = vsel %vm2482, %v2404, %v1140
      %v2494 = vsel %vm2482, %v2406, %v1142
      %v2496 = vsel %vm2482, %v2409, %v1144
      %v2498 = vsel %vm2482, %v2411, %v1146
      %v2500 = vsel %vm2482, %v2414, %v1148
      %v2502 = vsel %vm2482, %v2416, %v1150
      %v2504 = vsel %vm2482, %v2419, %v1152
      %v2506 = vsel %vm2482, %v2421, %v1154
      %v2508 = vsel %vm2482, %v2424, %v1156
      %v2510 = vsel %vm2482, %v2426, %v1158
      %v2512 = vsel %vm2482, %v2429, %v1160
      %v2514 = vsel %vm2482, %v2431, %v1162
      %v2516 = vsel %vm2482, %v2434, %v1164
      %v2518 = vsel %vm2482, %v2436, %v1166
      %v2520 = vsel %vm2482, %v2439, %v1168
      %v2522 = vsel %vm2482, %v2441, %v1170
      %v2524 = vsel %vm2482, %v2444, %v1172
      %v2526 = vsel %vm2482, %v2446, %v1174
      %v2528 = vsel %vm2482, %v2449, %v1176
      %v2530 = vsel %vm2482, %v2451, %v1178
      %v2532 = vsel %vm2482, %v2454, %v1180
      %v2534 = vsel %vm2482, %v2456, %v1182
      %v2536 = vsel %vm2482, %v2459, %v1184
      %v2538 = vsel %vm2482, %v2461, %v1186
      %v2540 = vsel %vm2482, %v2464, %v1188
      %v2542 = vsel %vm2482, %v2466, %v1190
      %v2544 = vsel %vm2482, %v2469, %v1192
      %v2546 = vsel %vm2482, %v2471, %v1194
      %v2548 = vsel %vm2482, %v2474, %v1196
      %v2550 = vsel %vm2482, %v2476, %v1198
      %v2552 = vsel %vm2482, %v2479, %v1200
      %v2554 = vsel %vm2482, %v2481, %v1202
      %vm2555 = vcmask 195584
      %v2557 = vsel %vm2555, %v2484, %v1348
      %v2559 = vsel %vm2555, %v2486, %v1350
      %v2561 = vsel %vm2555, %v2488, %v1352
      %v2563 = vsel %vm2555, %v2490, %v1354
      %v2565 = vsel %vm2555, %v2492, %v1356
      %v2567 = vsel %vm2555, %v2494, %v1358
      %v2569 = vsel %vm2555, %v2496, %v1360
      %v2571 = vsel %vm2555, %v2498, %v1362
      %v2573 = vsel %vm2555, %v2500, %v1364
      %v2575 = vsel %vm2555, %v2502, %v1366
      %v2577 = vsel %vm2555, %v2504, %v1368
      %v2579 = vsel %vm2555, %v2506, %v1370
      %v2581 = vsel %vm2555, %v2508, %v1372
      %v2583 = vsel %vm2555, %v2510, %v1374
      %v2585 = vsel %vm2555, %v2512, %v1376
      %v2587 = vsel %vm2555, %v2514, %v1378
      %v2589 = vsel %vm2555, %v2516, %v1380
      %v2591 = vsel %vm2555, %v2518, %v1382
      %v2593 = vsel %vm2555, %v2520, %v1384
      %v2595 = vsel %vm2555, %v2522, %v1386
      %v2597 = vsel %vm2555, %v2524, %v1388
      %v2599 = vsel %vm2555, %v2526, %v1390
      %v2601 = vsel %vm2555, %v2528, %v1392
      %v2603 = vsel %vm2555, %v2530, %v1394
      %v2605 = vsel %vm2555, %v2532, %v1396
      %v2607 = vsel %vm2555, %v2534, %v1398
      %v2609 = vsel %vm2555, %v2536, %v1400
      %v2611 = vsel %vm2555, %v2538, %v1402
      %v2613 = vsel %vm2555, %v2540, %v1404
      %v2615 = vsel %vm2555, %v2542, %v1406
      %v2617 = vsel %vm2555, %v2544, %v1408
      %v2619 = vsel %vm2555, %v2546, %v1410
      %v2621 = vsel %vm2555, %v2548, %v1412
      %v2623 = vsel %vm2555, %v2550, %v1414
      %v2625 = vsel %vm2555, %v2552, %v1416
      %v2627 = vsel %vm2555, %v2554, %v1418
      %vm2628 = vcmask 261120
      %v2630 = vsel %vm2628, %v2557, %v1582
      %v2631 = vsel %vm2628, %v2559, %v1582
      %v2633 = vsel %vm2628, %v2561, %v1584
      %v2634 = vsel %vm2628, %v2563, %v1584
      %v2636 = vsel %vm2628, %v2565, %v1586
      %v2637 = vsel %vm2628, %v2567, %v1586
      %v2639 = vsel %vm2628, %v2569, %v1588
      %v2640 = vsel %vm2628, %v2571, %v1588
      %v2642 = vsel %vm2628, %v2573, %v1590
      %v2643 = vsel %vm2628, %v2575, %v1590
      %v2645 = vsel %vm2628, %v2577, %v1592
      %v2646 = vsel %vm2628, %v2579, %v1592
      %v2648 = vsel %vm2628, %v2581, %v1594
      %v2649 = vsel %vm2628, %v2583, %v1594
      %v2651 = vsel %vm2628, %v2585, %v1596
      %v2652 = vsel %vm2628, %v2587, %v1596
      %v2654 = vsel %vm2628, %v2589, %v1598
      %v2655 = vsel %vm2628, %v2591, %v1598
      %v2657 = vsel %vm2628, %v2593, %v1600
      %v2658 = vsel %vm2628, %v2595, %v1600
      %v2660 = vsel %vm2628, %v2597, %v1602
      %v2661 = vsel %vm2628, %v2599, %v1602
      %v2663 = vsel %vm2628, %v2601, %v1604
      %v2664 = vsel %vm2628, %v2603, %v1604
      %v2666 = vsel %vm2628, %v2605, %v1606
      %v2667 = vsel %vm2628, %v2607, %v1606
      %v2669 = vsel %vm2628, %v2609, %v1608
      %v2670 = vsel %vm2628, %v2611, %v1608
      %v2672 = vsel %vm2628, %v2613, %v1610
      %v2673 = vsel %vm2628, %v2615, %v1610
      %v2675 = vsel %vm2628, %v2617, %v1612
      %v2676 = vsel %vm2628, %v2619, %v1612
      %v2678 = vsel %vm2628, %v2621, %v1614
      %v2679 = vsel %vm2628, %v2623, %v1614
      %v2681 = vsel %vm2628, %v2625, %v1616
      %v2682 = vsel %vm2628, %v2627, %v1616
      %vm2683 = vcmask 326656
      %v2685 = vsel %vm2683, %v2630, %v1726
      %v2687 = vsel %vm2683, %v2631, %v1728
      %v2689 = vsel %vm2683, %v2633, %v1730
      %v2691 = vsel %vm2683, %v2634, %v1732
      %v2693 = vsel %vm2683, %v2636, %v1734
      %v2695 = vsel %vm2683, %v2637, %v1736
      %v2697 = vsel %vm2683, %v2639, %v1738
      %v2699 = vsel %vm2683, %v2640, %v1740
      %v2701 = vsel %vm2683, %v2642, %v1742
      %v2703 = vsel %vm2683, %v2643, %v1744
      %v2705 = vsel %vm2683, %v2645, %v1746
      %v2707 = vsel %vm2683, %v2646, %v1748
      %v2709 = vsel %vm2683, %v2648, %v1750
      %v2711 = vsel %vm2683, %v2649, %v1752
      %v2713 = vsel %vm2683, %v2651, %v1754
      %v2715 = vsel %vm2683, %v2652, %v1756
      %v2717 = vsel %vm2683, %v2654, %v1758
      %v2719 = vsel %vm2683, %v2655, %v1760
      %v2721 = vsel %vm2683, %v2657, %v1762
      %v2723 = vsel %vm2683, %v2658, %v1764
      %v2725 = vsel %vm2683, %v2660, %v1766
      %v2727 = vsel %vm2683, %v2661, %v1768
      %v2729 = vsel %vm2683, %v2663, %v1770
      %v2731 = vsel %vm2683, %v2664, %v1772
      %v2733 = vsel %vm2683, %v2666, %v1774
      %v2735 = vsel %vm2683, %v2667, %v1776
      %v2737 = vsel %vm2683, %v2669, %v1778
      %v2739 = vsel %vm2683, %v2670, %v1780
      %v2741 = vsel %vm2683, %v2672, %v1782
      %v2743 = vsel %vm2683, %v2673, %v1784
      %v2745 = vsel %vm2683, %v2675, %v1786
      %v2747 = vsel %vm2683, %v2676, %v1788
      %v2749 = vsel %vm2683, %v2678, %v1790
      %v2751 = vsel %vm2683, %v2679, %v1792
      %v2753 = vsel %vm2683, %v2681, %v1794
      %v2755 = vsel %vm2683, %v2682, %v1796
      %vm2756 = vcmask 392192
      %v2758 = vsel %vm2756, %v2685, %v1942
      %v2760 = vsel %vm2756, %v2687, %v1944
      %v2762 = vsel %vm2756, %v2689, %v1946
      %v2764 = vsel %vm2756, %v2691, %v1948
      %v2766 = vsel %vm2756, %v2693, %v1950
      %v2768 = vsel %vm2756, %v2695, %v1952
      %v2770 = vsel %vm2756, %v2697, %v1954
      %v2772 = vsel %vm2756, %v2699, %v1956
      %v2774 = vsel %vm2756, %v2701, %v1958
      %v2776 = vsel %vm2756, %v2703, %v1960
      %v2778 = vsel %vm2756, %v2705, %v1962
      %v2780 = vsel %vm2756, %v2707, %v1964
      %v2782 = vsel %vm2756, %v2709, %v1966
      %v2784 = vsel %vm2756, %v2711, %v1968
      %v2786 = vsel %vm2756, %v2713, %v1970
      %v2788 = vsel %vm2756, %v2715, %v1972
      %v2790 = vsel %vm2756, %v2717, %v1974
      %v2792 = vsel %vm2756, %v2719, %v1976
      %v2794 = vsel %vm2756, %v2721, %v1978
      %v2796 = vsel %vm2756, %v2723, %v1980
      %v2798 = vsel %vm2756, %v2725, %v1982
      %v2800 = vsel %vm2756, %v2727, %v1984
      %v2802 = vsel %vm2756, %v2729, %v1986
      %v2804 = vsel %vm2756, %v2731, %v1988
      %v2806 = vsel %vm2756, %v2733, %v1990
      %v2808 = vsel %vm2756, %v2735, %v1992
      %v2810 = vsel %vm2756, %v2737, %v1994
      %v2812 = vsel %vm2756, %v2739, %v1996
      %v2814 = vsel %vm2756, %v2741, %v1998
      %v2816 = vsel %vm2756, %v2743, %v2000
      %v2818 = vsel %vm2756, %v2745, %v2002
      %v2820 = vsel %vm2756, %v2747, %v2004
      %v2822 = vsel %vm2756, %v2749, %v2006
      %v2824 = vsel %vm2756, %v2751, %v2008
      %v2826 = vsel %vm2756, %v2753, %v2010
      %v2828 = vsel %vm2756, %v2755, %v2012
      %vm2829 = vcmask 457728
      %v2831 = vsel %vm2829, %v2758, %v2176
      %v2832 = vsel %vm2829, %v2760, %v2176
      %v2834 = vsel %vm2829, %v2762, %v2178
      %v2835 = vsel %vm2829, %v2764, %v2178
      %v2837 = vsel %vm2829, %v2766, %v2180
      %v2838 = vsel %vm2829, %v2768, %v2180
      %v2840 = vsel %vm2829, %v2770, %v2182
      %v2841 = vsel %vm2829, %v2772, %v2182
      %v2843 = vsel %vm2829, %v2774, %v2184
      %v2844 = vsel %vm2829, %v2776, %v2184
      %v2846 = vsel %vm2829, %v2778, %v2186
      %v2847 = vsel %vm2829, %v2780, %v2186
      %v2849 = vsel %vm2829, %v2782, %v2188
      %v2850 = vsel %vm2829, %v2784, %v2188
      %v2852 = vsel %vm2829, %v2786, %v2190
      %v2853 = vsel %vm2829, %v2788, %v2190
      %v2855 = vsel %vm2829, %v2790, %v2192
      %v2856 = vsel %vm2829, %v2792, %v2192
      %v2858 = vsel %vm2829, %v2794, %v2194
      %v2859 = vsel %vm2829, %v2796, %v2194
      %v2861 = vsel %vm2829, %v2798, %v2196
      %v2862 = vsel %vm2829, %v2800, %v2196
      %v2864 = vsel %vm2829, %v2802, %v2198
      %v2865 = vsel %vm2829, %v2804, %v2198
      %v2867 = vsel %vm2829, %v2806, %v2200
      %v2868 = vsel %vm2829, %v2808, %v2200
      %v2870 = vsel %vm2829, %v2810, %v2202
      %v2871 = vsel %vm2829, %v2812, %v2202
      %v2873 = vsel %vm2829, %v2814, %v2204
      %v2874 = vsel %vm2829, %v2816, %v2204
      %v2876 = vsel %vm2829, %v2818, %v2206
      %v2877 = vsel %vm2829, %v2820, %v2206
      %v2879 = vsel %vm2829, %v2822, %v2208
      %v2880 = vsel %vm2829, %v2824, %v2208
      %v2882 = vsel %vm2829, %v2826, %v2210
      %v2883 = vsel %vm2829, %v2828, %v2210
      %vm2884 = vcmask 523264
      %v2886 = vsel %vm2884, %v2831, %v2320
      %v2888 = vsel %vm2884, %v2832, %v2322
      %v2890 = vsel %vm2884, %v2834, %v2324
      %v2892 = vsel %vm2884, %v2835, %v2326
      %v2894 = vsel %vm2884, %v2837, %v2328
      %v2896 = vsel %vm2884, %v2838, %v2330
      %v2898 = vsel %vm2884, %v2840, %v2332
      %v2900 = vsel %vm2884, %v2841, %v2334
      %v2902 = vsel %vm2884, %v2843, %v2336
      %v2904 = vsel %vm2884, %v2844, %v2338
      %v2906 = vsel %vm2884, %v2846, %v2340
      %v2908 = vsel %vm2884, %v2847, %v2342
      %v2910 = vsel %vm2884, %v2849, %v2344
      %v2912 = vsel %vm2884, %v2850, %v2346
      %v2914 = vsel %vm2884, %v2852, %v2348
      %v2916 = vsel %vm2884, %v2853, %v2350
      %v2918 = vsel %vm2884, %v2855, %v2352
      %v2920 = vsel %vm2884, %v2856, %v2354
      %v2922 = vsel %vm2884, %v2858, %v2356
      %v2924 = vsel %vm2884, %v2859, %v2358
      %v2926 = vsel %vm2884, %v2861, %v2360
      %v2928 = vsel %vm2884, %v2862, %v2362
      %v2930 = vsel %vm2884, %v2864, %v2364
      %v2932 = vsel %vm2884, %v2865, %v2366
      %v2934 = vsel %vm2884, %v2867, %v2368
      %v2936 = vsel %vm2884, %v2868, %v2370
      %v2938 = vsel %vm2884, %v2870, %v2372
      %v2940 = vsel %vm2884, %v2871, %v2374
      %v2942 = vsel %vm2884, %v2873, %v2376
      %v2944 = vsel %vm2884, %v2874, %v2378
      %v2946 = vsel %vm2884, %v2876, %v2380
      %v2948 = vsel %vm2884, %v2877, %v2382
      %v2950 = vsel %vm2884, %v2879, %v2384
      %v2952 = vsel %vm2884, %v2880, %v2386
      %v2954 = vsel %vm2884, %v2882, %v2388
      %v2956 = vsel %vm2884, %v2883, %v2390
      %vm2957 = vsmask.f32 4352
      %v2958 = vshrl.u32 %v2886, 16
      %v2960 = vrot.slane %v2958, 3
      %v2961 = vshll.u32 %v2886, 16
      %v2963 = vrot.slane %v2961, 4
      %v2964 = vor.u32 %v2960, %v2963
      %v2965 = vshrl.u32 %v2888, 16
      %v2967 = vrot.slane %v2965, 3
      %v2968 = vshll.u32 %v2888, 16
      %v2970 = vrot.slane %v2968, 4
      %v2971 = vor.u32 %v2967, %v2970
      %v2972 = vsel %vm2957, %v2964, %v2971
      %v2973 = vshrl.u32 %v2890, 16
      %v2975 = vrot.slane %v2973, 3
      %v2976 = vshll.u32 %v2890, 16
      %v2978 = vrot.slane %v2976, 4
      %v2979 = vor.u32 %v2975, %v2978
      %v2980 = vshrl.u32 %v2892, 16
      %v2982 = vrot.slane %v2980, 3
      %v2983 = vshll.u32 %v2892, 16
      %v2985 = vrot.slane %v2983, 4
      %v2986 = vor.u32 %v2982, %v2985
      %v2987 = vsel %vm2957, %v2979, %v2986
      %v2988 = vshrl.u32 %v2894, 16
      %v2990 = vrot.slane %v2988, 3
      %v2991 = vshll.u32 %v2894, 16
      %v2993 = vrot.slane %v2991, 4
      %v2994 = vor.u32 %v2990, %v2993
      %v2995 = vshrl.u32 %v2896, 16
      %v2997 = vrot.slane %v2995, 3
      %v2998 = vshll.u32 %v2896, 16
      %v3000 = vrot.slane %v2998, 4
      %v3001 = vor.u32 %v2997, %v3000
      %v3002 = vsel %vm2957, %v2994, %v3001
      %v3003 = vshrl.u32 %v2898, 16
      %v3005 = vrot.slane %v3003, 3
      %v3006 = vshll.u32 %v2898, 16
      %v3008 = vrot.slane %v3006, 4
      %v3009 = vor.u32 %v3005, %v3008
      %v3010 = vshrl.u32 %v2900, 16
      %v3012 = vrot.slane %v3010, 3
      %v3013 = vshll.u32 %v2900, 16
      %v3015 = vrot.slane %v3013, 4
      %v3016 = vor.u32 %v3012, %v3015
      %v3017 = vsel %vm2957, %v3009, %v3016
      %v3018 = vshrl.u32 %v2902, 16
      %v3020 = vrot.slane %v3018, 3
      %v3021 = vshll.u32 %v2902, 16
      %v3023 = vrot.slane %v3021, 4
      %v3024 = vor.u32 %v3020, %v3023
      %v3025 = vshrl.u32 %v2904, 16
      %v3027 = vrot.slane %v3025, 3
      %v3028 = vshll.u32 %v2904, 16
      %v3030 = vrot.slane %v3028, 4
      %v3031 = vor.u32 %v3027, %v3030
      %v3032 = vsel %vm2957, %v3024, %v3031
      %v3033 = vshrl.u32 %v2906, 16
      %v3035 = vrot.slane %v3033, 3
      %v3036 = vshll.u32 %v2906, 16
      %v3038 = vrot.slane %v3036, 4
      %v3039 = vor.u32 %v3035, %v3038
      %v3040 = vshrl.u32 %v2908, 16
      %v3042 = vrot.slane %v3040, 3
      %v3043 = vshll.u32 %v2908, 16
      %v3045 = vrot.slane %v3043, 4
      %v3046 = vor.u32 %v3042, %v3045
      %v3047 = vsel %vm2957, %v3039, %v3046
      %v3048 = vshrl.u32 %v2910, 16
      %v3050 = vrot.slane %v3048, 3
      %v3051 = vshll.u32 %v2910, 16
      %v3053 = vrot.slane %v3051, 4
      %v3054 = vor.u32 %v3050, %v3053
      %v3055 = vshrl.u32 %v2912, 16
      %v3057 = vrot.slane %v3055, 3
      %v3058 = vshll.u32 %v2912, 16
      %v3060 = vrot.slane %v3058, 4
      %v3061 = vor.u32 %v3057, %v3060
      %v3062 = vsel %vm2957, %v3054, %v3061
      %v3063 = vshrl.u32 %v2914, 16
      %v3065 = vrot.slane %v3063, 3
      %v3066 = vshll.u32 %v2914, 16
      %v3068 = vrot.slane %v3066, 4
      %v3069 = vor.u32 %v3065, %v3068
      %v3070 = vshrl.u32 %v2916, 16
      %v3072 = vrot.slane %v3070, 3
      %v3073 = vshll.u32 %v2916, 16
      %v3075 = vrot.slane %v3073, 4
      %v3076 = vor.u32 %v3072, %v3075
      %v3077 = vsel %vm2957, %v3069, %v3076
      %v3078 = vshrl.u32 %v2918, 16
      %v3080 = vrot.slane %v3078, 3
      %v3081 = vshll.u32 %v2918, 16
      %v3083 = vrot.slane %v3081, 4
      %v3084 = vor.u32 %v3080, %v3083
      %v3085 = vshrl.u32 %v2920, 16
      %v3087 = vrot.slane %v3085, 3
      %v3088 = vshll.u32 %v2920, 16
      %v3090 = vrot.slane %v3088, 4
      %v3091 = vor.u32 %v3087, %v3090
      %v3092 = vsel %vm2957, %v3084, %v3091
      %v3093 = vshrl.u32 %v2922, 16
      %v3095 = vrot.slane %v3093, 3
      %v3096 = vshll.u32 %v2922, 16
      %v3098 = vrot.slane %v3096, 4
      %v3099 = vor.u32 %v3095, %v3098
      %v3100 = vshrl.u32 %v2924, 16
      %v3102 = vrot.slane %v3100, 3
      %v3103 = vshll.u32 %v2924, 16
      %v3105 = vrot.slane %v3103, 4
      %v3106 = vor.u32 %v3102, %v3105
      %v3107 = vsel %vm2957, %v3099, %v3106
      %v3108 = vshrl.u32 %v2926, 16
      %v3110 = vrot.slane %v3108, 3
      %v3111 = vshll.u32 %v2926, 16
      %v3113 = vrot.slane %v3111, 4
      %v3114 = vor.u32 %v3110, %v3113
      %v3115 = vshrl.u32 %v2928, 16
      %v3117 = vrot.slane %v3115, 3
      %v3118 = vshll.u32 %v2928, 16
      %v3120 = vrot.slane %v3118, 4
      %v3121 = vor.u32 %v3117, %v3120
      %v3122 = vsel %vm2957, %v3114, %v3121
      %v3123 = vshrl.u32 %v2930, 16
      %v3125 = vrot.slane %v3123, 3
      %v3126 = vshll.u32 %v2930, 16
      %v3128 = vrot.slane %v3126, 4
      %v3129 = vor.u32 %v3125, %v3128
      %v3130 = vshrl.u32 %v2932, 16
      %v3132 = vrot.slane %v3130, 3
      %v3133 = vshll.u32 %v2932, 16
      %v3135 = vrot.slane %v3133, 4
      %v3136 = vor.u32 %v3132, %v3135
      %v3137 = vsel %vm2957, %v3129, %v3136
      %v3138 = vshrl.u32 %v2934, 16
      %v3140 = vrot.slane %v3138, 3
      %v3141 = vshll.u32 %v2934, 16
      %v3143 = vrot.slane %v3141, 4
      %v3144 = vor.u32 %v3140, %v3143
      %v3145 = vshrl.u32 %v2936, 16
      %v3147 = vrot.slane %v3145, 3
      %v3148 = vshll.u32 %v2936, 16
      %v3150 = vrot.slane %v3148, 4
      %v3151 = vor.u32 %v3147, %v3150
      %v3152 = vsel %vm2957, %v3144, %v3151
      %v3153 = vshrl.u32 %v2938, 16
      %v3155 = vrot.slane %v3153, 3
      %v3156 = vshll.u32 %v2938, 16
      %v3158 = vrot.slane %v3156, 4
      %v3159 = vor.u32 %v3155, %v3158
      %v3160 = vshrl.u32 %v2940, 16
      %v3162 = vrot.slane %v3160, 3
      %v3163 = vshll.u32 %v2940, 16
      %v3165 = vrot.slane %v3163, 4
      %v3166 = vor.u32 %v3162, %v3165
      %v3167 = vsel %vm2957, %v3159, %v3166
      %v3168 = vshrl.u32 %v2942, 16
      %v3170 = vrot.slane %v3168, 3
      %v3171 = vshll.u32 %v2942, 16
      %v3173 = vrot.slane %v3171, 4
      %v3174 = vor.u32 %v3170, %v3173
      %v3175 = vshrl.u32 %v2944, 16
      %v3177 = vrot.slane %v3175, 3
      %v3178 = vshll.u32 %v2944, 16
      %v3180 = vrot.slane %v3178, 4
      %v3181 = vor.u32 %v3177, %v3180
      %v3182 = vsel %vm2957, %v3174, %v3181
      %v3183 = vshrl.u32 %v2946, 16
      %v3185 = vrot.slane %v3183, 3
      %v3186 = vshll.u32 %v2946, 16
      %v3188 = vrot.slane %v3186, 4
      %v3189 = vor.u32 %v3185, %v3188
      %v3190 = vshrl.u32 %v2948, 16
      %v3192 = vrot.slane %v3190, 3
      %v3193 = vshll.u32 %v2948, 16
      %v3195 = vrot.slane %v3193, 4
      %v3196 = vor.u32 %v3192, %v3195
      %v3197 = vsel %vm2957, %v3189, %v3196
      %v3198 = vshrl.u32 %v2950, 16
      %v3200 = vrot.slane %v3198, 3
      %v3201 = vshll.u32 %v2950, 16
      %v3203 = vrot.slane %v3201, 4
      %v3204 = vor.u32 %v3200, %v3203
      %v3205 = vshrl.u32 %v2952, 16
      %v3207 = vrot.slane %v3205, 3
      %v3208 = vshll.u32 %v2952, 16
      %v3210 = vrot.slane %v3208, 4
      %v3211 = vor.u32 %v3207, %v3210
      %v3212 = vsel %vm2957, %v3204, %v3211
      %v3213 = vshrl.u32 %v2954, 16
      %v3215 = vrot.slane %v3213, 3
      %v3216 = vshll.u32 %v2954, 16
      %v3218 = vrot.slane %v3216, 4
      %v3219 = vor.u32 %v3215, %v3218
      %v3220 = vshrl.u32 %v2956, 16
      %v3222 = vrot.slane %v3220, 3
      %v3223 = vshll.u32 %v2956, 16
      %v3225 = vrot.slane %v3223, 4
      %v3226 = vor.u32 %v3222, %v3225
      %v3227 = vsel %vm2957, %v3219, %v3226
      %v3228 = vld [vmem:[%s1] sm:$0xf]
      %v3229 = vld [vmem:[%s1 + $0x4] sm:$0xf]
      %v3230 = vld [vmem:[%s1 + $0x8] sm:$0xf]
      %v3231 = vld [vmem:[%s1 + $0xc] sm:$0xf]
      %v3232 = vld [vmem:[%s1 + $0x10] sm:$0xf]
      %v3233 = vld [vmem:[%s1 + $0x14] sm:$0xf]
      %v3234 = vld [vmem:[%s1 + $0x18] sm:$0xf]
      %v3235 = vld [vmem:[%s1 + $0x1c] sm:$0xf]
      %v3236 = vld [vmem:[%s1 + $0x20] sm:$0xf]
      %v3237 = vld [vmem:[%s2] sm:$0x1]
      %v3239 = vperm.slane %v3237, 0
      %v3250 = vunpack.c.l.b16 %v3228
      %v3251 = vunpack.c.l.b16 %v3229
      %v3252 = vunpack.c.l.b16 %v3230
      %v3253 = vunpack.c.l.b16 %v3231
      %v3254 = vunpack.c.l.b16 %v3232
      %v3255 = vunpack.c.l.b16 %v3233
      %v3256 = vunpack.c.l.b16 %v3234
      %v3257 = vunpack.c.l.b16 %v3235
      %v3258 = vunpack.c.l.b16 %v3236
      %v3259 = vpack.c.b16 %v3251, %v3250
      %v3260 = vpack.c.b16 %v3253, %v3252
      %v3261 = vpack.c.b16 %v3255, %v3254
      %v3262 = vpack.c.b16 %v3257, %v3256
      %v3263 = vpack.c.b16 %v3258, %v3258
      %vm3268 = vcmask 588800
      %v3270 = vsel %vm3268, %v2972, 0
      %v3273 = vsel %vm3268, %v2987, 0
      %v3276 = vsel %vm3268, %v3002, 0
      %v3279 = vsel %vm3268, %v3017, 0
      %v3282 = vsel %vm3268, %v3032, 0
      %v3285 = vsel %vm3268, %v3047, 0
      %v3288 = vsel %vm3268, %v3062, 0
      %v3291 = vsel %vm3268, %v3077, 0
      %v3294 = vsel %vm3268, %v3092, 0
      %v3297 = vsel %vm3268, %v3107, 0
      %v3300 = vsel %vm3268, %v3122, 0
      %v3303 = vsel %vm3268, %v3137, 0
      %v3306 = vsel %vm3268, %v3152, 0
      %v3309 = vsel %vm3268, %v3167, 0
      %v3312 = vsel %vm3268, %v3182, 0
      %v3315 = vsel %vm3268, %v3197, 0
      %v3318 = vsel %vm3268, %v3212, 0
      %v3321 = vsel %vm3268, %v3227, 0
      %vm3323 = vcmask 1043456
      %v3325 = vsel %vm3323, %v3263, 0
      %3327 = vmatpush.bf16.msra.mxu0 0
      %3328 = vmatpush.bf16.msra.mxu0 0
      %3329 = vmatpush.bf16.msra.mxu0 0
      %3330 = vmatpush.bf16.msra.mxu0 %v3325
      %3331 = vmatpush.bf16.msra.mxu0 %v3262
      %3332 = vmatpush.bf16.msra.mxu0 %v3261
      %3333 = vmatpush.bf16.msra.mxu0 %v3260
      %3334 = vmatpush.bf16.msra.mxu0 %v3259
      %3335 = vmatmul.bf16.gmra.mxu0 %v3270
      %v3336 = vpop.f32.mrf.mxu0
      %v3337 = vadd.f32 %v3239, %v3336
      %v3338 = vpop.f32.mrf.mxu0
      %v3339 = vadd.f32 %v3239, %v3338
      %3340 = vmatmul.bf16.gmra.mxu0 %v3273
      %v3341 = vpop.f32.mrf.mxu0
      %v3342 = vadd.f32 %v3239, %v3341
      %v3343 = vpop.f32.mrf.mxu0
      %v3344 = vadd.f32 %v3239, %v3343
      %3345 = vmatmul.bf16.gmra.mxu0 %v3276
      %v3346 = vpop.f32.mrf.mxu0
      %v3347 = vadd.f32 %v3239, %v3346
      %v3348 = vpop.f32.mrf.mxu0
      %v3349 = vadd.f32 %v3239, %v3348
      %3350 = vmatmul.bf16.gmra.mxu0 %v3279
      %v3351 = vpop.f32.mrf.mxu0
      %v3352 = vadd.f32 %v3239, %v3351
      %v3353 = vpop.f32.mrf.mxu0
      %v3354 = vadd.f32 %v3239, %v3353
      %3355 = vmatmul.bf16.gmra.mxu0 %v3282
      %v3356 = vpop.f32.mrf.mxu0
      %v3357 = vadd.f32 %v3239, %v3356
      %v3358 = vpop.f32.mrf.mxu0
      %v3359 = vadd.f32 %v3239, %v3358
      %3360 = vmatmul.bf16.gmra.mxu0 %v3285
      %v3361 = vpop.f32.mrf.mxu0
      %v3362 = vadd.f32 %v3239, %v3361
      %v3363 = vpop.f32.mrf.mxu0
      %v3364 = vadd.f32 %v3239, %v3363
      %3365 = vmatmul.bf16.gmra.mxu0 %v3288
      %v3366 = vpop.f32.mrf.mxu0
      %v3367 = vadd.f32 %v3239, %v3366
      %v3368 = vpop.f32.mrf.mxu0
      %v3369 = vadd.f32 %v3239, %v3368
      %3370 = vmatmul.bf16.gmra.mxu0 %v3291
      %v3371 = vpop.f32.mrf.mxu0
      %v3372 = vadd.f32 %v3239, %v3371
      %v3373 = vpop.f32.mrf.mxu0
      %v3374 = vadd.f32 %v3239, %v3373
      %3375 = vmatmul.bf16.gmra.mxu0 %v3294
      %v3376 = vpop.f32.mrf.mxu0
      %v3377 = vadd.f32 %v3239, %v3376
      %v3378 = vpop.f32.mrf.mxu0
      %v3379 = vadd.f32 %v3239, %v3378
      %3380 = vmatmul.bf16.gmra.mxu0 %v3297
      %v3381 = vpop.f32.mrf.mxu0
      %v3382 = vadd.f32 %v3239, %v3381
      %v3383 = vpop.f32.mrf.mxu0
      %v3384 = vadd.f32 %v3239, %v3383
      %3385 = vmatmul.bf16.gmra.mxu0 %v3300
      %v3386 = vpop.f32.mrf.mxu0
      %v3387 = vadd.f32 %v3239, %v3386
      %v3388 = vpop.f32.mrf.mxu0
      %v3389 = vadd.f32 %v3239, %v3388
      %3390 = vmatmul.bf16.gmra.mxu0 %v3303
      %v3391 = vpop.f32.mrf.mxu0
      %v3392 = vadd.f32 %v3239, %v3391
      %v3393 = vpop.f32.mrf.mxu0
      %v3394 = vadd.f32 %v3239, %v3393
      %3395 = vmatmul.bf16.gmra.mxu0 %v3306
      %v3396 = vpop.f32.mrf.mxu0
      %v3397 = vadd.f32 %v3239, %v3396
      %v3398 = vpop.f32.mrf.mxu0
      %v3399 = vadd.f32 %v3239, %v3398
      %3400 = vmatmul.bf16.gmra.mxu0 %v3309
      %v3401 = vpop.f32.mrf.mxu0
      %v3402 = vadd.f32 %v3239, %v3401
      %v3403 = vpop.f32.mrf.mxu0
      %v3404 = vadd.f32 %v3239, %v3403
      %3405 = vmatmul.bf16.gmra.mxu0 %v3312
      %v3406 = vpop.f32.mrf.mxu0
      %v3407 = vadd.f32 %v3239, %v3406
      %v3408 = vpop.f32.mrf.mxu0
      %v3409 = vadd.f32 %v3239, %v3408
      %3410 = vmatmul.bf16.gmra.mxu0 %v3315
      %v3411 = vpop.f32.mrf.mxu0
      %v3412 = vadd.f32 %v3239, %v3411
      %v3413 = vpop.f32.mrf.mxu0
      %v3414 = vadd.f32 %v3239, %v3413
      %3415 = vmatmul.bf16.gmra.mxu0 %v3318
      %v3416 = vpop.f32.mrf.mxu0
      %v3417 = vadd.f32 %v3239, %v3416
      %v3418 = vpop.f32.mrf.mxu0
      %v3419 = vadd.f32 %v3239, %v3418
      %3420 = vmatmul.bf16.gmra.mxu0 %v3321
      %v3421 = vpop.f32.mrf.mxu0
      %v3422 = vadd.f32 %v3239, %v3421
      %v3423 = vpop.f32.mrf.mxu0
      %v3424 = vadd.f32 %v3239, %v3423
      %3425 = vdwg.mxu0
      %v3426 = vmax.f32 %v3337, 0.0
      %v3427 = vmax.f32 %v3339, 0.0
      %v3428 = vmax.f32 %v3342, 0.0
      %v3429 = vmax.f32 %v3344, 0.0
      %v3430 = vmax.f32 %v3347, 0.0
      %v3431 = vmax.f32 %v3349, 0.0
      %v3432 = vmax.f32 %v3352, 0.0
      %v3433 = vmax.f32 %v3354, 0.0
      %v3434 = vmax.f32 %v3357, 0.0
      %v3435 = vmax.f32 %v3359, 0.0
      %v3436 = vmax.f32 %v3362, 0.0
      %v3437 = vmax.f32 %v3364, 0.0
      %v3438 = vmax.f32 %v3367, 0.0
      %v3439 = vmax.f32 %v3369, 0.0
      %v3440 = vmax.f32 %v3372, 0.0
      %v3441 = vmax.f32 %v3374, 0.0
      %v3442 = vmax.f32 %v3377, 0.0
      %v3443 = vmax.f32 %v3379, 0.0
      %v3444 = vmax.f32 %v3382, 0.0
      %v3445 = vmax.f32 %v3384, 0.0
      %v3446 = vmax.f32 %v3387, 0.0
      %v3447 = vmax.f32 %v3389, 0.0
      %v3448 = vmax.f32 %v3392, 0.0
      %v3449 = vmax.f32 %v3394, 0.0
      %v3450 = vmax.f32 %v3397, 0.0
      %v3451 = vmax.f32 %v3399, 0.0
      %v3452 = vmax.f32 %v3402, 0.0
      %v3453 = vmax.f32 %v3404, 0.0
      %v3454 = vmax.f32 %v3407, 0.0
      %v3455 = vmax.f32 %v3409, 0.0
      %v3456 = vmax.f32 %v3412, 0.0
      %v3457 = vmax.f32 %v3414, 0.0
      %v3458 = vmax.f32 %v3417, 0.0
      %v3459 = vmax.f32 %v3419, 0.0
      %v3460 = vmax.f32 %v3422, 0.0
      %v3461 = vmax.f32 %v3424, 0.0
      %vm3462 = vcmask 1043459
      %vm3463 = vmand %vm3462, %vm253
      %v3464 = vld [vmem:[#allocation3] sm:$0x8]
      %v3465 = vsel %vm3463, 0, %v3464
      %3466 = vst [vmem:[#allocation3] sm:$0x8] %v3465
      %v3467 = vld [vmem:[#allocation3 + $0x10] sm:$0x8]
      %v3468 = vsel %vm3463, 0, %v3467
      %3469 = vst [vmem:[#allocation3 + $0x10] sm:$0x8] %v3468
      %v3470 = vld [vmem:[#allocation3 + $0x20] sm:$0x8]
      %v3471 = vsel %vm3463, 0, %v3470
      %3472 = vst [vmem:[#allocation3 + $0x20] sm:$0x8] %v3471
      %v3473 = vld [vmem:[#allocation3 + $0x30] sm:$0x8]
      %v3474 = vsel %vm3463, 0, %v3473
      %3475 = vst [vmem:[#allocation3 + $0x30] sm:$0x8] %v3474
      %v3476 = vld [vmem:[#allocation3 + $0x40] sm:$0x8]
      %v3477 = vsel %vm3463, 0, %v3476
      %3478 = vst [vmem:[#allocation3 + $0x40] sm:$0x8] %v3477
      %v3479 = vld [vmem:[#allocation3 + $0x50] sm:$0x8]
      %v3480 = vsel %vm3463, 0, %v3479
      %3481 = vst [vmem:[#allocation3 + $0x50] sm:$0x8] %v3480
      %v3482 = vld [vmem:[#allocation3 + $0x60] sm:$0x8]
      %v3483 = vsel %vm3463, 0, %v3482
      %3484 = vst [vmem:[#allocation3 + $0x60] sm:$0x8] %v3483
      %v3485 = vld [vmem:[#allocation3 + $0x70] sm:$0x8]
      %v3486 = vsel %vm3463, 0, %v3485
      %3487 = vst [vmem:[#allocation3 + $0x70] sm:$0x8] %v3486
      %v3488 = vld [vmem:[#allocation3 + $0x80] sm:$0x8]
      %v3489 = vsel %vm3463, 0, %v3488
      %3490 = vst [vmem:[#allocation3 + $0x80] sm:$0x8] %v3489
      %v3491 = vld [vmem:[#allocation3 + $0x90] sm:$0x8]
      %v3492 = vsel %vm3463, 0, %v3491
      %3493 = vst [vmem:[#allocation3 + $0x90] sm:$0x8] %v3492
      %v3494 = vld [vmem:[#allocation3 + $0xa0] sm:$0x8]
      %v3495 = vsel %vm3463, 0, %v3494
      %3496 = vst [vmem:[#allocation3 + $0xa0] sm:$0x8] %v3495
      %v3497 = vld [vmem:[#allocation3 + $0xb0] sm:$0x8]
      %v3498 = vsel %vm3463, 0, %v3497
      %3499 = vst [vmem:[#allocation3 + $0xb0] sm:$0x8] %v3498
      %v3500 = vld [vmem:[#allocation3 + $0xc0] sm:$0x8]
      %v3501 = vsel %vm3463, 0, %v3500
      %3502 = vst [vmem:[#allocation3 + $0xc0] sm:$0x8] %v3501
      %v3503 = vld [vmem:[#allocation3 + $0xd0] sm:$0x8]
      %v3504 = vsel %vm3463, 0, %v3503
      %3505 = vst [vmem:[#allocation3 + $0xd0] sm:$0x8] %v3504
      %v3506 = vld [vmem:[#allocation3 + $0xe0] sm:$0x8]
      %v3507 = vsel %vm3463, 0, %v3506
      %3508 = vst [vmem:[#allocation3 + $0xe0] sm:$0x8] %v3507
      %v3509 = vld [vmem:[#allocation3 + $0xf0] sm:$0x8]
      %v3510 = vsel %vm3463, 0, %v3509
      %3511 = vst [vmem:[#allocation3 + $0xf0] sm:$0x8] %v3510
      %v3512 = vld [vmem:[#allocation3 + $0x100] sm:$0x8]
      %v3513 = vsel %vm3463, 0, %v3512
      %3514 = vst [vmem:[#allocation3 + $0x100] sm:$0x8] %v3513
      %v3515 = vld [vmem:[#allocation3 + $0x110] sm:$0x8]
      %v3516 = vsel %vm3463, 0, %v3515
      %3517 = vst [vmem:[#allocation3 + $0x110] sm:$0x8] %v3516
      %vm3518 = vcmask 1040384
      %vm3519 = vmand %vm3518, %vm316
      %v3520 = vld [vmem:[#allocation3 + $0xc] sm:$0x1]
      %v3521 = vsel %vm3519, 0, %v3520
      %3522 = vst [vmem:[#allocation3 + $0xc] sm:$0x1] %v3521
      %v3523 = vld [vmem:[#allocation3 + $0x1c] sm:$0x1]
      %v3524 = vsel %vm3519, 0, %v3523
      %3525 = vst [vmem:[#allocation3 + $0x1c] sm:$0x1] %v3524
      %v3526 = vld [vmem:[#allocation3 + $0x2c] sm:$0x1]
      %v3527 = vsel %vm3519, 0, %v3526
      %3528 = vst [vmem:[#allocation3 + $0x2c] sm:$0x1] %v3527
      %v3529 = vld [vmem:[#allocation3 + $0x3c] sm:$0x1]
      %v3530 = vsel %vm3519, 0, %v3529
      %3531 = vst [vmem:[#allocation3 + $0x3c] sm:$0x1] %v3530
      %v3532 = vld [vmem:[#allocation3 + $0x4c] sm:$0x1]
      %v3533 = vsel %vm3519, 0, %v3532
      %3534 = vst [vmem:[#allocation3 + $0x4c] sm:$0x1] %v3533
      %v3535 = vld [vmem:[#allocation3 + $0x5c] sm:$0x1]
      %v3536 = vsel %vm3519, 0, %v3535
      %3537 = vst [vmem:[#allocation3 + $0x5c] sm:$0x1] %v3536
      %v3538 = vld [vmem:[#allocation3 + $0x6c] sm:$0x1]
      %v3539 = vsel %vm3519, 0, %v3538
      %3540 = vst [vmem:[#allocation3 + $0x6c] sm:$0x1] %v3539
      %v3541 = vld [vmem:[#allocation3 + $0x7c] sm:$0x1]
      %v3542 = vsel %vm3519, 0, %v3541
      %3543 = vst [vmem:[#allocation3 + $0x7c] sm:$0x1] %v3542
      %v3544 = vld [vmem:[#allocation3 + $0x8c] sm:$0x1]
      %v3545 = vsel %vm3519, 0, %v3544
      %3546 = vst [vmem:[#allocation3 + $0x8c] sm:$0x1] %v3545
      %v3547 = vld [vmem:[#allocation3 + $0x9c] sm:$0x1]
      %v3548 = vsel %vm3519, 0, %v3547
      %3549 = vst [vmem:[#allocation3 + $0x9c] sm:$0x1] %v3548
      %v3550 = vld [vmem:[#allocation3 + $0xac] sm:$0x1]
      %v3551 = vsel %vm3519, 0, %v3550
      %3552 = vst [vmem:[#allocation3 + $0xac] sm:$0x1] %v3551
      %v3553 = vld [vmem:[#allocation3 + $0xbc] sm:$0x1]
      %v3554 = vsel %vm3519, 0, %v3553
      %3555 = vst [vmem:[#allocation3 + $0xbc] sm:$0x1] %v3554
      %v3556 = vld [vmem:[#allocation3 + $0xcc] sm:$0x1]
      %v3557 = vsel %vm3519, 0, %v3556
      %3558 = vst [vmem:[#allocation3 + $0xcc] sm:$0x1] %v3557
      %v3559 = vld [vmem:[#allocation3 + $0xdc] sm:$0x1]
      %v3560 = vsel %vm3519, 0, %v3559
      %3561 = vst [vmem:[#allocation3 + $0xdc] sm:$0x1] %v3560
      %v3562 = vld [vmem:[#allocation3 + $0xec] sm:$0x1]
      %v3563 = vsel %vm3519, 0, %v3562
      %3564 = vst [vmem:[#allocation3 + $0xec] sm:$0x1] %v3563
      %v3565 = vld [vmem:[#allocation3 + $0xfc] sm:$0x1]
      %v3566 = vsel %vm3519, 0, %v3565
      %3567 = vst [vmem:[#allocation3 + $0xfc] sm:$0x1] %v3566
      %v3568 = vld [vmem:[#allocation3 + $0x10c] sm:$0x1]
      %v3569 = vsel %vm3519, 0, %v3568
      %3570 = vst [vmem:[#allocation3 + $0x10c] sm:$0x1] %v3569
      %v3571 = vld [vmem:[#allocation3 + $0x11c] sm:$0x1]
      %v3572 = vsel %vm3519, 0, %v3571
      %3573 = vst [vmem:[#allocation3 + $0x11c] sm:$0x1] %v3572
      %v3574 = vpack.c.bf16 %v3426, %v3426
      %v3575 = vpack.c.bf16 %v3427, %v3427
      %v3576 = vpack.c.bf16 %v3428, %v3428
      %v3577 = vpack.c.bf16 %v3429, %v3429
      %v3578 = vpack.c.bf16 %v3430, %v3430
      %v3579 = vpack.c.bf16 %v3431, %v3431
      %v3580 = vpack.c.bf16 %v3432, %v3432
      %v3581 = vpack.c.bf16 %v3433, %v3433
      %v3582 = vpack.c.bf16 %v3434, %v3434
      %v3583 = vpack.c.bf16 %v3435, %v3435
      %v3584 = vpack.c.bf16 %v3436, %v3436
      %v3585 = vpack.c.bf16 %v3437, %v3437
      %v3586 = vpack.c.bf16 %v3438, %v3438
      %v3587 = vpack.c.bf16 %v3439, %v3439
      %v3588 = vpack.c.bf16 %v3440, %v3440
      %v3589 = vpack.c.bf16 %v3441, %v3441
      %v3590 = vpack.c.bf16 %v3442, %v3442
      %v3591 = vpack.c.bf16 %v3443, %v3443
      %v3592 = vpack.c.bf16 %v3444, %v3444
      %v3593 = vpack.c.bf16 %v3445, %v3445
      %v3594 = vpack.c.bf16 %v3446, %v3446
      %v3595 = vpack.c.bf16 %v3447, %v3447
      %v3596 = vpack.c.bf16 %v3448, %v3448
      %v3597 = vpack.c.bf16 %v3449, %v3449
      %v3598 = vpack.c.bf16 %v3450, %v3450
      %v3599 = vpack.c.bf16 %v3451, %v3451
      %v3600 = vpack.c.bf16 %v3452, %v3452
      %v3601 = vpack.c.bf16 %v3453, %v3453
      %v3602 = vpack.c.bf16 %v3454, %v3454
      %v3603 = vpack.c.bf16 %v3455, %v3455
      %v3604 = vpack.c.bf16 %v3456, %v3456
      %v3605 = vpack.c.bf16 %v3457, %v3457
      %v3606 = vpack.c.bf16 %v3458, %v3458
      %v3607 = vpack.c.bf16 %v3459, %v3459
      %v3608 = vpack.c.bf16 %v3460, %v3460
      %v3609 = vpack.c.bf16 %v3461, %v3461
      %3610 = vst [vmem:[#allocation3 + $0x4] sm:$0xf] %v3574
      %3611 = vst [vmem:[#allocation3 + $0x8] sm:$0xf] %v3575
      %3612 = vst [vmem:[#allocation3 + $0x14] sm:$0xf] %v3576
      %3613 = vst [vmem:[#allocation3 + $0x18] sm:$0xf] %v3577
      %3614 = vst [vmem:[#allocation3 + $0x24] sm:$0xf] %v3578
      %3615 = vst [vmem:[#allocation3 + $0x28] sm:$0xf] %v3579
      %3616 = vst [vmem:[#allocation3 + $0x34] sm:$0xf] %v3580
      %3617 = vst [vmem:[#allocation3 + $0x38] sm:$0xf] %v3581
      %3618 = vst [vmem:[#allocation3 + $0x44] sm:$0xf] %v3582
      %3619 = vst [vmem:[#allocation3 + $0x48] sm:$0xf] %v3583
      %3620 = vst [vmem:[#allocation3 + $0x54] sm:$0xf] %v3584
      %3621 = vst [vmem:[#allocation3 + $0x58] sm:$0xf] %v3585
      %3622 = vst [vmem:[#allocation3 + $0x64] sm:$0xf] %v3586
      %3623 = vst [vmem:[#allocation3 + $0x68] sm:$0xf] %v3587
      %3624 = vst [vmem:[#allocation3 + $0x74] sm:$0xf] %v3588
      %3625 = vst [vmem:[#allocation3 + $0x78] sm:$0xf] %v3589
      %3626 = vst [vmem:[#allocation3 + $0x84] sm:$0xf] %v3590
      %3627 = vst [vmem:[#allocation3 + $0x88] sm:$0xf] %v3591
      %3628 = vst [vmem:[#allocation3 + $0x94] sm:$0xf] %v3592
      %3629 = vst [vmem:[#allocation3 + $0x98] sm:$0xf] %v3593
      %3630 = vst [vmem:[#allocation3 + $0xa4] sm:$0xf] %v3594
      %3631 = vst [vmem:[#allocation3 + $0xa8] sm:$0xf] %v3595
      %3632 = vst [vmem:[#allocation3 + $0xb4] sm:$0xf] %v3596
      %3633 = vst [vmem:[#allocation3 + $0xb8] sm:$0xf] %v3597
      %3634 = vst [vmem:[#allocation3 + $0xc4] sm:$0xf] %v3598
      %3635 = vst [vmem:[#allocation3 + $0xc8] sm:$0xf] %v3599
      %3636 = vst [vmem:[#allocation3 + $0xd4] sm:$0xf] %v3600
      %3637 = vst [vmem:[#allocation3 + $0xd8] sm:$0xf] %v3601
      %3638 = vst [vmem:[#allocation3 + $0xe4] sm:$0xf] %v3602
      %3639 = vst [vmem:[#allocation3 + $0xe8] sm:$0xf] %v3603
      %3640 = vst [vmem:[#allocation3 + $0xf4] sm:$0xf] %v3604
      %3641 = vst [vmem:[#allocation3 + $0xf8] sm:$0xf] %v3605
      %3642 = vst [vmem:[#allocation3 + $0x104] sm:$0xf] %v3606
      %3643 = vst [vmem:[#allocation3 + $0x108] sm:$0xf] %v3607
      %3644 = vst [vmem:[#allocation3 + $0x114] sm:$0xf] %v3608
      %3645 = vst [vmem:[#allocation3 + $0x118] sm:$0xf] %v3609
      %p3646 = scmp.eq.s32.totalorder %s21, 0
      // Predicated region
      $region41: #{double_conv.1} parent=39 // pred_check
        %p3647 = pneg %p3646
      $region42: #{double_conv.1} parent=39 // pred_check_branch
        %3649 = sbr.rel (%p3647) target = $region44
      $region43: #{double_conv.1} parent=39 // pred_region
        %3650 = vst [vmem:[#allocation3] sm:$0xf] 0
        %3651 = vst [vmem:[#allocation3 + $0x4] sm:$0xf] 0
        %3652 = vst [vmem:[#allocation3 + $0x8] sm:$0xf] 0
        %v3653 = vld [vmem:[#allocation3 + $0xc] sm:$0x1]
        %v3654 = vsel %vm3519, 0, %v3653
        %3655 = vst [vmem:[#allocation3 + $0xc] sm:$0x1] %v3654
        %s3656 = scalar_lea.vmem [#allocation3], 272
        %3657 = vst [vmem:[%s3656] sm:$0xf] 0
        %3658 = vst [vmem:[%s3656 + $0x4] sm:$0xf] 0
        %3659 = vst [vmem:[%s3656 + $0x8] sm:$0xf] 0
        %v3660 = vld [vmem:[%s3656 + $0xc] sm:$0x1]
        %v3661 = vsel %vm3519, 0, %v3660
        %3662 = vst [vmem:[%s3656 + $0xc] sm:$0x1] %v3661
      $region44: #{double_conv.1} parent=39 // pred_fallthru
        _
      %v3663 = vld [vmem:[#allocation3] sm:$0x8]
      %v3664 = vld [vmem:[#allocation3 + $0x4] sm:$0xf]
      %v3665 = vld [vmem:[#allocation3 + $0x8] sm:$0xf]
      %v3666 = vld [vmem:[#allocation3 + $0x10] sm:$0x8]
      %v3667 = vld [vmem:[#allocation3 + $0x14] sm:$0xf]
      %v3668 = vld [vmem:[#allocation3 + $0x18] sm:$0xf]
      %v3669 = vld [vmem:[#allocation3 + $0x20] sm:$0x8]
      %v3670 = vld [vmem:[#allocation3 + $0x24] sm:$0xf]
      %v3671 = vld [vmem:[#allocation3 + $0x28] sm:$0xf]
      %v3672 = vld [vmem:[#allocation3 + $0x30] sm:$0x8]
      %v3673 = vld [vmem:[#allocation3 + $0x34] sm:$0xf]
      %v3674 = vld [vmem:[#allocation3 + $0x38] sm:$0xf]
      %v3675 = vld [vmem:[#allocation3 + $0x40] sm:$0x8]
      %v3676 = vld [vmem:[#allocation3 + $0x44] sm:$0xf]
      %v3677 = vld [vmem:[#allocation3 + $0x48] sm:$0xf]
      %v3678 = vld [vmem:[#allocation3 + $0x50] sm:$0x8]
      %v3679 = vld [vmem:[#allocation3 + $0x54] sm:$0xf]
      %v3680 = vld [vmem:[#allocation3 + $0x58] sm:$0xf]
      %v3681 = vld [vmem:[#allocation3 + $0x60] sm:$0x8]
      %v3682 = vld [vmem:[#allocation3 + $0x64] sm:$0xf]
      %v3683 = vld [vmem:[#allocation3 + $0x68] sm:$0xf]
      %v3684 = vld [vmem:[#allocation3 + $0x70] sm:$0x8]
      %v3685 = vld [vmem:[#allocation3 + $0x74] sm:$0xf]
      %v3686 = vld [vmem:[#allocation3 + $0x78] sm:$0xf]
      %v3687 = vld [vmem:[#allocation3 + $0x80] sm:$0x8]
      %v3688 = vld [vmem:[#allocation3 + $0x84] sm:$0xf]
      %v3689 = vld [vmem:[#allocation3 + $0x88] sm:$0xf]
      %v3690 = vld [vmem:[#allocation3 + $0x90] sm:$0x8]
      %v3691 = vld [vmem:[#allocation3 + $0x94] sm:$0xf]
      %v3692 = vld [vmem:[#allocation3 + $0x98] sm:$0xf]
      %v3693 = vld [vmem:[#allocation3 + $0xa0] sm:$0x8]
      %v3694 = vld [vmem:[#allocation3 + $0xa4] sm:$0xf]
      %v3695 = vld [vmem:[#allocation3 + $0xa8] sm:$0xf]
      %v3696 = vld [vmem:[#allocation3 + $0xb0] sm:$0x8]
      %v3697 = vld [vmem:[#allocation3 + $0xb4] sm:$0xf]
      %v3698 = vld [vmem:[#allocation3 + $0xb8] sm:$0xf]
      %v3699 = vld [vmem:[#allocation3 + $0xc0] sm:$0x8]
      %v3700 = vld [vmem:[#allocation3 + $0xc4] sm:$0xf]
      %v3701 = vld [vmem:[#allocation3 + $0xc8] sm:$0xf]
      %v3702 = vld [vmem:[#allocation3 + $0xd0] sm:$0x8]
      %v3703 = vld [vmem:[#allocation3 + $0xd4] sm:$0xf]
      %v3704 = vld [vmem:[#allocation3 + $0xd8] sm:$0xf]
      %v3705 = vld [vmem:[#allocation3 + $0xe0] sm:$0x8]
      %v3706 = vld [vmem:[#allocation3 + $0xe4] sm:$0xf]
      %v3707 = vld [vmem:[#allocation3 + $0xe8] sm:$0xf]
      %v3708 = vld [vmem:[#allocation3 + $0xf0] sm:$0x8]
      %v3709 = vld [vmem:[#allocation3 + $0xf4] sm:$0xf]
      %v3710 = vld [vmem:[#allocation3 + $0xf8] sm:$0xf]
      %v3711 = vld [vmem:[#allocation3 + $0x100] sm:$0x8]
      %v3712 = vld [vmem:[#allocation3 + $0x104] sm:$0xf]
      %v3713 = vld [vmem:[#allocation3 + $0x108] sm:$0xf]
      %v3714 = vld [vmem:[#allocation3 + $0x110] sm:$0x8]
      %v3715 = vld [vmem:[#allocation3 + $0x114] sm:$0xf]
      %v3716 = vld [vmem:[#allocation3 + $0x118] sm:$0xf]
      %v3717 = vld [vmem:[#allocation3 + $0xc] sm:$0x1]
      %v3718 = vld [vmem:[#allocation3 + $0x1c] sm:$0x1]
      %v3719 = vld [vmem:[#allocation3 + $0x2c] sm:$0x1]
      %v3720 = vld [vmem:[#allocation3 + $0x3c] sm:$0x1]
      %v3721 = vld [vmem:[#allocation3 + $0x4c] sm:$0x1]
      %v3722 = vld [vmem:[#allocation3 + $0x5c] sm:$0x1]
      %v3723 = vld [vmem:[#allocation3 + $0x6c] sm:$0x1]
      %v3724 = vld [vmem:[#allocation3 + $0x7c] sm:$0x1]
      %v3725 = vld [vmem:[#allocation3 + $0x8c] sm:$0x1]
      %v3726 = vld [vmem:[#allocation3 + $0x9c] sm:$0x1]
      %v3727 = vld [vmem:[#allocation3 + $0xac] sm:$0x1]
      %v3728 = vld [vmem:[#allocation3 + $0xbc] sm:$0x1]
      %v3729 = vld [vmem:[#allocation3 + $0xcc] sm:$0x1]
      %v3730 = vld [vmem:[#allocation3 + $0xdc] sm:$0x1]
      %v3731 = vld [vmem:[#allocation3 + $0xec] sm:$0x1]
      %v3732 = vld [vmem:[#allocation3 + $0xfc] sm:$0x1]
      %v3733 = vld [vmem:[#allocation3 + $0x10c] sm:$0x1]
      %v3734 = vld [vmem:[#allocation3 + $0x11c] sm:$0x1]
      %v3789 = vunpack.c.l.b16 %v3663
      %v3790 = vunpack.c.l.b16 %v3664
      %v3791 = vunpack.c.l.b16 %v3665
      %v3792 = vunpack.c.l.b16 %v3666
      %v3793 = vunpack.c.l.b16 %v3667
      %v3794 = vunpack.c.l.b16 %v3668
      %v3795 = vunpack.c.l.b16 %v3669
      %v3796 = vunpack.c.l.b16 %v3670
      %v3797 = vunpack.c.l.b16 %v3671
      %v3798 = vunpack.c.l.b16 %v3672
      %v3799 = vunpack.c.l.b16 %v3673
      %v3800 = vunpack.c.l.b16 %v3674
      %v3801 = vunpack.c.l.b16 %v3675
      %v3802 = vunpack.c.l.b16 %v3676
      %v3803 = vunpack.c.l.b16 %v3677
      %v3804 = vunpack.c.l.b16 %v3678
      %v3805 = vunpack.c.l.b16 %v3679
      %v3806 = vunpack.c.l.b16 %v3680
      %v3807 = vunpack.c.l.b16 %v3681
      %v3808 = vunpack.c.l.b16 %v3682
      %v3809 = vunpack.c.l.b16 %v3683
      %v3810 = vunpack.c.l.b16 %v3684
      %v3811 = vunpack.c.l.b16 %v3685
      %v3812 = vunpack.c.l.b16 %v3686
      %v3813 = vunpack.c.l.b16 %v3687
      %v3814 = vunpack.c.l.b16 %v3688
      %v3815 = vunpack.c.l.b16 %v3689
      %v3816 = vunpack.c.l.b16 %v3690
      %v3817 = vunpack.c.l.b16 %v3691
      %v3818 = vunpack.c.l.b16 %v3692
      %v3819 = vunpack.c.l.b16 %v3693
      %v3820 = vunpack.c.l.b16 %v3694
      %v3821 = vunpack.c.l.b16 %v3695
      %v3822 = vunpack.c.l.b16 %v3696
      %v3823 = vunpack.c.l.b16 %v3697
      %v3824 = vunpack.c.l.b16 %v3698
      %v3825 = vunpack.c.l.b16 %v3699
      %v3826 = vunpack.c.l.b16 %v3700
      %v3827 = vunpack.c.l.b16 %v3701
      %v3828 = vunpack.c.l.b16 %v3702
      %v3829 = vunpack.c.l.b16 %v3703
      %v3830 = vunpack.c.l.b16 %v3704
      %v3831 = vunpack.c.l.b16 %v3705
      %v3832 = vunpack.c.l.b16 %v3706
      %v3833 = vunpack.c.l.b16 %v3707
      %v3834 = vunpack.c.l.b16 %v3708
      %v3835 = vunpack.c.l.b16 %v3709
      %v3836 = vunpack.c.l.b16 %v3710
      %v3837 = vunpack.c.l.b16 %v3711
      %v3838 = vunpack.c.l.b16 %v3712
      %v3839 = vunpack.c.l.b16 %v3713
      %v3840 = vunpack.c.l.b16 %v3714
      %v3841 = vunpack.c.l.b16 %v3715
      %v3842 = vunpack.c.l.b16 %v3716
      %v3843 = vpack.c.b16 %v3790, %v3789
      %v3844 = vpack.c.b16 %v3791, %v3791
      %v3845 = vpack.c.b16 %v3793, %v3792
      %v3846 = vpack.c.b16 %v3794, %v3794
      %v3847 = vpack.c.b16 %v3796, %v3795
      %v3848 = vpack.c.b16 %v3797, %v3797
      %v3849 = vpack.c.b16 %v3799, %v3798
      %v3850 = vpack.c.b16 %v3800, %v3800
      %v3851 = vpack.c.b16 %v3802, %v3801
      %v3852 = vpack.c.b16 %v3803, %v3803
      %v3853 = vpack.c.b16 %v3805, %v3804
      %v3854 = vpack.c.b16 %v3806, %v3806
      %v3855 = vpack.c.b16 %v3808, %v3807
      %v3856 = vpack.c.b16 %v3809, %v3809
      %v3857 = vpack.c.b16 %v3811, %v3810
      %v3858 = vpack.c.b16 %v3812, %v3812
      %v3859 = vpack.c.b16 %v3814, %v3813
      %v3860 = vpack.c.b16 %v3815, %v3815
      %v3861 = vpack.c.b16 %v3817, %v3816
      %v3862 = vpack.c.b16 %v3818, %v3818
      %v3863 = vpack.c.b16 %v3820, %v3819
      %v3864 = vpack.c.b16 %v3821, %v3821
      %v3865 = vpack.c.b16 %v3823, %v3822
      %v3866 = vpack.c.b16 %v3824, %v3824
      %v3867 = vpack.c.b16 %v3826, %v3825
      %v3868 = vpack.c.b16 %v3827, %v3827
      %v3869 = vpack.c.b16 %v3829, %v3828
      %v3870 = vpack.c.b16 %v3830, %v3830
      %v3871 = vpack.c.b16 %v3832, %v3831
      %v3872 = vpack.c.b16 %v3833, %v3833
      %v3873 = vpack.c.b16 %v3835, %v3834
      %v3874 = vpack.c.b16 %v3836, %v3836
      %v3875 = vpack.c.b16 %v3838, %v3837
      %v3876 = vpack.c.b16 %v3839, %v3839
      %v3877 = vpack.c.b16 %v3841, %v3840
      %v3878 = vpack.c.b16 %v3842, %v3842
      %v3879 = vpack.c.b16 %v3791, %v3790
      %v3880 = vpack.c.b16 %v3794, %v3793
      %v3881 = vpack.c.b16 %v3797, %v3796
      %v3882 = vpack.c.b16 %v3800, %v3799
      %v3883 = vpack.c.b16 %v3803, %v3802
      %v3884 = vpack.c.b16 %v3806, %v3805
      %v3885 = vpack.c.b16 %v3809, %v3808
      %v3886 = vpack.c.b16 %v3812, %v3811
      %v3887 = vpack.c.b16 %v3815, %v3814
      %v3888 = vpack.c.b16 %v3818, %v3817
      %v3889 = vpack.c.b16 %v3821, %v3820
      %v3890 = vpack.c.b16 %v3824, %v3823
      %v3891 = vpack.c.b16 %v3827, %v3826
      %v3892 = vpack.c.b16 %v3830, %v3829
      %v3893 = vpack.c.b16 %v3833, %v3832
      %v3894 = vpack.c.b16 %v3836, %v3835
      %v3895 = vpack.c.b16 %v3839, %v3838
      %v3896 = vpack.c.b16 %v3842, %v3841
      %v3898 = vshrl.u32 %v3879, 16
      %v3900 = vrot.slane %v3898, 4
      %v3901 = vshll.u32 %v3879, 16
      %v3903 = vrot.slane %v3901, 5
      %v3904 = vor.u32 %v3900, %v3903
      %v3906 = vshrl.u32 %v3880, 16
      %v3908 = vrot.slane %v3906, 4
      %v3909 = vshll.u32 %v3880, 16
      %v3911 = vrot.slane %v3909, 5
      %v3912 = vor.u32 %v3908, %v3911
      %v3914 = vshrl.u32 %v3881, 16
      %v3916 = vrot.slane %v3914, 4
      %v3917 = vshll.u32 %v3881, 16
      %v3919 = vrot.slane %v3917, 5
      %v3920 = vor.u32 %v3916, %v3919
      %v3922 = vshrl.u32 %v3882, 16
      %v3924 = vrot.slane %v3922, 4
      %v3925 = vshll.u32 %v3882, 16
      %v3927 = vrot.slane %v3925, 5
      %v3928 = vor.u32 %v3924, %v3927
      %v3930 = vshrl.u32 %v3883, 16
      %v3932 = vrot.slane %v3930, 4
      %v3933 = vshll.u32 %v3883, 16
      %v3935 = vrot.slane %v3933, 5
      %v3936 = vor.u32 %v3932, %v3935
      %v3938 = vshrl.u32 %v3884, 16
      %v3940 = vrot.slane %v3938, 4
      %v3941 = vshll.u32 %v3884, 16
      %v3943 = vrot.slane %v3941, 5
      %v3944 = vor.u32 %v3940, %v3943
      %v3946 = vshrl.u32 %v3885, 16
      %v3948 = vrot.slane %v3946, 4
      %v3949 = vshll.u32 %v3885, 16
      %v3951 = vrot.slane %v3949, 5
      %v3952 = vor.u32 %v3948, %v3951
      %v3954 = vshrl.u32 %v3886, 16
      %v3956 = vrot.slane %v3954, 4
      %v3957 = vshll.u32 %v3886, 16
      %v3959 = vrot.slane %v3957, 5
      %v3960 = vor.u32 %v3956, %v3959
      %v3962 = vshrl.u32 %v3887, 16
      %v3964 = vrot.slane %v3962, 4
      %v3965 = vshll.u32 %v3887, 16
      %v3967 = vrot.slane %v3965, 5
      %v3968 = vor.u32 %v3964, %v3967
      %v3970 = vshrl.u32 %v3888, 16
      %v3972 = vrot.slane %v3970, 4
      %v3973 = vshll.u32 %v3888, 16
      %v3975 = vrot.slane %v3973, 5
      %v3976 = vor.u32 %v3972, %v3975
      %v3978 = vshrl.u32 %v3889, 16
      %v3980 = vrot.slane %v3978, 4
      %v3981 = vshll.u32 %v3889, 16
      %v3983 = vrot.slane %v3981, 5
      %v3984 = vor.u32 %v3980, %v3983
      %v3986 = vshrl.u32 %v3890, 16
      %v3988 = vrot.slane %v3986, 4
      %v3989 = vshll.u32 %v3890, 16
      %v3991 = vrot.slane %v3989, 5
      %v3992 = vor.u32 %v3988, %v3991
      %v3994 = vshrl.u32 %v3891, 16
      %v3996 = vrot.slane %v3994, 4
      %v3997 = vshll.u32 %v3891, 16
      %v3999 = vrot.slane %v3997, 5
      %v4000 = vor.u32 %v3996, %v3999
      %v4002 = vshrl.u32 %v3892, 16
      %v4004 = vrot.slane %v4002, 4
      %v4005 = vshll.u32 %v3892, 16
      %v4007 = vrot.slane %v4005, 5
      %v4008 = vor.u32 %v4004, %v4007
      %v4010 = vshrl.u32 %v3893, 16
      %v4012 = vrot.slane %v4010, 4
      %v4013 = vshll.u32 %v3893, 16
      %v4015 = vrot.slane %v4013, 5
      %v4016 = vor.u32 %v4012, %v4015
      %v4018 = vshrl.u32 %v3894, 16
      %v4020 = vrot.slane %v4018, 4
      %v4021 = vshll.u32 %v3894, 16
      %v4023 = vrot.slane %v4021, 5
      %v4024 = vor.u32 %v4020, %v4023
      %v4026 = vshrl.u32 %v3895, 16
      %v4028 = vrot.slane %v4026, 4
      %v4029 = vshll.u32 %v3895, 16
      %v4031 = vrot.slane %v4029, 5
      %v4032 = vor.u32 %v4028, %v4031
      %v4034 = vshrl.u32 %v3896, 16
      %v4036 = vrot.slane %v4034, 4
      %v4037 = vshll.u32 %v3896, 16
      %v4039 = vrot.slane %v4037, 5
      %v4040 = vor.u32 %v4036, %v4039
      %v4059 = vunpack.c.l.b16 %v3717
      %v4060 = vunpack.c.l.b16 %v3718
      %v4061 = vunpack.c.l.b16 %v3719
      %v4062 = vunpack.c.l.b16 %v3720
      %v4063 = vunpack.c.l.b16 %v3721
      %v4064 = vunpack.c.l.b16 %v3722
      %v4065 = vunpack.c.l.b16 %v3723
      %v4066 = vunpack.c.l.b16 %v3724
      %v4067 = vunpack.c.l.b16 %v3725
      %v4068 = vunpack.c.l.b16 %v3726
      %v4069 = vunpack.c.l.b16 %v3727
      %v4070 = vunpack.c.l.b16 %v3728
      %v4071 = vunpack.c.l.b16 %v3729
      %v4072 = vunpack.c.l.b16 %v3730
      %v4073 = vunpack.c.l.b16 %v3731
      %v4074 = vunpack.c.l.b16 %v3732
      %v4075 = vunpack.c.l.b16 %v3733
      %v4076 = vunpack.c.l.b16 %v3734
      %v4077 = vpack.c.b16 %v4059, %v4059
      %v4078 = vpack.c.b16 %v4060, %v4060
      %v4079 = vpack.c.b16 %v4061, %v4061
      %v4080 = vpack.c.b16 %v4062, %v4062
      %v4081 = vpack.c.b16 %v4063, %v4063
      %v4082 = vpack.c.b16 %v4064, %v4064
      %v4083 = vpack.c.b16 %v4065, %v4065
      %v4084 = vpack.c.b16 %v4066, %v4066
      %v4085 = vpack.c.b16 %v4067, %v4067
      %v4086 = vpack.c.b16 %v4068, %v4068
      %v4087 = vpack.c.b16 %v4069, %v4069
      %v4088 = vpack.c.b16 %v4070, %v4070
      %v4089 = vpack.c.b16 %v4071, %v4071
      %v4090 = vpack.c.b16 %v4072, %v4072
      %v4091 = vpack.c.b16 %v4073, %v4073
      %v4092 = vpack.c.b16 %v4074, %v4074
      %v4093 = vpack.c.b16 %v4075, %v4075
      %v4094 = vpack.c.b16 %v4076, %v4076
      %v4095 = vrot.slane %v3879, 5
      %v4096 = vrot.slane %v4077, 5
      %v4097 = vsel %vm1076, %v4095, %v4096
      %v4098 = vrot.slane %v3880, 5
      %v4099 = vrot.slane %v4078, 5
      %v4100 = vsel %vm1076, %v4098, %v4099
      %v4101 = vrot.slane %v3881, 5
      %v4102 = vrot.slane %v4079, 5
      %v4103 = vsel %vm1076, %v4101, %v4102
      %v4104 = vrot.slane %v3882, 5
      %v4105 = vrot.slane %v4080, 5
      %v4106 = vsel %vm1076, %v4104, %v4105
      %v4107 = vrot.slane %v3883, 5
      %v4108 = vrot.slane %v4081, 5
      %v4109 = vsel %vm1076, %v4107, %v4108
      %v4110 = vrot.slane %v3884, 5
      %v4111 = vrot.slane %v4082, 5
      %v4112 = vsel %vm1076, %v4110, %v4111
      %v4113 = vrot.slane %v3885, 5
      %v4114 = vrot.slane %v4083, 5
      %v4115 = vsel %vm1076, %v4113, %v4114
      %v4116 = vrot.slane %v3886, 5
      %v4117 = vrot.slane %v4084, 5
      %v4118 = vsel %vm1076, %v4116, %v4117
      %v4119 = vrot.slane %v3887, 5
      %v4120 = vrot.slane %v4085, 5
      %v4121 = vsel %vm1076, %v4119, %v4120
      %v4122 = vrot.slane %v3888, 5
      %v4123 = vrot.slane %v4086, 5
      %v4124 = vsel %vm1076, %v4122, %v4123
      %v4125 = vrot.slane %v3889, 5
      %v4126 = vrot.slane %v4087, 5
      %v4127 = vsel %vm1076, %v4125, %v4126
      %v4128 = vrot.slane %v3890, 5
      %v4129 = vrot.slane %v4088, 5
      %v4130 = vsel %vm1076, %v4128, %v4129
      %v4131 = vrot.slane %v3891, 5
      %v4132 = vrot.slane %v4089, 5
      %v4133 = vsel %vm1076, %v4131, %v4132
      %v4134 = vrot.slane %v3892, 5
      %v4135 = vrot.slane %v4090, 5
      %v4136 = vsel %vm1076, %v4134, %v4135
      %v4137 = vrot.slane %v3893, 5
      %v4138 = vrot.slane %v4091, 5
      %v4139 = vsel %vm1076, %v4137, %v4138
      %v4140 = vrot.slane %v3894, 5
      %v4141 = vrot.slane %v4092, 5
      %v4142 = vsel %vm1076, %v4140, %v4141
      %v4143 = vrot.slane %v3895, 5
      %v4144 = vrot.slane %v4093, 5
      %v4145 = vsel %vm1076, %v4143, %v4144
      %v4146 = vrot.slane %v3896, 5
      %v4147 = vrot.slane %v4094, 5
      %v4148 = vsel %vm1076, %v4146, %v4147
      %v4150 = vshrl.u32 %v3843, 16
      %v4152 = vrot.slane %v4150, 3
      %v4153 = vshll.u32 %v3843, 16
      %v4155 = vrot.slane %v4153, 4
      %v4156 = vor.u32 %v4152, %v4155
      %v4158 = vshrl.u32 %v3844, 16
      %v4160 = vrot.slane %v4158, 3
      %v4161 = vshll.u32 %v3844, 16
      %v4163 = vrot.slane %v4161, 4
      %v4164 = vor.u32 %v4160, %v4163
      %v4165 = vsel %vm2957, %v4156, %v4164
      %v4167 = vshrl.u32 %v3904, 16
      %v4169 = vrot.slane %v4167, 3
      %v4170 = vshll.u32 %v3904, 16
      %v4172 = vrot.slane %v4170, 4
      %v4173 = vor.u32 %v4169, %v4172
      %v4174 = vsel %vm2957, %v4173, %v4173
      %v4176 = vshrl.u32 %v4095, 16
      %v4178 = vrot.slane %v4176, 3
      %v4179 = vshll.u32 %v4095, 16
      %v4181 = vrot.slane %v4179, 4
      %v4182 = vor.u32 %v4178, %v4181
      %v4184 = vshrl.u32 %v4097, 16
      %v4186 = vrot.slane %v4184, 3
      %v4187 = vshll.u32 %v4097, 16
      %v4189 = vrot.slane %v4187, 4
      %v4190 = vor.u32 %v4186, %v4189
      %v4191 = vsel %vm2957, %v4182, %v4190
      %v4193 = vshrl.u32 %v3845, 16
      %v4195 = vrot.slane %v4193, 3
      %v4196 = vshll.u32 %v3845, 16
      %v4198 = vrot.slane %v4196, 4
      %v4199 = vor.u32 %v4195, %v4198
      %v4201 = vshrl.u32 %v3846, 16
      %v4203 = vrot.slane %v4201, 3
      %v4204 = vshll.u32 %v3846, 16
      %v4206 = vrot.slane %v4204, 4
      %v4207 = vor.u32 %v4203, %v4206
      %v4208 = vsel %vm2957, %v4199, %v4207
      %v4210 = vshrl.u32 %v3912, 16
      %v4212 = vrot.slane %v4210, 3
      %v4213 = vshll.u32 %v3912, 16
      %v4215 = vrot.slane %v4213, 4
      %v4216 = vor.u32 %v4212, %v4215
      %v4217 = vsel %vm2957, %v4216, %v4216
      %v4219 = vshrl.u32 %v4098, 16
      %v4221 = vrot.slane %v4219, 3
      %v4222 = vshll.u32 %v4098, 16
      %v4224 = vrot.slane %v4222, 4
      %v4225 = vor.u32 %v4221, %v4224
      %v4227 = vshrl.u32 %v4100, 16
      %v4229 = vrot.slane %v4227, 3
      %v4230 = vshll.u32 %v4100, 16
      %v4232 = vrot.slane %v4230, 4
      %v4233 = vor.u32 %v4229, %v4232
      %v4234 = vsel %vm2957, %v4225, %v4233
      %v4236 = vshrl.u32 %v3847, 16
      %v4238 = vrot.slane %v4236, 3
      %v4239 = vshll.u32 %v3847, 16
      %v4241 = vrot.slane %v4239, 4
      %v4242 = vor.u32 %v4238, %v4241
      %v4244 = vshrl.u32 %v3848, 16
      %v4246 = vrot.slane %v4244, 3
      %v4247 = vshll.u32 %v3848, 16
      %v4249 = vrot.slane %v4247, 4
      %v4250 = vor.u32 %v4246, %v4249
      %v4251 = vsel %vm2957, %v4242, %v4250
      %v4253 = vshrl.u32 %v3920, 16
      %v4255 = vrot.slane %v4253, 3
      %v4256 = vshll.u32 %v3920, 16
      %v4258 = vrot.slane %v4256, 4
      %v4259 = vor.u32 %v4255, %v4258
      %v4260 = vsel %vm2957, %v4259, %v4259
      %v4262 = vshrl.u32 %v4101, 16
      %v4264 = vrot.slane %v4262, 3
      %v4265 = vshll.u32 %v4101, 16
      %v4267 = vrot.slane %v4265, 4
      %v4268 = vor.u32 %v4264, %v4267
      %v4270 = vshrl.u32 %v4103, 16
      %v4272 = vrot.slane %v4270, 3
      %v4273 = vshll.u32 %v4103, 16
      %v4275 = vrot.slane %v4273, 4
      %v4276 = vor.u32 %v4272, %v4275
      %v4277 = vsel %vm2957, %v4268, %v4276
      %v4279 = vshrl.u32 %v3849, 16
      %v4281 = vrot.slane %v4279, 3
      %v4282 = vshll.u32 %v3849, 16
      %v4284 = vrot.slane %v4282, 4
      %v4285 = vor.u32 %v4281, %v4284
      %v4287 = vshrl.u32 %v3850, 16
      %v4289 = vrot.slane %v4287, 3
      %v4290 = vshll.u32 %v3850, 16
      %v4292 = vrot.slane %v4290, 4
      %v4293 = vor.u32 %v4289, %v4292
      %v4294 = vsel %vm2957, %v4285, %v4293
      %v4296 = vshrl.u32 %v3928, 16
      %v4298 = vrot.slane %v4296, 3
      %v4299 = vshll.u32 %v3928, 16
      %v4301 = vrot.slane %v4299, 4
      %v4302 = vor.u32 %v4298, %v4301
      %v4303 = vsel %vm2957, %v4302, %v4302
      %v4305 = vshrl.u32 %v4104, 16
      %v4307 = vrot.slane %v4305, 3
      %v4308 = vshll.u32 %v4104, 16
      %v4310 = vrot.slane %v4308, 4
      %v4311 = vor.u32 %v4307, %v4310
      %v4313 = vshrl.u32 %v4106, 16
      %v4315 = vrot.slane %v4313, 3
      %v4316 = vshll.u32 %v4106, 16
      %v4318 = vrot.slane %v4316, 4
      %v4319 = vor.u32 %v4315, %v4318
      %v4320 = vsel %vm2957, %v4311, %v4319
      %v4322 = vshrl.u32 %v3851, 16
      %v4324 = vrot.slane %v4322, 3
      %v4325 = vshll.u32 %v3851, 16
      %v4327 = vrot.slane %v4325, 4
      %v4328 = vor.u32 %v4324, %v4327
      %v4330 = vshrl.u32 %v3852, 16
      %v4332 = vrot.slane %v4330, 3
      %v4333 = vshll.u32 %v3852, 16
      %v4335 = vrot.slane %v4333, 4
      %v4336 = vor.u32 %v4332, %v4335
      %v4337 = vsel %vm2957, %v4328, %v4336
      %v4339 = vshrl.u32 %v3936, 16
      %v4341 = vrot.slane %v4339, 3
      %v4342 = vshll.u32 %v3936, 16
      %v4344 = vrot.slane %v4342, 4
      %v4345 = vor.u32 %v4341, %v4344
      %v4346 = vsel %vm2957, %v4345, %v4345
      %v4348 = vshrl.u32 %v4107, 16
      %v4350 = vrot.slane %v4348, 3
      %v4351 = vshll.u32 %v4107, 16
      %v4353 = vrot.slane %v4351, 4
      %v4354 = vor.u32 %v4350, %v4353
      %v4356 = vshrl.u32 %v4109, 16
      %v4358 = vrot.slane %v4356, 3
      %v4359 = vshll.u32 %v4109, 16
      %v4361 = vrot.slane %v4359, 4
      %v4362 = vor.u32 %v4358, %v4361
      %v4363 = vsel %vm2957, %v4354, %v4362
      %v4365 = vshrl.u32 %v3853, 16
      %v4367 = vrot.slane %v4365, 3
      %v4368 = vshll.u32 %v3853, 16
      %v4370 = vrot.slane %v4368, 4
      %v4371 = vor.u32 %v4367, %v4370
      %v4373 = vshrl.u32 %v3854, 16
      %v4375 = vrot.slane %v4373, 3
      %v4376 = vshll.u32 %v3854, 16
      %v4378 = vrot.slane %v4376, 4
      %v4379 = vor.u32 %v4375, %v4378
      %v4380 = vsel %vm2957, %v4371, %v4379
      %v4382 = vshrl.u32 %v3944, 16
      %v4384 = vrot.slane %v4382, 3
      %v4385 = vshll.u32 %v3944, 16
      %v4387 = vrot.slane %v4385, 4
      %v4388 = vor.u32 %v4384, %v4387
      %v4389 = vsel %vm2957, %v4388, %v4388
      %v4391 = vshrl.u32 %v4110, 16
      %v4393 = vrot.slane %v4391, 3
      %v4394 = vshll.u32 %v4110, 16
      %v4396 = vrot.slane %v4394, 4
      %v4397 = vor.u32 %v4393, %v4396
      %v4399 = vshrl.u32 %v4112, 16
      %v4401 = vrot.slane %v4399, 3
      %v4402 = vshll.u32 %v4112, 16
      %v4404 = vrot.slane %v4402, 4
      %v4405 = vor.u32 %v4401, %v4404
      %v4406 = vsel %vm2957, %v4397, %v4405
      %v4408 = vshrl.u32 %v3855, 16
      %v4410 = vrot.slane %v4408, 3
      %v4411 = vshll.u32 %v3855, 16
      %v4413 = vrot.slane %v4411, 4
      %v4414 = vor.u32 %v4410, %v4413
      %v4416 = vshrl.u32 %v3856, 16
      %v4418 = vrot.slane %v4416, 3
      %v4419 = vshll.u32 %v3856, 16
      %v4421 = vrot.slane %v4419, 4
      %v4422 = vor.u32 %v4418, %v4421
      %v4423 = vsel %vm2957, %v4414, %v4422
      %v4425 = vshrl.u32 %v3952, 16
      %v4427 = vrot.slane %v4425, 3
      %v4428 = vshll.u32 %v3952, 16
      %v4430 = vrot.slane %v4428, 4
      %v4431 = vor.u32 %v4427, %v4430
      %v4432 = vsel %vm2957, %v4431, %v4431
      %v4434 = vshrl.u32 %v4113, 16
      %v4436 = vrot.slane %v4434, 3
      %v4437 = vshll.u32 %v4113, 16
      %v4439 = vrot.slane %v4437, 4
      %v4440 = vor.u32 %v4436, %v4439
      %v4442 = vshrl.u32 %v4115, 16
      %v4444 = vrot.slane %v4442, 3
      %v4445 = vshll.u32 %v4115, 16
      %v4447 = vrot.slane %v4445, 4
      %v4448 = vor.u32 %v4444, %v4447
      %v4449 = vsel %vm2957, %v4440, %v4448
      %v4451 = vshrl.u32 %v3857, 16
      %v4453 = vrot.slane %v4451, 3
      %v4454 = vshll.u32 %v3857, 16
      %v4456 = vrot.slane %v4454, 4
      %v4457 = vor.u32 %v4453, %v4456
      %v4459 = vshrl.u32 %v3858, 16
      %v4461 = vrot.slane %v4459, 3
      %v4462 = vshll.u32 %v3858, 16
      %v4464 = vrot.slane %v4462, 4
      %v4465 = vor.u32 %v4461, %v4464
      %v4466 = vsel %vm2957, %v4457, %v4465
      %v4468 = vshrl.u32 %v3960, 16
      %v4470 = vrot.slane %v4468, 3
      %v4471 = vshll.u32 %v3960, 16
      %v4473 = vrot.slane %v4471, 4
      %v4474 = vor.u32 %v4470, %v4473
      %v4475 = vsel %vm2957, %v4474, %v4474
      %v4477 = vshrl.u32 %v4116, 16
      %v4479 = vrot.slane %v4477, 3
      %v4480 = vshll.u32 %v4116, 16
      %v4482 = vrot.slane %v4480, 4
      %v4483 = vor.u32 %v4479, %v4482
      %v4485 = vshrl.u32 %v4118, 16
      %v4487 = vrot.slane %v4485, 3
      %v4488 = vshll.u32 %v4118, 16
      %v4490 = vrot.slane %v4488, 4
      %v4491 = vor.u32 %v4487, %v4490
      %v4492 = vsel %vm2957, %v4483, %v4491
      %v4494 = vshrl.u32 %v3859, 16
      %v4496 = vrot.slane %v4494, 3
      %v4497 = vshll.u32 %v3859, 16
      %v4499 = vrot.slane %v4497, 4
      %v4500 = vor.u32 %v4496, %v4499
      %v4502 = vshrl.u32 %v3860, 16
      %v4504 = vrot.slane %v4502, 3
      %v4505 = vshll.u32 %v3860, 16
      %v4507 = vrot.slane %v4505, 4
      %v4508 = vor.u32 %v4504, %v4507
      %v4509 = vsel %vm2957, %v4500, %v4508
      %v4511 = vshrl.u32 %v3968, 16
      %v4513 = vrot.slane %v4511, 3
      %v4514 = vshll.u32 %v3968, 16
      %v4516 = vrot.slane %v4514, 4
      %v4517 = vor.u32 %v4513, %v4516
      %v4518 = vsel %vm2957, %v4517, %v4517
      %v4520 = vshrl.u32 %v4119, 16
      %v4522 = vrot.slane %v4520, 3
      %v4523 = vshll.u32 %v4119, 16
      %v4525 = vrot.slane %v4523, 4
      %v4526 = vor.u32 %v4522, %v4525
      %v4528 = vshrl.u32 %v4121, 16
      %v4530 = vrot.slane %v4528, 3
      %v4531 = vshll.u32 %v4121, 16
      %v4533 = vrot.slane %v4531, 4
      %v4534 = vor.u32 %v4530, %v4533
      %v4535 = vsel %vm2957, %v4526, %v4534
      %v4537 = vshrl.u32 %v3861, 16
      %v4539 = vrot.slane %v4537, 3
      %v4540 = vshll.u32 %v3861, 16
      %v4542 = vrot.slane %v4540, 4
      %v4543 = vor.u32 %v4539, %v4542
      %v4545 = vshrl.u32 %v3862, 16
      %v4547 = vrot.slane %v4545, 3
      %v4548 = vshll.u32 %v3862, 16
      %v4550 = vrot.slane %v4548, 4
      %v4551 = vor.u32 %v4547, %v4550
      %v4552 = vsel %vm2957, %v4543, %v4551
      %v4554 = vshrl.u32 %v3976, 16
      %v4556 = vrot.slane %v4554, 3
      %v4557 = vshll.u32 %v3976, 16
      %v4559 = vrot.slane %v4557, 4
      %v4560 = vor.u32 %v4556, %v4559
      %v4561 = vsel %vm2957, %v4560, %v4560
      %v4563 = vshrl.u32 %v4122, 16
      %v4565 = vrot.slane %v4563, 3
      %v4566 = vshll.u32 %v4122, 16
      %v4568 = vrot.slane %v4566, 4
      %v4569 = vor.u32 %v4565, %v4568
      %v4571 = vshrl.u32 %v4124, 16
      %v4573 = vrot.slane %v4571, 3
      %v4574 = vshll.u32 %v4124, 16
      %v4576 = vrot.slane %v4574, 4
      %v4577 = vor.u32 %v4573, %v4576
      %v4578 = vsel %vm2957, %v4569, %v4577
      %v4580 = vshrl.u32 %v3863, 16
      %v4582 = vrot.slane %v4580, 3
      %v4583 = vshll.u32 %v3863, 16
      %v4585 = vrot.slane %v4583, 4
      %v4586 = vor.u32 %v4582, %v4585
      %v4588 = vshrl.u32 %v3864, 16
      %v4590 = vrot.slane %v4588, 3
      %v4591 = vshll.u32 %v3864, 16
      %v4593 = vrot.slane %v4591, 4
      %v4594 = vor.u32 %v4590, %v4593
      %v4595 = vsel %vm2957, %v4586, %v4594
      %v4597 = vshrl.u32 %v3984, 16
      %v4599 = vrot.slane %v4597, 3
      %v4600 = vshll.u32 %v3984, 16
      %v4602 = vrot.slane %v4600, 4
      %v4603 = vor.u32 %v4599, %v4602
      %v4604 = vsel %vm2957, %v4603, %v4603
      %v4606 = vshrl.u32 %v4125, 16
      %v4608 = vrot.slane %v4606, 3
      %v4609 = vshll.u32 %v4125, 16
      %v4611 = vrot.slane %v4609, 4
      %v4612 = vor.u32 %v4608, %v4611
      %v4614 = vshrl.u32 %v4127, 16
      %v4616 = vrot.slane %v4614, 3
      %v4617 = vshll.u32 %v4127, 16
      %v4619 = vrot.slane %v4617, 4
      %v4620 = vor.u32 %v4616, %v4619
      %v4621 = vsel %vm2957, %v4612, %v4620
      %v4623 = vshrl.u32 %v3865, 16
      %v4625 = vrot.slane %v4623, 3
      %v4626 = vshll.u32 %v3865, 16
      %v4628 = vrot.slane %v4626, 4
      %v4629 = vor.u32 %v4625, %v4628
      %v4631 = vshrl.u32 %v3866, 16
      %v4633 = vrot.slane %v4631, 3
      %v4634 = vshll.u32 %v3866, 16
      %v4636 = vrot.slane %v4634, 4
      %v4637 = vor.u32 %v4633, %v4636
      %v4638 = vsel %vm2957, %v4629, %v4637
      %v4640 = vshrl.u32 %v3992, 16
      %v4642 = vrot.slane %v4640, 3
      %v4643 = vshll.u32 %v3992, 16
      %v4645 = vrot.slane %v4643, 4
      %v4646 = vor.u32 %v4642, %v4645
      %v4647 = vsel %vm2957, %v4646, %v4646
      %v4649 = vshrl.u32 %v4128, 16
      %v4651 = vrot.slane %v4649, 3
      %v4652 = vshll.u32 %v4128, 16
      %v4654 = vrot.slane %v4652, 4
      %v4655 = vor.u32 %v4651, %v4654
      %v4657 = vshrl.u32 %v4130, 16
      %v4659 = vrot.slane %v4657, 3
      %v4660 = vshll.u32 %v4130, 16
      %v4662 = vrot.slane %v4660, 4
      %v4663 = vor.u32 %v4659, %v4662
      %v4664 = vsel %vm2957, %v4655, %v4663
      %v4666 = vshrl.u32 %v3867, 16
      %v4668 = vrot.slane %v4666, 3
      %v4669 = vshll.u32 %v3867, 16
      %v4671 = vrot.slane %v4669, 4
      %v4672 = vor.u32 %v4668, %v4671
      %v4674 = vshrl.u32 %v3868, 16
      %v4676 = vrot.slane %v4674, 3
      %v4677 = vshll.u32 %v3868, 16
      %v4679 = vrot.slane %v4677, 4
      %v4680 = vor.u32 %v4676, %v4679
      %v4681 = vsel %vm2957, %v4672, %v4680
      %v4683 = vshrl.u32 %v4000, 16
      %v4685 = vrot.slane %v4683, 3
      %v4686 = vshll.u32 %v4000, 16
      %v4688 = vrot.slane %v4686, 4
      %v4689 = vor.u32 %v4685, %v4688
      %v4690 = vsel %vm2957, %v4689, %v4689
      %v4692 = vshrl.u32 %v4131, 16
      %v4694 = vrot.slane %v4692, 3
      %v4695 = vshll.u32 %v4131, 16
      %v4697 = vrot.slane %v4695, 4
      %v4698 = vor.u32 %v4694, %v4697
      %v4700 = vshrl.u32 %v4133, 16
      %v4702 = vrot.slane %v4700, 3
      %v4703 = vshll.u32 %v4133, 16
      %v4705 = vrot.slane %v4703, 4
      %v4706 = vor.u32 %v4702, %v4705
      %v4707 = vsel %vm2957, %v4698, %v4706
      %v4709 = vshrl.u32 %v3869, 16
      %v4711 = vrot.slane %v4709, 3
      %v4712 = vshll.u32 %v3869, 16
      %v4714 = vrot.slane %v4712, 4
      %v4715 = vor.u32 %v4711, %v4714
      %v4717 = vshrl.u32 %v3870, 16
      %v4719 = vrot.slane %v4717, 3
      %v4720 = vshll.u32 %v3870, 16
      %v4722 = vrot.slane %v4720, 4
      %v4723 = vor.u32 %v4719, %v4722
      %v4724 = vsel %vm2957, %v4715, %v4723
      %v4726 = vshrl.u32 %v4008, 16
      %v4728 = vrot.slane %v4726, 3
      %v4729 = vshll.u32 %v4008, 16
      %v4731 = vrot.slane %v4729, 4
      %v4732 = vor.u32 %v4728, %v4731
      %v4733 = vsel %vm2957, %v4732, %v4732
      %v4735 = vshrl.u32 %v4134, 16
      %v4737 = vrot.slane %v4735, 3
      %v4738 = vshll.u32 %v4134, 16
      %v4740 = vrot.slane %v4738, 4
      %v4741 = vor.u32 %v4737, %v4740
      %v4743 = vshrl.u32 %v4136, 16
      %v4745 = vrot.slane %v4743, 3
      %v4746 = vshll.u32 %v4136, 16
      %v4748 = vrot.slane %v4746, 4
      %v4749 = vor.u32 %v4745, %v4748
      %v4750 = vsel %vm2957, %v4741, %v4749
      %v4752 = vshrl.u32 %v3871, 16
      %v4754 = vrot.slane %v4752, 3
      %v4755 = vshll.u32 %v3871, 16
      %v4757 = vrot.slane %v4755, 4
      %v4758 = vor.u32 %v4754, %v4757
      %v4760 = vshrl.u32 %v3872, 16
      %v4762 = vrot.slane %v4760, 3
      %v4763 = vshll.u32 %v3872, 16
      %v4765 = vrot.slane %v4763, 4
      %v4766 = vor.u32 %v4762, %v4765
      %v4767 = vsel %vm2957, %v4758, %v4766
      %v4769 = vshrl.u32 %v4016, 16
      %v4771 = vrot.slane %v4769, 3
      %v4772 = vshll.u32 %v4016, 16
      %v4774 = vrot.slane %v4772, 4
      %v4775 = vor.u32 %v4771, %v4774
      %v4776 = vsel %vm2957, %v4775, %v4775
      %v4778 = vshrl.u32 %v4137, 16
      %v4780 = vrot.slane %v4778, 3
      %v4781 = vshll.u32 %v4137, 16
      %v4783 = vrot.slane %v4781, 4
      %v4784 = vor.u32 %v4780, %v4783
      %v4786 = vshrl.u32 %v4139, 16
      %v4788 = vrot.slane %v4786, 3
      %v4789 = vshll.u32 %v4139, 16
      %v4791 = vrot.slane %v4789, 4
      %v4792 = vor.u32 %v4788, %v4791
      %v4793 = vsel %vm2957, %v4784, %v4792
      %v4795 = vshrl.u32 %v3873, 16
      %v4797 = vrot.slane %v4795, 3
      %v4798 = vshll.u32 %v3873, 16
      %v4800 = vrot.slane %v4798, 4
      %v4801 = vor.u32 %v4797, %v4800
      %v4803 = vshrl.u32 %v3874, 16
      %v4805 = vrot.slane %v4803, 3
      %v4806 = vshll.u32 %v3874, 16
      %v4808 = vrot.slane %v4806, 4
      %v4809 = vor.u32 %v4805, %v4808
      %v4810 = vsel %vm2957, %v4801, %v4809
      %v4812 = vshrl.u32 %v4024, 16
      %v4814 = vrot.slane %v4812, 3
      %v4815 = vshll.u32 %v4024, 16
      %v4817 = vrot.slane %v4815, 4
      %v4818 = vor.u32 %v4814, %v4817
      %v4819 = vsel %vm2957, %v4818, %v4818
      %v4821 = vshrl.u32 %v4140, 16
      %v4823 = vrot.slane %v4821, 3
      %v4824 = vshll.u32 %v4140, 16
      %v4826 = vrot.slane %v4824, 4
      %v4827 = vor.u32 %v4823, %v4826
      %v4829 = vshrl.u32 %v4142, 16
      %v4831 = vrot.slane %v4829, 3
      %v4832 = vshll.u32 %v4142, 16
      %v4834 = vrot.slane %v4832, 4
      %v4835 = vor.u32 %v4831, %v4834
      %v4836 = vsel %vm2957, %v4827, %v4835
      %v4885 = vld [vmem:[%s3] sm:$0xf]
      %v4886 = vld [vmem:[%s3 + $0x4] sm:$0xf]
      %v4887 = vld [vmem:[%s3 + $0x8] sm:$0xf]
      %v4888 = vld [vmem:[%s3 + $0xc] sm:$0xf]
      %v4889 = vld [vmem:[%s3 + $0x10] sm:$0xf]
      %v4890 = vld [vmem:[%s3 + $0x14] sm:$0xf]
      %v4891 = vld [vmem:[%s3 + $0x18] sm:$0xf]
      %v4892 = vld [vmem:[%s3 + $0x1c] sm:$0xf]
      %v4893 = vld [vmem:[%s3 + $0x20] sm:$0xf]
      %v4894 = vld [vmem:[%s3 + $0x24] sm:$0xf]
      %v4895 = vld [vmem:[%s3 + $0x28] sm:$0xf]
      %v4896 = vld [vmem:[%s3 + $0x2c] sm:$0xf]
      %v4897 = vld [vmem:[%s3 + $0x30] sm:$0xf]
      %v4898 = vld [vmem:[%s3 + $0x34] sm:$0xf]
      %v4899 = vld [vmem:[%s3 + $0x38] sm:$0xf]
      %v4900 = vld [vmem:[%s3 + $0x3c] sm:$0xf]
      %v4901 = vld [vmem:[%s3 + $0x40] sm:$0xf]
      %v4902 = vld [vmem:[%s3 + $0x44] sm:$0xf]
      %v4903 = vld [vmem:[%s3 + $0x48] sm:$0xf]
      %v4904 = vld [vmem:[%s3 + $0x4c] sm:$0xf]
      %v4905 = vld [vmem:[%s3 + $0x50] sm:$0xf]
      %v4906 = vld [vmem:[%s3 + $0x54] sm:$0xf]
      %v4907 = vld [vmem:[%s3 + $0x58] sm:$0xf]
      %v4908 = vld [vmem:[%s3 + $0x5c] sm:$0xf]
      %v4909 = vld [vmem:[%s3 + $0x60] sm:$0xf]
      %v4910 = vld [vmem:[%s3 + $0x64] sm:$0xf]
      %v4911 = vld [vmem:[%s3 + $0x68] sm:$0xf]
      %v4912 = vld [vmem:[%s3 + $0x6c] sm:$0xf]
      %v4913 = vld [vmem:[%s3 + $0x70] sm:$0xf]
      %v4914 = vld [vmem:[%s3 + $0x74] sm:$0xf]
      %v4915 = vld [vmem:[%s3 + $0x78] sm:$0xf]
      %v4916 = vld [vmem:[%s3 + $0x7c] sm:$0xf]
      %v4917 = vld [vmem:[%s3 + $0x80] sm:$0xf]
      %v4918 = vld [vmem:[%s3 + $0x84] sm:$0xf]
      %v4919 = vld [vmem:[%s3 + $0x88] sm:$0xf]
      %v4920 = vld [vmem:[%s3 + $0x8c] sm:$0xf]
      %v4921 = vld [vmem:[%s3 + $0x90] sm:$0xf]
      %v4922 = vld [vmem:[%s3 + $0x94] sm:$0xf]
      %v4923 = vld [vmem:[%s3 + $0x98] sm:$0xf]
      %v4924 = vld [vmem:[%s3 + $0x9c] sm:$0xf]
      %v4925 = vld [vmem:[%s3 + $0xa0] sm:$0xf]
      %v4926 = vld [vmem:[%s3 + $0xa4] sm:$0xf]
      %v4927 = vld [vmem:[%s3 + $0xa8] sm:$0xf]
      %v4928 = vld [vmem:[%s3 + $0xac] sm:$0xf]
      %v4929 = vld [vmem:[%s3 + $0xb0] sm:$0xf]
      %v4930 = vld [vmem:[%s3 + $0xb4] sm:$0xf]
      %v4931 = vld [vmem:[%s3 + $0xb8] sm:$0xf]
      %v4932 = vld [vmem:[%s3 + $0xbc] sm:$0xf]
      %v4934 = vshrl.u32 %v3875, 16
      %v4936 = vrot.slane %v4934, 3
      %v4937 = vshll.u32 %v3875, 16
      %v4939 = vrot.slane %v4937, 4
      %v4940 = vor.u32 %v4936, %v4939
      %v4942 = vshrl.u32 %v3876, 16
      %v4944 = vrot.slane %v4942, 3
      %v4945 = vshll.u32 %v3876, 16
      %v4947 = vrot.slane %v4945, 4
      %v4948 = vor.u32 %v4944, %v4947
      %v4949 = vsel %vm2957, %v4940, %v4948
      %v4951 = vshrl.u32 %v4032, 16
      %v4953 = vrot.slane %v4951, 3
      %v4954 = vshll.u32 %v4032, 16
      %v4956 = vrot.slane %v4954, 4
      %v4957 = vor.u32 %v4953, %v4956
      %v4958 = vsel %vm2957, %v4957, %v4957
      %v4960 = vshrl.u32 %v4143, 16
      %v4962 = vrot.slane %v4960, 3
      %v4963 = vshll.u32 %v4143, 16
      %v4965 = vrot.slane %v4963, 4
      %v4966 = vor.u32 %v4962, %v4965
      %v4968 = vshrl.u32 %v4145, 16
      %v4970 = vrot.slane %v4968, 3
      %v4971 = vshll.u32 %v4145, 16
      %v4973 = vrot.slane %v4971, 4
      %v4974 = vor.u32 %v4970, %v4973
      %v4975 = vsel %vm2957, %v4966, %v4974
      %s4979 = scalar_lea.vmem %s3, 192
      %v4980 = vld [vmem:[%s4979] sm:$0xf]
      %v4981 = vld [vmem:[%s4979 + $0x4] sm:$0xf]
      %v4982 = vld [vmem:[%s4979 + $0x8] sm:$0xf]
      %v4983 = vld [vmem:[%s4979 + $0xc] sm:$0xf]
      %v4984 = vld [vmem:[%s4979 + $0x10] sm:$0xf]
      %v4985 = vld [vmem:[%s4979 + $0x14] sm:$0xf]
      %v4986 = vld [vmem:[%s4979 + $0x18] sm:$0xf]
      %v4987 = vld [vmem:[%s4979 + $0x1c] sm:$0xf]
      %v4988 = vld [vmem:[%s4979 + $0x20] sm:$0xf]
      %v4989 = vld [vmem:[%s4979 + $0x24] sm:$0xf]
      %v4990 = vld [vmem:[%s4979 + $0x28] sm:$0xf]
      %v4991 = vld [vmem:[%s4979 + $0x2c] sm:$0xf]
      %v4992 = vld [vmem:[%s4979 + $0x30] sm:$0xf]
      %v4993 = vld [vmem:[%s4979 + $0x34] sm:$0xf]
      %v4994 = vld [vmem:[%s4979 + $0x38] sm:$0xf]
      %v4995 = vld [vmem:[%s4979 + $0x3c] sm:$0xf]
      %v4996 = vld [vmem:[%s4979 + $0x40] sm:$0xf]
      %v4997 = vld [vmem:[%s4979 + $0x44] sm:$0xf]
      %v4998 = vld [vmem:[%s4979 + $0x48] sm:$0xf]
      %v4999 = vld [vmem:[%s4979 + $0x4c] sm:$0xf]
      %v5000 = vld [vmem:[%s4979 + $0x50] sm:$0xf]
      %v5001 = vld [vmem:[%s4979 + $0x54] sm:$0xf]
      %v5002 = vld [vmem:[%s4979 + $0x58] sm:$0xf]
      %v5003 = vld [vmem:[%s4979 + $0x5c] sm:$0xf]
      %v5004 = vld [vmem:[%s4979 + $0x60] sm:$0xf]
      %v5005 = vld [vmem:[%s4979 + $0x64] sm:$0xf]
      %v5006 = vld [vmem:[%s4979 + $0x68] sm:$0xf]
      %v5007 = vld [vmem:[%s4979 + $0x6c] sm:$0xf]
      %v5008 = vld [vmem:[%s4979 + $0x70] sm:$0xf]
      %v5009 = vld [vmem:[%s4979 + $0x74] sm:$0xf]
      %v5010 = vld [vmem:[%s4979 + $0x78] sm:$0xf]
      %v5011 = vld [vmem:[%s4979 + $0x7c] sm:$0xf]
      %v5012 = vld [vmem:[%s4979 + $0x80] sm:$0xf]
      %v5013 = vld [vmem:[%s4979 + $0x84] sm:$0xf]
      %v5014 = vld [vmem:[%s4979 + $0x88] sm:$0xf]
      %v5015 = vld [vmem:[%s4979 + $0x8c] sm:$0xf]
      %v5016 = vld [vmem:[%s4979 + $0x90] sm:$0xf]
      %v5017 = vld [vmem:[%s4979 + $0x94] sm:$0xf]
      %v5018 = vld [vmem:[%s4979 + $0x98] sm:$0xf]
      %v5019 = vld [vmem:[%s4979 + $0x9c] sm:$0xf]
      %v5020 = vld [vmem:[%s4979 + $0xa0] sm:$0xf]
      %v5021 = vld [vmem:[%s4979 + $0xa4] sm:$0xf]
      %v5022 = vld [vmem:[%s4979 + $0xa8] sm:$0xf]
      %v5023 = vld [vmem:[%s4979 + $0xac] sm:$0xf]
      %v5024 = vld [vmem:[%s4979 + $0xb0] sm:$0xf]
      %v5025 = vld [vmem:[%s4979 + $0xb4] sm:$0xf]
      %v5026 = vld [vmem:[%s4979 + $0xb8] sm:$0xf]
      %v5027 = vld [vmem:[%s4979 + $0xbc] sm:$0xf]
      %v5076 = vunpack.c.l.b16 %v4980
      %v5077 = vunpack.c.l.b16 %v4981
      %v5078 = vunpack.c.l.b16 %v4982
      %v5079 = vunpack.c.l.b16 %v4983
      %v5080 = vunpack.c.l.b16 %v4984
      %v5081 = vunpack.c.l.b16 %v4985
      %v5082 = vunpack.c.l.b16 %v4986
      %v5083 = vunpack.c.l.b16 %v4987
      %v5084 = vunpack.c.l.b16 %v4988
      %v5085 = vunpack.c.l.b16 %v4989
      %v5086 = vunpack.c.l.b16 %v4990
      %v5087 = vunpack.c.l.b16 %v4991
      %v5088 = vunpack.c.l.b16 %v4992
      %v5089 = vunpack.c.l.b16 %v4993
      %v5090 = vunpack.c.l.b16 %v4994
      %v5091 = vunpack.c.l.b16 %v4995
      %v5092 = vunpack.c.l.b16 %v4996
      %v5093 = vunpack.c.l.b16 %v4997
      %v5094 = vunpack.c.l.b16 %v4998
      %v5095 = vunpack.c.l.b16 %v4999
      %v5096 = vunpack.c.l.b16 %v5000
      %v5097 = vunpack.c.l.b16 %v5001
      %v5098 = vunpack.c.l.b16 %v5002
      %v5099 = vunpack.c.l.b16 %v5003
      %v5100 = vunpack.c.l.b16 %v5004
      %v5101 = vunpack.c.l.b16 %v5005
      %v5102 = vunpack.c.l.b16 %v5006
      %v5103 = vunpack.c.l.b16 %v5007
      %v5104 = vunpack.c.l.b16 %v5008
      %v5105 = vunpack.c.l.b16 %v5009
      %v5106 = vunpack.c.l.b16 %v5010
      %v5107 = vunpack.c.l.b16 %v5011
      %v5108 = vunpack.c.l.b16 %v5012
      %v5109 = vunpack.c.l.b16 %v5013
      %v5110 = vunpack.c.l.b16 %v5014
      %v5111 = vunpack.c.l.b16 %v5015
      %v5112 = vunpack.c.l.b16 %v5016
      %v5113 = vunpack.c.l.b16 %v5017
      %v5114 = vunpack.c.l.b16 %v5018
      %v5115 = vunpack.c.l.b16 %v5019
      %v5116 = vunpack.c.l.b16 %v5020
      %v5117 = vunpack.c.l.b16 %v5021
      %v5118 = vunpack.c.l.b16 %v5022
      %v5119 = vunpack.c.l.b16 %v5023
      %v5120 = vunpack.c.l.b16 %v5024
      %v5121 = vunpack.c.l.b16 %v5025
      %v5122 = vunpack.c.l.b16 %v5026
      %v5123 = vunpack.c.l.b16 %v5027
      %v5124 = vpack.c.b16 %v5077, %v5076
      %v5125 = vpack.c.b16 %v5079, %v5078
      %v5126 = vpack.c.b16 %v5081, %v5080
      %v5127 = vpack.c.b16 %v5083, %v5082
      %v5128 = vpack.c.b16 %v5085, %v5084
      %v5129 = vpack.c.b16 %v5087, %v5086
      %v5130 = vpack.c.b16 %v5089, %v5088
      %v5131 = vpack.c.b16 %v5091, %v5090
      %v5132 = vpack.c.b16 %v5093, %v5092
      %v5133 = vpack.c.b16 %v5095, %v5094
      %v5134 = vpack.c.b16 %v5097, %v5096
      %v5135 = vpack.c.b16 %v5099, %v5098
      %v5136 = vpack.c.b16 %v5101, %v5100
      %v5137 = vpack.c.b16 %v5103, %v5102
      %v5138 = vpack.c.b16 %v5105, %v5104
      %v5139 = vpack.c.b16 %v5107, %v5106
      %v5140 = vpack.c.b16 %v5109, %v5108
      %v5141 = vpack.c.b16 %v5111, %v5110
      %v5142 = vpack.c.b16 %v5113, %v5112
      %v5143 = vpack.c.b16 %v5115, %v5114
      %v5144 = vpack.c.b16 %v5117, %v5116
      %v5145 = vpack.c.b16 %v5119, %v5118
      %v5146 = vpack.c.b16 %v5121, %v5120
      %v5147 = vpack.c.b16 %v5123, %v5122
      %5172 = vmatpush.bf16.msra.mxu0 %v5131
      %5173 = vmatpush.bf16.msra.mxu0 %v5130
      %5174 = vmatpush.bf16.msra.mxu0 %v5129
      %5175 = vmatpush.bf16.msra.mxu0 %v5128
      %5176 = vmatpush.bf16.msra.mxu0 %v5127
      %5177 = vmatpush.bf16.msra.mxu0 %v5126
      %5178 = vmatpush.bf16.msra.mxu0 %v5125
      %5179 = vmatpush.bf16.msra.mxu0 %v5124
      %5180 = vmatmul.bf16.gmra.mxu0 %v4208
      %v5181 = vpop.f32.mrf.mxu0
      %v5182 = vadd.f32 0.0, %v5181
      %v5183 = vpop.f32.mrf.mxu0
      %v5184 = vadd.f32 0.0, %v5183
      %5185 = vmatmul.bf16.gmra.mxu0 %v4251
      %v5186 = vpop.f32.mrf.mxu0
      %v5187 = vadd.f32 0.0, %v5186
      %v5188 = vpop.f32.mrf.mxu0
      %v5189 = vadd.f32 0.0, %v5188
      %5190 = vmatmul.bf16.gmra.mxu0 %v4294
      %v5191 = vpop.f32.mrf.mxu0
      %v5192 = vadd.f32 0.0, %v5191
      %v5193 = vpop.f32.mrf.mxu0
      %v5194 = vadd.f32 0.0, %v5193
      %5195 = vmatmul.bf16.gmra.mxu0 %v4337
      %v5196 = vpop.f32.mrf.mxu0
      %v5197 = vadd.f32 0.0, %v5196
      %v5198 = vpop.f32.mrf.mxu0
      %v5199 = vadd.f32 0.0, %v5198
      %5200 = vmatmul.bf16.gmra.mxu0 %v4380
      %v5201 = vpop.f32.mrf.mxu0
      %v5202 = vadd.f32 0.0, %v5201
      %v5203 = vpop.f32.mrf.mxu0
      %v5204 = vadd.f32 0.0, %v5203
      %5205 = vmatmul.bf16.gmra.mxu0 %v4423
      %v5206 = vpop.f32.mrf.mxu0
      %v5207 = vadd.f32 0.0, %v5206
      %v5208 = vpop.f32.mrf.mxu0
      %v5209 = vadd.f32 0.0, %v5208
      %5210 = vmatmul.bf16.gmra.mxu0 %v4466
      %v5211 = vpop.f32.mrf.mxu0
      %v5212 = vadd.f32 0.0, %v5211
      %v5213 = vpop.f32.mrf.mxu0
      %v5214 = vadd.f32 0.0, %v5213
      %5215 = vmatmul.bf16.gmra.mxu0 %v4509
      %v5216 = vpop.f32.mrf.mxu0
      %v5217 = vadd.f32 0.0, %v5216
      %v5218 = vpop.f32.mrf.mxu0
      %v5219 = vadd.f32 0.0, %v5218
      %5220 = vmatmul.bf16.gmra.mxu0 %v4552
      %v5221 = vpop.f32.mrf.mxu0
      %v5222 = vadd.f32 0.0, %v5221
      %v5223 = vpop.f32.mrf.mxu0
      %v5224 = vadd.f32 0.0, %v5223
      %5225 = vmatmul.bf16.gmra.mxu0 %v4595
      %v5226 = vpop.f32.mrf.mxu0
      %v5227 = vadd.f32 0.0, %v5226
      %v5228 = vpop.f32.mrf.mxu0
      %v5229 = vadd.f32 0.0, %v5228
      %5230 = vmatmul.bf16.gmra.mxu0 %v4638
      %v5231 = vpop.f32.mrf.mxu0
      %v5232 = vadd.f32 0.0, %v5231
      %v5233 = vpop.f32.mrf.mxu0
      %v5234 = vadd.f32 0.0, %v5233
      %5235 = vmatmul.bf16.gmra.mxu0 %v4681
      %v5236 = vpop.f32.mrf.mxu0
      %v5237 = vadd.f32 0.0, %v5236
      %v5238 = vpop.f32.mrf.mxu0
      %v5239 = vadd.f32 0.0, %v5238
      %5240 = vmatmul.bf16.gmra.mxu0 %v4724
      %v5241 = vpop.f32.mrf.mxu0
      %v5242 = vadd.f32 0.0, %v5241
      %v5243 = vpop.f32.mrf.mxu0
      %v5244 = vadd.f32 0.0, %v5243
      %5245 = vmatmul.bf16.gmra.mxu0 %v4767
      %v5246 = vpop.f32.mrf.mxu0
      %v5247 = vadd.f32 0.0, %v5246
      %v5248 = vpop.f32.mrf.mxu0
      %v5249 = vadd.f32 0.0, %v5248
      %5250 = vmatmul.bf16.gmra.mxu0 %v4810
      %v5251 = vpop.f32.mrf.mxu0
      %v5252 = vadd.f32 0.0, %v5251
      %v5253 = vpop.f32.mrf.mxu0
      %v5254 = vadd.f32 0.0, %v5253
      %5255 = vmatmul.bf16.gmra.mxu0 %v4949
      %v5256 = vpop.f32.mrf.mxu0
      %v5257 = vadd.f32 0.0, %v5256
      %v5258 = vpop.f32.mrf.mxu0
      %v5259 = vadd.f32 0.0, %v5258
      %5260 = vdwg.mxu0
      %5261 = vmatpush.bf16.msra.mxu0 %v5139
      %5262 = vmatpush.bf16.msra.mxu0 %v5138
      %5263 = vmatpush.bf16.msra.mxu0 %v5137
      %5264 = vmatpush.bf16.msra.mxu0 %v5136
      %5265 = vmatpush.bf16.msra.mxu0 %v5135
      %5266 = vmatpush.bf16.msra.mxu0 %v5134
      %5267 = vmatpush.bf16.msra.mxu0 %v5133
      %5268 = vmatpush.bf16.msra.mxu0 %v5132
      %5269 = vmatmul.bf16.gmra.mxu0 %v4217
      %v5270 = vpop.f32.mrf.mxu0
      %v5271 = vadd.f32 %v5182, %v5270
      %v5272 = vpop.f32.mrf.mxu0
      %v5273 = vadd.f32 %v5184, %v5272
      %5274 = vmatmul.bf16.gmra.mxu0 %v4260
      %v5275 = vpop.f32.mrf.mxu0
      %v5276 = vadd.f32 %v5187, %v5275
      %v5277 = vpop.f32.mrf.mxu0
      %v5278 = vadd.f32 %v5189, %v5277
      %5279 = vmatmul.bf16.gmra.mxu0 %v4303
      %v5280 = vpop.f32.mrf.mxu0
      %v5281 = vadd.f32 %v5192, %v5280
      %v5282 = vpop.f32.mrf.mxu0
      %v5283 = vadd.f32 %v5194, %v5282
      %5284 = vmatmul.bf16.gmra.mxu0 %v4346
      %v5285 = vpop.f32.mrf.mxu0
      %v5286 = vadd.f32 %v5197, %v5285
      %v5287 = vpop.f32.mrf.mxu0
      %v5288 = vadd.f32 %v5199, %v5287
      %5289 = vmatmul.bf16.gmra.mxu0 %v4389
      %v5290 = vpop.f32.mrf.mxu0
      %v5291 = vadd.f32 %v5202, %v5290
      %v5292 = vpop.f32.mrf.mxu0
      %v5293 = vadd.f32 %v5204, %v5292
      %5294 = vmatmul.bf16.gmra.mxu0 %v4432
      %v5295 = vpop.f32.mrf.mxu0
      %v5296 = vadd.f32 %v5207, %v5295
      %v5297 = vpop.f32.mrf.mxu0
      %v5298 = vadd.f32 %v5209, %v5297
      %5299 = vmatmul.bf16.gmra.mxu0 %v4475
      %v5300 = vpop.f32.mrf.mxu0
      %v5301 = vadd.f32 %v5212, %v5300
      %v5302 = vpop.f32.mrf.mxu0
      %v5303 = vadd.f32 %v5214, %v5302
      %5304 = vmatmul.bf16.gmra.mxu0 %v4518
      %v5305 = vpop.f32.mrf.mxu0
      %v5306 = vadd.f32 %v5217, %v5305
      %v5307 = vpop.f32.mrf.mxu0
      %v5308 = vadd.f32 %v5219, %v5307
      %5309 = vmatmul.bf16.gmra.mxu0 %v4561
      %v5310 = vpop.f32.mrf.mxu0
      %v5311 = vadd.f32 %v5222, %v5310
      %v5312 = vpop.f32.mrf.mxu0
      %v5313 = vadd.f32 %v5224, %v5312
      %5314 = vmatmul.bf16.gmra.mxu0 %v4604
      %v5315 = vpop.f32.mrf.mxu0
      %v5316 = vadd.f32 %v5227, %v5315
      %v5317 = vpop.f32.mrf.mxu0
      %v5318 = vadd.f32 %v5229, %v5317
      %5319 = vmatmul.bf16.gmra.mxu0 %v4647
      %v5320 = vpop.f32.mrf.mxu0
      %v5321 = vadd.f32 %v5232, %v5320
      %v5322 = vpop.f32.mrf.mxu0
      %v5323 = vadd.f32 %v5234, %v5322
      %5324 = vmatmul.bf16.gmra.mxu0 %v4690
      %v5325 = vpop.f32.mrf.mxu0
      %v5326 = vadd.f32 %v5237, %v5325
      %v5327 = vpop.f32.mrf.mxu0
      %v5328 = vadd.f32 %v5239, %v5327
      %5329 = vmatmul.bf16.gmra.mxu0 %v4733
      %v5330 = vpop.f32.mrf.mxu0
      %v5331 = vadd.f32 %v5242, %v5330
      %v5332 = vpop.f32.mrf.mxu0
      %v5333 = vadd.f32 %v5244, %v5332
      %5334 = vmatmul.bf16.gmra.mxu0 %v4776
      %v5335 = vpop.f32.mrf.mxu0
      %v5336 = vadd.f32 %v5247, %v5335
      %v5337 = vpop.f32.mrf.mxu0
      %v5338 = vadd.f32 %v5249, %v5337
      %5339 = vmatmul.bf16.gmra.mxu0 %v4819
      %v5340 = vpop.f32.mrf.mxu0
      %v5341 = vadd.f32 %v5252, %v5340
      %v5342 = vpop.f32.mrf.mxu0
      %v5343 = vadd.f32 %v5254, %v5342
      %5344 = vmatmul.bf16.gmra.mxu0 %v4958
      %v5345 = vpop.f32.mrf.mxu0
      %v5346 = vadd.f32 %v5257, %v5345
      %v5347 = vpop.f32.mrf.mxu0
      %v5348 = vadd.f32 %v5259, %v5347
      %5349 = vdwg.mxu0
      %5350 = vmatpush.bf16.msra.mxu0 %v5147
      %5351 = vmatpush.bf16.msra.mxu0 %v5146
      %5352 = vmatpush.bf16.msra.mxu0 %v5145
      %5353 = vmatpush.bf16.msra.mxu0 %v5144
      %5354 = vmatpush.bf16.msra.mxu0 %v5143
      %5355 = vmatpush.bf16.msra.mxu0 %v5142
      %5356 = vmatpush.bf16.msra.mxu0 %v5141
      %5357 = vmatpush.bf16.msra.mxu0 %v5140
      %5358 = vmatmul.bf16.gmra.mxu0 %v4234
      %v5359 = vpop.f32.mrf.mxu0
      %v5360 = vadd.f32 %v5271, %v5359
      %v5361 = vpop.f32.mrf.mxu0
      %v5362 = vadd.f32 %v5273, %v5361
      %5363 = vmatmul.bf16.gmra.mxu0 %v4277
      %v5364 = vpop.f32.mrf.mxu0
      %v5365 = vadd.f32 %v5276, %v5364
      %v5366 = vpop.f32.mrf.mxu0
      %v5367 = vadd.f32 %v5278, %v5366
      %5368 = vmatmul.bf16.gmra.mxu0 %v4320
      %v5369 = vpop.f32.mrf.mxu0
      %v5370 = vadd.f32 %v5281, %v5369
      %v5371 = vpop.f32.mrf.mxu0
      %v5372 = vadd.f32 %v5283, %v5371
      %5373 = vmatmul.bf16.gmra.mxu0 %v4363
      %v5374 = vpop.f32.mrf.mxu0
      %v5375 = vadd.f32 %v5286, %v5374
      %v5376 = vpop.f32.mrf.mxu0
      %v5377 = vadd.f32 %v5288, %v5376
      %5378 = vmatmul.bf16.gmra.mxu0 %v4406
      %v5379 = vpop.f32.mrf.mxu0
      %v5380 = vadd.f32 %v5291, %v5379
      %v5381 = vpop.f32.mrf.mxu0
      %v5382 = vadd.f32 %v5293, %v5381
      %5383 = vmatmul.bf16.gmra.mxu0 %v4449
      %v5384 = vpop.f32.mrf.mxu0
      %v5385 = vadd.f32 %v5296, %v5384
      %v5386 = vpop.f32.mrf.mxu0
      %v5387 = vadd.f32 %v5298, %v5386
      %5388 = vmatmul.bf16.gmra.mxu0 %v4492
      %v5389 = vpop.f32.mrf.mxu0
      %v5390 = vadd.f32 %v5301, %v5389
      %v5391 = vpop.f32.mrf.mxu0
      %v5392 = vadd.f32 %v5303, %v5391
      %5393 = vmatmul.bf16.gmra.mxu0 %v4535
      %v5394 = vpop.f32.mrf.mxu0
      %v5395 = vadd.f32 %v5306, %v5394
      %v5396 = vpop.f32.mrf.mxu0
      %v5397 = vadd.f32 %v5308, %v5396
      %5398 = vmatmul.bf16.gmra.mxu0 %v4578
      %v5399 = vpop.f32.mrf.mxu0
      %v5400 = vadd.f32 %v5311, %v5399
      %v5401 = vpop.f32.mrf.mxu0
      %v5402 = vadd.f32 %v5313, %v5401
      %5403 = vmatmul.bf16.gmra.mxu0 %v4621
      %v5404 = vpop.f32.mrf.mxu0
      %v5405 = vadd.f32 %v5316, %v5404
      %v5406 = vpop.f32.mrf.mxu0
      %v5407 = vadd.f32 %v5318, %v5406
      %5408 = vmatmul.bf16.gmra.mxu0 %v4664
      %v5409 = vpop.f32.mrf.mxu0
      %v5410 = vadd.f32 %v5321, %v5409
      %v5411 = vpop.f32.mrf.mxu0
      %v5412 = vadd.f32 %v5323, %v5411
      %5413 = vmatmul.bf16.gmra.mxu0 %v4707
      %v5414 = vpop.f32.mrf.mxu0
      %v5415 = vadd.f32 %v5326, %v5414
      %v5416 = vpop.f32.mrf.mxu0
      %v5417 = vadd.f32 %v5328, %v5416
      %5418 = vmatmul.bf16.gmra.mxu0 %v4750
      %v5419 = vpop.f32.mrf.mxu0
      %v5420 = vadd.f32 %v5331, %v5419
      %v5421 = vpop.f32.mrf.mxu0
      %v5422 = vadd.f32 %v5333, %v5421
      %5423 = vmatmul.bf16.gmra.mxu0 %v4793
      %v5424 = vpop.f32.mrf.mxu0
      %v5425 = vadd.f32 %v5336, %v5424
      %v5426 = vpop.f32.mrf.mxu0
      %v5427 = vadd.f32 %v5338, %v5426
      %5428 = vmatmul.bf16.gmra.mxu0 %v4836
      %v5429 = vpop.f32.mrf.mxu0
      %v5430 = vadd.f32 %v5341, %v5429
      %v5431 = vpop.f32.mrf.mxu0
      %v5432 = vadd.f32 %v5343, %v5431
      %5433 = vmatmul.bf16.gmra.mxu0 %v4975
      %v5434 = vpop.f32.mrf.mxu0
      %v5435 = vadd.f32 %v5346, %v5434
      %v5436 = vpop.f32.mrf.mxu0
      %v5437 = vadd.f32 %v5348, %v5436
      %5438 = vdwg.mxu0
      %v5487 = vunpack.c.l.b16 %v4885
      %v5488 = vunpack.c.l.b16 %v4886
      %v5489 = vunpack.c.l.b16 %v4887
      %v5490 = vunpack.c.l.b16 %v4888
      %v5491 = vunpack.c.l.b16 %v4889
      %v5492 = vunpack.c.l.b16 %v4890
      %v5493 = vunpack.c.l.b16 %v4891
      %v5494 = vunpack.c.l.b16 %v4892
      %v5495 = vunpack.c.l.b16 %v4893
      %v5496 = vunpack.c.l.b16 %v4894
      %v5497 = vunpack.c.l.b16 %v4895
      %v5498 = vunpack.c.l.b16 %v4896
      %v5499 = vunpack.c.l.b16 %v4897
      %v5500 = vunpack.c.l.b16 %v4898
      %v5501 = vunpack.c.l.b16 %v4899
      %v5502 = vunpack.c.l.b16 %v4900
      %v5503 = vunpack.c.l.b16 %v4901
      %v5504 = vunpack.c.l.b16 %v4902
      %v5505 = vunpack.c.l.b16 %v4903
      %v5506 = vunpack.c.l.b16 %v4904
      %v5507 = vunpack.c.l.b16 %v4905
      %v5508 = vunpack.c.l.b16 %v4906
      %v5509 = vunpack.c.l.b16 %v4907
      %v5510 = vunpack.c.l.b16 %v4908
      %v5511 = vunpack.c.l.b16 %v4909
      %v5512 = vunpack.c.l.b16 %v4910
      %v5513 = vunpack.c.l.b16 %v4911
      %v5514 = vunpack.c.l.b16 %v4912
      %v5515 = vunpack.c.l.b16 %v4913
      %v5516 = vunpack.c.l.b16 %v4914
      %v5517 = vunpack.c.l.b16 %v4915
      %v5518 = vunpack.c.l.b16 %v4916
      %v5519 = vunpack.c.l.b16 %v4917
      %v5520 = vunpack.c.l.b16 %v4918
      %v5521 = vunpack.c.l.b16 %v4919
      %v5522 = vunpack.c.l.b16 %v4920
      %v5523 = vunpack.c.l.b16 %v4921
      %v5524 = vunpack.c.l.b16 %v4922
      %v5525 = vunpack.c.l.b16 %v4923
      %v5526 = vunpack.c.l.b16 %v4924
      %v5527 = vunpack.c.l.b16 %v4925
      %v5528 = vunpack.c.l.b16 %v4926
      %v5529 = vunpack.c.l.b16 %v4927
      %v5530 = vunpack.c.l.b16 %v4928
      %v5531 = vunpack.c.l.b16 %v4929
      %v5532 = vunpack.c.l.b16 %v4930
      %v5533 = vunpack.c.l.b16 %v4931
      %v5534 = vunpack.c.l.b16 %v4932
      %v5535 = vpack.c.b16 %v5488, %v5487
      %v5536 = vpack.c.b16 %v5490, %v5489
      %v5537 = vpack.c.b16 %v5492, %v5491
      %v5538 = vpack.c.b16 %v5494, %v5493
      %v5539 = vpack.c.b16 %v5496, %v5495
      %v5540 = vpack.c.b16 %v5498, %v5497
      %v5541 = vpack.c.b16 %v5500, %v5499
      %v5542 = vpack.c.b16 %v5502, %v5501
      %v5543 = vpack.c.b16 %v5504, %v5503
      %v5544 = vpack.c.b16 %v5506, %v5505
      %v5545 = vpack.c.b16 %v5508, %v5507
      %v5546 = vpack.c.b16 %v5510, %v5509
      %v5547 = vpack.c.b16 %v5512, %v5511
      %v5548 = vpack.c.b16 %v5514, %v5513
      %v5549 = vpack.c.b16 %v5516, %v5515
      %v5550 = vpack.c.b16 %v5518, %v5517
      %v5551 = vpack.c.b16 %v5520, %v5519
      %v5552 = vpack.c.b16 %v5522, %v5521
      %v5553 = vpack.c.b16 %v5524, %v5523
      %v5554 = vpack.c.b16 %v5526, %v5525
      %v5555 = vpack.c.b16 %v5528, %v5527
      %v5556 = vpack.c.b16 %v5530, %v5529
      %v5557 = vpack.c.b16 %v5532, %v5531
      %v5558 = vpack.c.b16 %v5534, %v5533
      %5583 = vmatpush.bf16.msra.mxu0 %v5542
      %5584 = vmatpush.bf16.msra.mxu0 %v5541
      %5585 = vmatpush.bf16.msra.mxu0 %v5540
      %5586 = vmatpush.bf16.msra.mxu0 %v5539
      %5587 = vmatpush.bf16.msra.mxu0 %v5538
      %5588 = vmatpush.bf16.msra.mxu0 %v5537
      %5589 = vmatpush.bf16.msra.mxu0 %v5536
      %5590 = vmatpush.bf16.msra.mxu0 %v5535
      %5591 = vmatmul.bf16.gmra.mxu0 %v4165
      %v5592 = vpop.f32.mrf.mxu0
      %v5593 = vadd.f32 %v5360, %v5592
      %v5594 = vpop.f32.mrf.mxu0
      %v5595 = vadd.f32 %v5362, %v5594
      %5596 = vmatmul.bf16.gmra.mxu0 %v4208
      %v5597 = vpop.f32.mrf.mxu0
      %v5598 = vadd.f32 %v5365, %v5597
      %v5599 = vpop.f32.mrf.mxu0
      %v5600 = vadd.f32 %v5367, %v5599
      %5601 = vmatmul.bf16.gmra.mxu0 %v4251
      %v5602 = vpop.f32.mrf.mxu0
      %v5603 = vadd.f32 %v5370, %v5602
      %v5604 = vpop.f32.mrf.mxu0
      %v5605 = vadd.f32 %v5372, %v5604
      %5606 = vmatmul.bf16.gmra.mxu0 %v4294
      %v5607 = vpop.f32.mrf.mxu0
      %v5608 = vadd.f32 %v5375, %v5607
      %v5609 = vpop.f32.mrf.mxu0
      %v5610 = vadd.f32 %v5377, %v5609
      %5611 = vmatmul.bf16.gmra.mxu0 %v4337
      %v5612 = vpop.f32.mrf.mxu0
      %v5613 = vadd.f32 %v5380, %v5612
      %v5614 = vpop.f32.mrf.mxu0
      %v5615 = vadd.f32 %v5382, %v5614
      %5616 = vmatmul.bf16.gmra.mxu0 %v4380
      %v5617 = vpop.f32.mrf.mxu0
      %v5618 = vadd.f32 %v5385, %v5617
      %v5619 = vpop.f32.mrf.mxu0
      %v5620 = vadd.f32 %v5387, %v5619
      %5621 = vmatmul.bf16.gmra.mxu0 %v4423
      %v5622 = vpop.f32.mrf.mxu0
      %v5623 = vadd.f32 %v5390, %v5622
      %v5624 = vpop.f32.mrf.mxu0
      %v5625 = vadd.f32 %v5392, %v5624
      %5626 = vmatmul.bf16.gmra.mxu0 %v4466
      %v5627 = vpop.f32.mrf.mxu0
      %v5628 = vadd.f32 %v5395, %v5627
      %v5629 = vpop.f32.mrf.mxu0
      %v5630 = vadd.f32 %v5397, %v5629
      %5631 = vmatmul.bf16.gmra.mxu0 %v4509
      %v5632 = vpop.f32.mrf.mxu0
      %v5633 = vadd.f32 %v5400, %v5632
      %v5634 = vpop.f32.mrf.mxu0
      %v5635 = vadd.f32 %v5402, %v5634
      %5636 = vmatmul.bf16.gmra.mxu0 %v4552
      %v5637 = vpop.f32.mrf.mxu0
      %v5638 = vadd.f32 %v5405, %v5637
      %v5639 = vpop.f32.mrf.mxu0
      %v5640 = vadd.f32 %v5407, %v5639
      %5641 = vmatmul.bf16.gmra.mxu0 %v4595
      %v5642 = vpop.f32.mrf.mxu0
      %v5643 = vadd.f32 %v5410, %v5642
      %v5644 = vpop.f32.mrf.mxu0
      %v5645 = vadd.f32 %v5412, %v5644
      %5646 = vmatmul.bf16.gmra.mxu0 %v4638
      %v5647 = vpop.f32.mrf.mxu0
      %v5648 = vadd.f32 %v5415, %v5647
      %v5649 = vpop.f32.mrf.mxu0
      %v5650 = vadd.f32 %v5417, %v5649
      %5651 = vmatmul.bf16.gmra.mxu0 %v4681
      %v5652 = vpop.f32.mrf.mxu0
      %v5653 = vadd.f32 %v5420, %v5652
      %v5654 = vpop.f32.mrf.mxu0
      %v5655 = vadd.f32 %v5422, %v5654
      %5656 = vmatmul.bf16.gmra.mxu0 %v4724
      %v5657 = vpop.f32.mrf.mxu0
      %v5658 = vadd.f32 %v5425, %v5657
      %v5659 = vpop.f32.mrf.mxu0
      %v5660 = vadd.f32 %v5427, %v5659
      %5661 = vmatmul.bf16.gmra.mxu0 %v4767
      %v5662 = vpop.f32.mrf.mxu0
      %v5663 = vadd.f32 %v5430, %v5662
      %v5664 = vpop.f32.mrf.mxu0
      %v5665 = vadd.f32 %v5432, %v5664
      %5666 = vmatmul.bf16.gmra.mxu0 %v4810
      %v5667 = vpop.f32.mrf.mxu0
      %v5668 = vadd.f32 %v5435, %v5667
      %v5669 = vpop.f32.mrf.mxu0
      %v5670 = vadd.f32 %v5437, %v5669
      %5671 = vdwg.mxu0
      %5672 = vmatpush.bf16.msra.mxu0 %v5550
      %5673 = vmatpush.bf16.msra.mxu0 %v5549
      %5674 = vmatpush.bf16.msra.mxu0 %v5548
      %5675 = vmatpush.bf16.msra.mxu0 %v5547
      %5676 = vmatpush.bf16.msra.mxu0 %v5546
      %5677 = vmatpush.bf16.msra.mxu0 %v5545
      %5678 = vmatpush.bf16.msra.mxu0 %v5544
      %5679 = vmatpush.bf16.msra.mxu0 %v5543
      %5680 = vmatmul.bf16.gmra.mxu0 %v4174
      %v5681 = vpop.f32.mrf.mxu0
      %v5682 = vadd.f32 %v5593, %v5681
      %v5683 = vpop.f32.mrf.mxu0
      %v5684 = vadd.f32 %v5595, %v5683
      %5685 = vmatmul.bf16.gmra.mxu0 %v4217
      %v5686 = vpop.f32.mrf.mxu0
      %v5687 = vadd.f32 %v5598, %v5686
      %v5688 = vpop.f32.mrf.mxu0
      %v5689 = vadd.f32 %v5600, %v5688
      %5690 = vmatmul.bf16.gmra.mxu0 %v4260
      %v5691 = vpop.f32.mrf.mxu0
      %v5692 = vadd.f32 %v5603, %v5691
      %v5693 = vpop.f32.mrf.mxu0
      %v5694 = vadd.f32 %v5605, %v5693
      %5695 = vmatmul.bf16.gmra.mxu0 %v4303
      %v5696 = vpop.f32.mrf.mxu0
      %v5697 = vadd.f32 %v5608, %v5696
      %v5698 = vpop.f32.mrf.mxu0
      %v5699 = vadd.f32 %v5610, %v5698
      %5700 = vmatmul.bf16.gmra.mxu0 %v4346
      %v5701 = vpop.f32.mrf.mxu0
      %v5702 = vadd.f32 %v5613, %v5701
      %v5703 = vpop.f32.mrf.mxu0
      %v5704 = vadd.f32 %v5615, %v5703
      %5705 = vmatmul.bf16.gmra.mxu0 %v4389
      %v5706 = vpop.f32.mrf.mxu0
      %v5707 = vadd.f32 %v5618, %v5706
      %v5708 = vpop.f32.mrf.mxu0
      %v5709 = vadd.f32 %v5620, %v5708
      %5710 = vmatmul.bf16.gmra.mxu0 %v4432
      %v5711 = vpop.f32.mrf.mxu0
      %v5712 = vadd.f32 %v5623, %v5711
      %v5713 = vpop.f32.mrf.mxu0
      %v5714 = vadd.f32 %v5625, %v5713
      %5715 = vmatmul.bf16.gmra.mxu0 %v4475
      %v5716 = vpop.f32.mrf.mxu0
      %v5717 = vadd.f32 %v5628, %v5716
      %v5718 = vpop.f32.mrf.mxu0
      %v5719 = vadd.f32 %v5630, %v5718
      %5720 = vmatmul.bf16.gmra.mxu0 %v4518
      %v5721 = vpop.f32.mrf.mxu0
      %v5722 = vadd.f32 %v5633, %v5721
      %v5723 = vpop.f32.mrf.mxu0
      %v5724 = vadd.f32 %v5635, %v5723
      %5725 = vmatmul.bf16.gmra.mxu0 %v4561
      %v5726 = vpop.f32.mrf.mxu0
      %v5727 = vadd.f32 %v5638, %v5726
      %v5728 = vpop.f32.mrf.mxu0
      %v5729 = vadd.f32 %v5640, %v5728
      %5730 = vmatmul.bf16.gmra.mxu0 %v4604
      %v5731 = vpop.f32.mrf.mxu0
      %v5732 = vadd.f32 %v5643, %v5731
      %v5733 = vpop.f32.mrf.mxu0
      %v5734 = vadd.f32 %v5645, %v5733
      %5735 = vmatmul.bf16.gmra.mxu0 %v4647
      %v5736 = vpop.f32.mrf.mxu0
      %v5737 = vadd.f32 %v5648, %v5736
      %v5738 = vpop.f32.mrf.mxu0
      %v5739 = vadd.f32 %v5650, %v5738
      %5740 = vmatmul.bf16.gmra.mxu0 %v4690
      %v5741 = vpop.f32.mrf.mxu0
      %v5742 = vadd.f32 %v5653, %v5741
      %v5743 = vpop.f32.mrf.mxu0
      %v5744 = vadd.f32 %v5655, %v5743
      %5745 = vmatmul.bf16.gmra.mxu0 %v4733
      %v5746 = vpop.f32.mrf.mxu0
      %v5747 = vadd.f32 %v5658, %v5746
      %v5748 = vpop.f32.mrf.mxu0
      %v5749 = vadd.f32 %v5660, %v5748
      %5750 = vmatmul.bf16.gmra.mxu0 %v4776
      %v5751 = vpop.f32.mrf.mxu0
      %v5752 = vadd.f32 %v5663, %v5751
      %v5753 = vpop.f32.mrf.mxu0
      %v5754 = vadd.f32 %v5665, %v5753
      %5755 = vmatmul.bf16.gmra.mxu0 %v4819
      %v5756 = vpop.f32.mrf.mxu0
      %v5757 = vadd.f32 %v5668, %v5756
      %v5758 = vpop.f32.mrf.mxu0
      %v5759 = vadd.f32 %v5670, %v5758
      %5760 = vdwg.mxu0
      %5761 = vmatpush.bf16.msra.mxu0 %v5558
      %5762 = vmatpush.bf16.msra.mxu0 %v5557
      %5763 = vmatpush.bf16.msra.mxu0 %v5556
      %5764 = vmatpush.bf16.msra.mxu0 %v5555
      %5765 = vmatpush.bf16.msra.mxu0 %v5554
      %5766 = vmatpush.bf16.msra.mxu0 %v5553
      %5767 = vmatpush.bf16.msra.mxu0 %v5552
      %5768 = vmatpush.bf16.msra.mxu0 %v5551
      %5769 = vmatmul.bf16.gmra.mxu0 %v4191
      %v5770 = vpop.f32.mrf.mxu0
      %v5771 = vadd.f32 %v5682, %v5770
      %v5772 = vpop.f32.mrf.mxu0
      %v5773 = vadd.f32 %v5684, %v5772
      %5774 = vmatmul.bf16.gmra.mxu0 %v4234
      %v5775 = vpop.f32.mrf.mxu0
      %v5776 = vadd.f32 %v5687, %v5775
      %v5777 = vpop.f32.mrf.mxu0
      %v5778 = vadd.f32 %v5689, %v5777
      %5779 = vmatmul.bf16.gmra.mxu0 %v4277
      %v5780 = vpop.f32.mrf.mxu0
      %v5781 = vadd.f32 %v5692, %v5780
      %v5782 = vpop.f32.mrf.mxu0
      %v5783 = vadd.f32 %v5694, %v5782
      %5784 = vmatmul.bf16.gmra.mxu0 %v4320
      %v5785 = vpop.f32.mrf.mxu0
      %v5786 = vadd.f32 %v5697, %v5785
      %v5787 = vpop.f32.mrf.mxu0
      %v5788 = vadd.f32 %v5699, %v5787
      %5789 = vmatmul.bf16.gmra.mxu0 %v4363
      %v5790 = vpop.f32.mrf.mxu0
      %v5791 = vadd.f32 %v5702, %v5790
      %v5792 = vpop.f32.mrf.mxu0
      %v5793 = vadd.f32 %v5704, %v5792
      %5794 = vmatmul.bf16.gmra.mxu0 %v4406
      %v5795 = vpop.f32.mrf.mxu0
      %v5796 = vadd.f32 %v5707, %v5795
      %v5797 = vpop.f32.mrf.mxu0
      %v5798 = vadd.f32 %v5709, %v5797
      %5799 = vmatmul.bf16.gmra.mxu0 %v4449
      %v5800 = vpop.f32.mrf.mxu0
      %v5801 = vadd.f32 %v5712, %v5800
      %v5802 = vpop.f32.mrf.mxu0
      %v5803 = vadd.f32 %v5714, %v5802
      %5804 = vmatmul.bf16.gmra.mxu0 %v4492
      %v5805 = vpop.f32.mrf.mxu0
      %v5806 = vadd.f32 %v5717, %v5805
      %v5807 = vpop.f32.mrf.mxu0
      %v5808 = vadd.f32 %v5719, %v5807
      %5809 = vmatmul.bf16.gmra.mxu0 %v4535
      %v5810 = vpop.f32.mrf.mxu0
      %v5811 = vadd.f32 %v5722, %v5810
      %v5812 = vpop.f32.mrf.mxu0
      %v5813 = vadd.f32 %v5724, %v5812
      %5814 = vmatmul.bf16.gmra.mxu0 %v4578
      %v5815 = vpop.f32.mrf.mxu0
      %v5816 = vadd.f32 %v5727, %v5815
      %v5817 = vpop.f32.mrf.mxu0
      %v5818 = vadd.f32 %v5729, %v5817
      %5819 = vmatmul.bf16.gmra.mxu0 %v4621
      %v5820 = vpop.f32.mrf.mxu0
      %v5821 = vadd.f32 %v5732, %v5820
      %v5822 = vpop.f32.mrf.mxu0
      %v5823 = vadd.f32 %v5734, %v5822
      %5824 = vmatmul.bf16.gmra.mxu0 %v4664
      %v5825 = vpop.f32.mrf.mxu0
      %v5826 = vadd.f32 %v5737, %v5825
      %v5827 = vpop.f32.mrf.mxu0
      %v5828 = vadd.f32 %v5739, %v5827
      %5829 = vmatmul.bf16.gmra.mxu0 %v4707
      %v5830 = vpop.f32.mrf.mxu0
      %v5831 = vadd.f32 %v5742, %v5830
      %v5832 = vpop.f32.mrf.mxu0
      %v5833 = vadd.f32 %v5744, %v5832
      %5834 = vmatmul.bf16.gmra.mxu0 %v4750
      %v5835 = vpop.f32.mrf.mxu0
      %v5836 = vadd.f32 %v5747, %v5835
      %v5837 = vpop.f32.mrf.mxu0
      %v5838 = vadd.f32 %v5749, %v5837
      %5839 = vmatmul.bf16.gmra.mxu0 %v4793
      %v5840 = vpop.f32.mrf.mxu0
      %v5841 = vadd.f32 %v5752, %v5840
      %v5842 = vpop.f32.mrf.mxu0
      %v5843 = vadd.f32 %v5754, %v5842
      %5844 = vmatmul.bf16.gmra.mxu0 %v4836
      %v5845 = vpop.f32.mrf.mxu0
      %v5846 = vadd.f32 %v5757, %v5845
      %v5847 = vpop.f32.mrf.mxu0
      %v5848 = vadd.f32 %v5759, %v5847
      %5849 = vdwg.mxu0
      %v5851 = vshrl.u32 %v3877, 16
      %v5853 = vrot.slane %v5851, 3
      %v5854 = vshll.u32 %v3877, 16
      %v5856 = vrot.slane %v5854, 4
      %v5857 = vor.u32 %v5853, %v5856
      %v5859 = vshrl.u32 %v3878, 16
      %v5861 = vrot.slane %v5859, 3
      %v5862 = vshll.u32 %v3878, 16
      %v5864 = vrot.slane %v5862, 4
      %v5865 = vor.u32 %v5861, %v5864
      %v5866 = vsel %vm2957, %v5857, %v5865
      %v5868 = vshrl.u32 %v4040, 16
      %v5870 = vrot.slane %v5868, 3
      %v5871 = vshll.u32 %v4040, 16
      %v5873 = vrot.slane %v5871, 4
      %v5874 = vor.u32 %v5870, %v5873
      %v5875 = vsel %vm2957, %v5874, %v5874
      %v5877 = vshrl.u32 %v4146, 16
      %v5879 = vrot.slane %v5877, 3
      %v5880 = vshll.u32 %v4146, 16
      %v5882 = vrot.slane %v5880, 4
      %v5883 = vor.u32 %v5879, %v5882
      %v5885 = vshrl.u32 %v4148, 16
      %v5887 = vrot.slane %v5885, 3
      %v5888 = vshll.u32 %v4148, 16
      %v5890 = vrot.slane %v5888, 4
      %v5891 = vor.u32 %v5887, %v5890
      %v5892 = vsel %vm2957, %v5883, %v5891
      %s5896 = scalar_lea.vmem %s3, 384
      %v5897 = vld [vmem:[%s5896] sm:$0xf]
      %v5898 = vld [vmem:[%s5896 + $0x4] sm:$0xf]
      %v5899 = vld [vmem:[%s5896 + $0x8] sm:$0xf]
      %v5900 = vld [vmem:[%s5896 + $0xc] sm:$0xf]
      %v5901 = vld [vmem:[%s5896 + $0x10] sm:$0xf]
      %v5902 = vld [vmem:[%s5896 + $0x14] sm:$0xf]
      %v5903 = vld [vmem:[%s5896 + $0x18] sm:$0xf]
      %v5904 = vld [vmem:[%s5896 + $0x1c] sm:$0xf]
      %v5905 = vld [vmem:[%s5896 + $0x20] sm:$0xf]
      %v5906 = vld [vmem:[%s5896 + $0x24] sm:$0xf]
      %v5907 = vld [vmem:[%s5896 + $0x28] sm:$0xf]
      %v5908 = vld [vmem:[%s5896 + $0x2c] sm:$0xf]
      %v5909 = vld [vmem:[%s5896 + $0x30] sm:$0xf]
      %v5910 = vld [vmem:[%s5896 + $0x34] sm:$0xf]
      %v5911 = vld [vmem:[%s5896 + $0x38] sm:$0xf]
      %v5912 = vld [vmem:[%s5896 + $0x3c] sm:$0xf]
      %v5913 = vld [vmem:[%s5896 + $0x40] sm:$0xf]
      %v5914 = vld [vmem:[%s5896 + $0x44] sm:$0xf]
      %v5915 = vld [vmem:[%s5896 + $0x48] sm:$0xf]
      %v5916 = vld [vmem:[%s5896 + $0x4c] sm:$0xf]
      %v5917 = vld [vmem:[%s5896 + $0x50] sm:$0xf]
      %v5918 = vld [vmem:[%s5896 + $0x54] sm:$0xf]
      %v5919 = vld [vmem:[%s5896 + $0x58] sm:$0xf]
      %v5920 = vld [vmem:[%s5896 + $0x5c] sm:$0xf]
      %v5921 = vld [vmem:[%s5896 + $0x60] sm:$0xf]
      %v5922 = vld [vmem:[%s5896 + $0x64] sm:$0xf]
      %v5923 = vld [vmem:[%s5896 + $0x68] sm:$0xf]
      %v5924 = vld [vmem:[%s5896 + $0x6c] sm:$0xf]
      %v5925 = vld [vmem:[%s5896 + $0x70] sm:$0xf]
      %v5926 = vld [vmem:[%s5896 + $0x74] sm:$0xf]
      %v5927 = vld [vmem:[%s5896 + $0x78] sm:$0xf]
      %v5928 = vld [vmem:[%s5896 + $0x7c] sm:$0xf]
      %v5929 = vld [vmem:[%s5896 + $0x80] sm:$0xf]
      %v5930 = vld [vmem:[%s5896 + $0x84] sm:$0xf]
      %v5931 = vld [vmem:[%s5896 + $0x88] sm:$0xf]
      %v5932 = vld [vmem:[%s5896 + $0x8c] sm:$0xf]
      %v5933 = vld [vmem:[%s5896 + $0x90] sm:$0xf]
      %v5934 = vld [vmem:[%s5896 + $0x94] sm:$0xf]
      %v5935 = vld [vmem:[%s5896 + $0x98] sm:$0xf]
      %v5936 = vld [vmem:[%s5896 + $0x9c] sm:$0xf]
      %v5937 = vld [vmem:[%s5896 + $0xa0] sm:$0xf]
      %v5938 = vld [vmem:[%s5896 + $0xa4] sm:$0xf]
      %v5939 = vld [vmem:[%s5896 + $0xa8] sm:$0xf]
      %v5940 = vld [vmem:[%s5896 + $0xac] sm:$0xf]
      %v5941 = vld [vmem:[%s5896 + $0xb0] sm:$0xf]
      %v5942 = vld [vmem:[%s5896 + $0xb4] sm:$0xf]
      %v5943 = vld [vmem:[%s5896 + $0xb8] sm:$0xf]
      %v5944 = vld [vmem:[%s5896 + $0xbc] sm:$0xf]
      %v5993 = vunpack.c.l.b16 %v5897
      %v5994 = vunpack.c.l.b16 %v5898
      %v5995 = vunpack.c.l.b16 %v5899
      %v5996 = vunpack.c.l.b16 %v5900
      %v5997 = vunpack.c.l.b16 %v5901
      %v5998 = vunpack.c.l.b16 %v5902
      %v5999 = vunpack.c.l.b16 %v5903
      %v6000 = vunpack.c.l.b16 %v5904
      %v6001 = vunpack.c.l.b16 %v5905
      %v6002 = vunpack.c.l.b16 %v5906
      %v6003 = vunpack.c.l.b16 %v5907
      %v6004 = vunpack.c.l.b16 %v5908
      %v6005 = vunpack.c.l.b16 %v5909
      %v6006 = vunpack.c.l.b16 %v5910
      %v6007 = vunpack.c.l.b16 %v5911
      %v6008 = vunpack.c.l.b16 %v5912
      %v6009 = vunpack.c.l.b16 %v5913
      %v6010 = vunpack.c.l.b16 %v5914
      %v6011 = vunpack.c.l.b16 %v5915
      %v6012 = vunpack.c.l.b16 %v5916
      %v6013 = vunpack.c.l.b16 %v5917
      %v6014 = vunpack.c.l.b16 %v5918
      %v6015 = vunpack.c.l.b16 %v5919
      %v6016 = vunpack.c.l.b16 %v5920
      %v6017 = vunpack.c.l.b16 %v5921
      %v6018 = vunpack.c.l.b16 %v5922
      %v6019 = vunpack.c.l.b16 %v5923
      %v6020 = vunpack.c.l.b16 %v5924
      %v6021 = vunpack.c.l.b16 %v5925
      %v6022 = vunpack.c.l.b16 %v5926
      %v6023 = vunpack.c.l.b16 %v5927
      %v6024 = vunpack.c.l.b16 %v5928
      %v6025 = vunpack.c.l.b16 %v5929
      %v6026 = vunpack.c.l.b16 %v5930
      %v6027 = vunpack.c.l.b16 %v5931
      %v6028 = vunpack.c.l.b16 %v5932
      %v6029 = vunpack.c.l.b16 %v5933
      %v6030 = vunpack.c.l.b16 %v5934
      %v6031 = vunpack.c.l.b16 %v5935
      %v6032 = vunpack.c.l.b16 %v5936
      %v6033 = vunpack.c.l.b16 %v5937
      %v6034 = vunpack.c.l.b16 %v5938
      %v6035 = vunpack.c.l.b16 %v5939
      %v6036 = vunpack.c.l.b16 %v5940
      %v6037 = vunpack.c.l.b16 %v5941
      %v6038 = vunpack.c.l.b16 %v5942
      %v6039 = vunpack.c.l.b16 %v5943
      %v6040 = vunpack.c.l.b16 %v5944
      %v6041 = vpack.c.b16 %v5994, %v5993
      %v6042 = vpack.c.b16 %v5996, %v5995
      %v6043 = vpack.c.b16 %v5998, %v5997
      %v6044 = vpack.c.b16 %v6000, %v5999
      %v6045 = vpack.c.b16 %v6002, %v6001
      %v6046 = vpack.c.b16 %v6004, %v6003
      %v6047 = vpack.c.b16 %v6006, %v6005
      %v6048 = vpack.c.b16 %v6008, %v6007
      %v6049 = vpack.c.b16 %v6010, %v6009
      %v6050 = vpack.c.b16 %v6012, %v6011
      %v6051 = vpack.c.b16 %v6014, %v6013
      %v6052 = vpack.c.b16 %v6016, %v6015
      %v6053 = vpack.c.b16 %v6018, %v6017
      %v6054 = vpack.c.b16 %v6020, %v6019
      %v6055 = vpack.c.b16 %v6022, %v6021
      %v6056 = vpack.c.b16 %v6024, %v6023
      %v6057 = vpack.c.b16 %v6026, %v6025
      %v6058 = vpack.c.b16 %v6028, %v6027
      %v6059 = vpack.c.b16 %v6030, %v6029
      %v6060 = vpack.c.b16 %v6032, %v6031
      %v6061 = vpack.c.b16 %v6034, %v6033
      %v6062 = vpack.c.b16 %v6036, %v6035
      %v6063 = vpack.c.b16 %v6038, %v6037
      %v6064 = vpack.c.b16 %v6040, %v6039
      %6089 = vmatpush.bf16.msra.mxu0 %v6048
      %6090 = vmatpush.bf16.msra.mxu0 %v6047
      %6091 = vmatpush.bf16.msra.mxu0 %v6046
      %6092 = vmatpush.bf16.msra.mxu0 %v6045
      %6093 = vmatpush.bf16.msra.mxu0 %v6044
      %6094 = vmatpush.bf16.msra.mxu0 %v6043
      %6095 = vmatpush.bf16.msra.mxu0 %v6042
      %6096 = vmatpush.bf16.msra.mxu0 %v6041
      %6097 = vmatmul.bf16.gmra.mxu0 %v4251
      %v6098 = vpop.f32.mrf.mxu0
      %v6099 = vadd.f32 0.0, %v6098
      %v6100 = vpop.f32.mrf.mxu0
      %v6101 = vadd.f32 0.0, %v6100
      %6102 = vmatmul.bf16.gmra.mxu0 %v4294
      %v6103 = vpop.f32.mrf.mxu0
      %v6104 = vadd.f32 0.0, %v6103
      %v6105 = vpop.f32.mrf.mxu0
      %v6106 = vadd.f32 0.0, %v6105
      %6107 = vmatmul.bf16.gmra.mxu0 %v4337
      %v6108 = vpop.f32.mrf.mxu0
      %v6109 = vadd.f32 0.0, %v6108
      %v6110 = vpop.f32.mrf.mxu0
      %v6111 = vadd.f32 0.0, %v6110
      %6112 = vmatmul.bf16.gmra.mxu0 %v4380
      %v6113 = vpop.f32.mrf.mxu0
      %v6114 = vadd.f32 0.0, %v6113
      %v6115 = vpop.f32.mrf.mxu0
      %v6116 = vadd.f32 0.0, %v6115
      %6117 = vmatmul.bf16.gmra.mxu0 %v4423
      %v6118 = vpop.f32.mrf.mxu0
      %v6119 = vadd.f32 0.0, %v6118
      %v6120 = vpop.f32.mrf.mxu0
      %v6121 = vadd.f32 0.0, %v6120
      %6122 = vmatmul.bf16.gmra.mxu0 %v4466
      %v6123 = vpop.f32.mrf.mxu0
      %v6124 = vadd.f32 0.0, %v6123
      %v6125 = vpop.f32.mrf.mxu0
      %v6126 = vadd.f32 0.0, %v6125
      %6127 = vmatmul.bf16.gmra.mxu0 %v4509
      %v6128 = vpop.f32.mrf.mxu0
      %v6129 = vadd.f32 0.0, %v6128
      %v6130 = vpop.f32.mrf.mxu0
      %v6131 = vadd.f32 0.0, %v6130
      %6132 = vmatmul.bf16.gmra.mxu0 %v4552
      %v6133 = vpop.f32.mrf.mxu0
      %v6134 = vadd.f32 0.0, %v6133
      %v6135 = vpop.f32.mrf.mxu0
      %v6136 = vadd.f32 0.0, %v6135
      %6137 = vmatmul.bf16.gmra.mxu0 %v4595
      %v6138 = vpop.f32.mrf.mxu0
      %v6139 = vadd.f32 0.0, %v6138
      %v6140 = vpop.f32.mrf.mxu0
      %v6141 = vadd.f32 0.0, %v6140
      %6142 = vmatmul.bf16.gmra.mxu0 %v4638
      %v6143 = vpop.f32.mrf.mxu0
      %v6144 = vadd.f32 0.0, %v6143
      %v6145 = vpop.f32.mrf.mxu0
      %v6146 = vadd.f32 0.0, %v6145
      %6147 = vmatmul.bf16.gmra.mxu0 %v4681
      %v6148 = vpop.f32.mrf.mxu0
      %v6149 = vadd.f32 0.0, %v6148
      %v6150 = vpop.f32.mrf.mxu0
      %v6151 = vadd.f32 0.0, %v6150
      %6152 = vmatmul.bf16.gmra.mxu0 %v4724
      %v6153 = vpop.f32.mrf.mxu0
      %v6154 = vadd.f32 0.0, %v6153
      %v6155 = vpop.f32.mrf.mxu0
      %v6156 = vadd.f32 0.0, %v6155
      %6157 = vmatmul.bf16.gmra.mxu0 %v4767
      %v6158 = vpop.f32.mrf.mxu0
      %v6159 = vadd.f32 0.0, %v6158
      %v6160 = vpop.f32.mrf.mxu0
      %v6161 = vadd.f32 0.0, %v6160
      %6162 = vmatmul.bf16.gmra.mxu0 %v4810
      %v6163 = vpop.f32.mrf.mxu0
      %v6164 = vadd.f32 0.0, %v6163
      %v6165 = vpop.f32.mrf.mxu0
      %v6166 = vadd.f32 0.0, %v6165
      %6167 = vmatmul.bf16.gmra.mxu0 %v4949
      %v6168 = vpop.f32.mrf.mxu0
      %v6169 = vadd.f32 0.0, %v6168
      %v6170 = vpop.f32.mrf.mxu0
      %v6171 = vadd.f32 0.0, %v6170
      %6172 = vmatmul.bf16.gmra.mxu0 %v5866
      %v6173 = vpop.f32.mrf.mxu0
      %v6174 = vadd.f32 0.0, %v6173
      %v6175 = vpop.f32.mrf.mxu0
      %v6176 = vadd.f32 0.0, %v6175
      %6177 = vdwg.mxu0
      %6178 = vmatpush.bf16.msra.mxu0 %v6056
      %6179 = vmatpush.bf16.msra.mxu0 %v6055
      %6180 = vmatpush.bf16.msra.mxu0 %v6054
      %6181 = vmatpush.bf16.msra.mxu0 %v6053
      %6182 = vmatpush.bf16.msra.mxu0 %v6052
      %6183 = vmatpush.bf16.msra.mxu0 %v6051
      %6184 = vmatpush.bf16.msra.mxu0 %v6050
      %6185 = vmatpush.bf16.msra.mxu0 %v6049
      %6186 = vmatmul.bf16.gmra.mxu0 %v4260
      %v6187 = vpop.f32.mrf.mxu0
      %v6188 = vadd.f32 %v6099, %v6187
      %v6189 = vpop.f32.mrf.mxu0
      %v6190 = vadd.f32 %v6101, %v6189
      %6191 = vmatmul.bf16.gmra.mxu0 %v4303
      %v6192 = vpop.f32.mrf.mxu0
      %v6193 = vadd.f32 %v6104, %v6192
      %v6194 = vpop.f32.mrf.mxu0
      %v6195 = vadd.f32 %v6106, %v6194
      %6196 = vmatmul.bf16.gmra.mxu0 %v4346
      %v6197 = vpop.f32.mrf.mxu0
      %v6198 = vadd.f32 %v6109, %v6197
      %v6199 = vpop.f32.mrf.mxu0
      %v6200 = vadd.f32 %v6111, %v6199
      %6201 = vmatmul.bf16.gmra.mxu0 %v4389
      %v6202 = vpop.f32.mrf.mxu0
      %v6203 = vadd.f32 %v6114, %v6202
      %v6204 = vpop.f32.mrf.mxu0
      %v6205 = vadd.f32 %v6116, %v6204
      %6206 = vmatmul.bf16.gmra.mxu0 %v4432
      %v6207 = vpop.f32.mrf.mxu0
      %v6208 = vadd.f32 %v6119, %v6207
      %v6209 = vpop.f32.mrf.mxu0
      %v6210 = vadd.f32 %v6121, %v6209
      %6211 = vmatmul.bf16.gmra.mxu0 %v4475
      %v6212 = vpop.f32.mrf.mxu0
      %v6213 = vadd.f32 %v6124, %v6212
      %v6214 = vpop.f32.mrf.mxu0
      %v6215 = vadd.f32 %v6126, %v6214
      %6216 = vmatmul.bf16.gmra.mxu0 %v4518
      %v6217 = vpop.f32.mrf.mxu0
      %v6218 = vadd.f32 %v6129, %v6217
      %v6219 = vpop.f32.mrf.mxu0
      %v6220 = vadd.f32 %v6131, %v6219
      %6221 = vmatmul.bf16.gmra.mxu0 %v4561
      %v6222 = vpop.f32.mrf.mxu0
      %v6223 = vadd.f32 %v6134, %v6222
      %v6224 = vpop.f32.mrf.mxu0
      %v6225 = vadd.f32 %v6136, %v6224
      %6226 = vmatmul.bf16.gmra.mxu0 %v4604
      %v6227 = vpop.f32.mrf.mxu0
      %v6228 = vadd.f32 %v6139, %v6227
      %v6229 = vpop.f32.mrf.mxu0
      %v6230 = vadd.f32 %v6141, %v6229
      %6231 = vmatmul.bf16.gmra.mxu0 %v4647
      %v6232 = vpop.f32.mrf.mxu0
      %v6233 = vadd.f32 %v6144, %v6232
      %v6234 = vpop.f32.mrf.mxu0
      %v6235 = vadd.f32 %v6146, %v6234
      %6236 = vmatmul.bf16.gmra.mxu0 %v4690
      %v6237 = vpop.f32.mrf.mxu0
      %v6238 = vadd.f32 %v6149, %v6237
      %v6239 = vpop.f32.mrf.mxu0
      %v6240 = vadd.f32 %v6151, %v6239
      %6241 = vmatmul.bf16.gmra.mxu0 %v4733
      %v6242 = vpop.f32.mrf.mxu0
      %v6243 = vadd.f32 %v6154, %v6242
      %v6244 = vpop.f32.mrf.mxu0
      %v6245 = vadd.f32 %v6156, %v6244
      %6246 = vmatmul.bf16.gmra.mxu0 %v4776
      %v6247 = vpop.f32.mrf.mxu0
      %v6248 = vadd.f32 %v6159, %v6247
      %v6249 = vpop.f32.mrf.mxu0
      %v6250 = vadd.f32 %v6161, %v6249
      %6251 = vmatmul.bf16.gmra.mxu0 %v4819
      %v6252 = vpop.f32.mrf.mxu0
      %v6253 = vadd.f32 %v6164, %v6252
      %v6254 = vpop.f32.mrf.mxu0
      %v6255 = vadd.f32 %v6166, %v6254
      %6256 = vmatmul.bf16.gmra.mxu0 %v4958
      %v6257 = vpop.f32.mrf.mxu0
      %v6258 = vadd.f32 %v6169, %v6257
      %v6259 = vpop.f32.mrf.mxu0
      %v6260 = vadd.f32 %v6171, %v6259
      %6261 = vmatmul.bf16.gmra.mxu0 %v5875
      %v6262 = vpop.f32.mrf.mxu0
      %v6263 = vadd.f32 %v6174, %v6262
      %v6264 = vpop.f32.mrf.mxu0
      %v6265 = vadd.f32 %v6176, %v6264
      %6266 = vdwg.mxu0
      %6267 = vmatpush.bf16.msra.mxu0 %v6064
      %6268 = vmatpush.bf16.msra.mxu0 %v6063
      %6269 = vmatpush.bf16.msra.mxu0 %v6062
      %6270 = vmatpush.bf16.msra.mxu0 %v6061
      %6271 = vmatpush.bf16.msra.mxu0 %v6060
      %6272 = vmatpush.bf16.msra.mxu0 %v6059
      %6273 = vmatpush.bf16.msra.mxu0 %v6058
      %6274 = vmatpush.bf16.msra.mxu0 %v6057
      %6275 = vmatmul.bf16.gmra.mxu0 %v4277
      %v6276 = vpop.f32.mrf.mxu0
      %v6277 = vadd.f32 %v6188, %v6276
      %v6278 = vpop.f32.mrf.mxu0
      %v6279 = vadd.f32 %v6190, %v6278
      %6280 = vmatmul.bf16.gmra.mxu0 %v4320
      %v6281 = vpop.f32.mrf.mxu0
      %v6282 = vadd.f32 %v6193, %v6281
      %v6283 = vpop.f32.mrf.mxu0
      %v6284 = vadd.f32 %v6195, %v6283
      %6285 = vmatmul.bf16.gmra.mxu0 %v4363
      %v6286 = vpop.f32.mrf.mxu0
      %v6287 = vadd.f32 %v6198, %v6286
      %v6288 = vpop.f32.mrf.mxu0
      %v6289 = vadd.f32 %v6200, %v6288
      %6290 = vmatmul.bf16.gmra.mxu0 %v4406
      %v6291 = vpop.f32.mrf.mxu0
      %v6292 = vadd.f32 %v6203, %v6291
      %v6293 = vpop.f32.mrf.mxu0
      %v6294 = vadd.f32 %v6205, %v6293
      %6295 = vmatmul.bf16.gmra.mxu0 %v4449
      %v6296 = vpop.f32.mrf.mxu0
      %v6297 = vadd.f32 %v6208, %v6296
      %v6298 = vpop.f32.mrf.mxu0
      %v6299 = vadd.f32 %v6210, %v6298
      %6300 = vmatmul.bf16.gmra.mxu0 %v4492
      %v6301 = vpop.f32.mrf.mxu0
      %v6302 = vadd.f32 %v6213, %v6301
      %v6303 = vpop.f32.mrf.mxu0
      %v6304 = vadd.f32 %v6215, %v6303
      %6305 = vmatmul.bf16.gmra.mxu0 %v4535
      %v6306 = vpop.f32.mrf.mxu0
      %v6307 = vadd.f32 %v6218, %v6306
      %v6308 = vpop.f32.mrf.mxu0
      %v6309 = vadd.f32 %v6220, %v6308
      %6310 = vmatmul.bf16.gmra.mxu0 %v4578
      %v6311 = vpop.f32.mrf.mxu0
      %v6312 = vadd.f32 %v6223, %v6311
      %v6313 = vpop.f32.mrf.mxu0
      %v6314 = vadd.f32 %v6225, %v6313
      %6315 = vmatmul.bf16.gmra.mxu0 %v4621
      %v6316 = vpop.f32.mrf.mxu0
      %v6317 = vadd.f32 %v6228, %v6316
      %v6318 = vpop.f32.mrf.mxu0
      %v6319 = vadd.f32 %v6230, %v6318
      %6320 = vmatmul.bf16.gmra.mxu0 %v4664
      %v6321 = vpop.f32.mrf.mxu0
      %v6322 = vadd.f32 %v6233, %v6321
      %v6323 = vpop.f32.mrf.mxu0
      %v6324 = vadd.f32 %v6235, %v6323
      %6325 = vmatmul.bf16.gmra.mxu0 %v4707
      %v6326 = vpop.f32.mrf.mxu0
      %v6327 = vadd.f32 %v6238, %v6326
      %v6328 = vpop.f32.mrf.mxu0
      %v6329 = vadd.f32 %v6240, %v6328
      %6330 = vmatmul.bf16.gmra.mxu0 %v4750
      %v6331 = vpop.f32.mrf.mxu0
      %v6332 = vadd.f32 %v6243, %v6331
      %v6333 = vpop.f32.mrf.mxu0
      %v6334 = vadd.f32 %v6245, %v6333
      %6335 = vmatmul.bf16.gmra.mxu0 %v4793
      %v6336 = vpop.f32.mrf.mxu0
      %v6337 = vadd.f32 %v6248, %v6336
      %v6338 = vpop.f32.mrf.mxu0
      %v6339 = vadd.f32 %v6250, %v6338
      %6340 = vmatmul.bf16.gmra.mxu0 %v4836
      %v6341 = vpop.f32.mrf.mxu0
      %v6342 = vadd.f32 %v6253, %v6341
      %v6343 = vpop.f32.mrf.mxu0
      %v6344 = vadd.f32 %v6255, %v6343
      %6345 = vmatmul.bf16.gmra.mxu0 %v4975
      %v6346 = vpop.f32.mrf.mxu0
      %v6347 = vadd.f32 %v6258, %v6346
      %v6348 = vpop.f32.mrf.mxu0
      %v6349 = vadd.f32 %v6260, %v6348
      %6350 = vmatmul.bf16.gmra.mxu0 %v5892
      %v6351 = vpop.f32.mrf.mxu0
      %v6352 = vadd.f32 %v6263, %v6351
      %v6353 = vpop.f32.mrf.mxu0
      %v6354 = vadd.f32 %v6265, %v6353
      %6355 = vdwg.mxu0
      %v6356 = vadd.f32 %v5771, %v6277
      %v6357 = vadd.f32 %v5773, %v6279
      %v6358 = vadd.f32 %v5776, %v6282
      %v6359 = vadd.f32 %v5778, %v6284
      %v6360 = vadd.f32 %v5781, %v6287
      %v6361 = vadd.f32 %v5783, %v6289
      %v6362 = vadd.f32 %v5786, %v6292
      %v6363 = vadd.f32 %v5788, %v6294
      %v6364 = vadd.f32 %v5791, %v6297
      %v6365 = vadd.f32 %v5793, %v6299
      %v6366 = vadd.f32 %v5796, %v6302
      %v6367 = vadd.f32 %v5798, %v6304
      %v6368 = vadd.f32 %v5801, %v6307
      %v6369 = vadd.f32 %v5803, %v6309
      %v6370 = vadd.f32 %v5806, %v6312
      %v6371 = vadd.f32 %v5808, %v6314
      %v6372 = vadd.f32 %v5811, %v6317
      %v6373 = vadd.f32 %v5813, %v6319
      %v6374 = vadd.f32 %v5816, %v6322
      %v6375 = vadd.f32 %v5818, %v6324
      %v6376 = vadd.f32 %v5821, %v6327
      %v6377 = vadd.f32 %v5823, %v6329
      %v6378 = vadd.f32 %v5826, %v6332
      %v6379 = vadd.f32 %v5828, %v6334
      %v6380 = vadd.f32 %v5831, %v6337
      %v6381 = vadd.f32 %v5833, %v6339
      %v6382 = vadd.f32 %v5836, %v6342
      %v6383 = vadd.f32 %v5838, %v6344
      %v6384 = vadd.f32 %v5841, %v6347
      %v6385 = vadd.f32 %v5843, %v6349
      %v6386 = vadd.f32 %v5846, %v6352
      %v6387 = vadd.f32 %v5848, %v6354
      %v6388 = vld [vmem:[%s4] sm:$0x1]
      %v6390 = vperm.slane %v6388, 0
      %v6392 = vadd.f32 %v6356, %v6390
      %v6393 = vadd.f32 %v6357, %v6390
      %v6394 = vadd.f32 %v6358, %v6390
      %v6395 = vadd.f32 %v6359, %v6390
      %v6396 = vadd.f32 %v6360, %v6390
      %v6397 = vadd.f32 %v6361, %v6390
      %v6398 = vadd.f32 %v6362, %v6390
      %v6399 = vadd.f32 %v6363, %v6390
      %v6400 = vadd.f32 %v6364, %v6390
      %v6401 = vadd.f32 %v6365, %v6390
      %v6402 = vadd.f32 %v6366, %v6390
      %v6403 = vadd.f32 %v6367, %v6390
      %v6404 = vadd.f32 %v6368, %v6390
      %v6405 = vadd.f32 %v6369, %v6390
      %v6406 = vadd.f32 %v6370, %v6390
      %v6407 = vadd.f32 %v6371, %v6390
      %v6408 = vadd.f32 %v6372, %v6390
      %v6409 = vadd.f32 %v6373, %v6390
      %v6410 = vadd.f32 %v6374, %v6390
      %v6411 = vadd.f32 %v6375, %v6390
      %v6412 = vadd.f32 %v6376, %v6390
      %v6413 = vadd.f32 %v6377, %v6390
      %v6414 = vadd.f32 %v6378, %v6390
      %v6415 = vadd.f32 %v6379, %v6390
      %v6416 = vadd.f32 %v6380, %v6390
      %v6417 = vadd.f32 %v6381, %v6390
      %v6418 = vadd.f32 %v6382, %v6390
      %v6419 = vadd.f32 %v6383, %v6390
      %v6420 = vadd.f32 %v6384, %v6390
      %v6421 = vadd.f32 %v6385, %v6390
      %v6422 = vadd.f32 %v6386, %v6390
      %v6423 = vadd.f32 %v6387, %v6390
      %v6424 = vmax.f32 %v6392, 0.0
      %v6425 = vmax.f32 %v6393, 0.0
      %v6426 = vmax.f32 %v6394, 0.0
      %v6427 = vmax.f32 %v6395, 0.0
      %v6428 = vmax.f32 %v6396, 0.0
      %v6429 = vmax.f32 %v6397, 0.0
      %v6430 = vmax.f32 %v6398, 0.0
      %v6431 = vmax.f32 %v6399, 0.0
      %v6432 = vmax.f32 %v6400, 0.0
      %v6433 = vmax.f32 %v6401, 0.0
      %v6434 = vmax.f32 %v6402, 0.0
      %v6435 = vmax.f32 %v6403, 0.0
      %v6436 = vmax.f32 %v6404, 0.0
      %v6437 = vmax.f32 %v6405, 0.0
      %v6438 = vmax.f32 %v6406, 0.0
      %v6439 = vmax.f32 %v6407, 0.0
      %v6440 = vmax.f32 %v6408, 0.0
      %v6441 = vmax.f32 %v6409, 0.0
      %v6442 = vmax.f32 %v6410, 0.0
      %v6443 = vmax.f32 %v6411, 0.0
      %v6444 = vmax.f32 %v6412, 0.0
      %v6445 = vmax.f32 %v6413, 0.0
      %v6446 = vmax.f32 %v6414, 0.0
      %v6447 = vmax.f32 %v6415, 0.0
      %v6448 = vmax.f32 %v6416, 0.0
      %v6449 = vmax.f32 %v6417, 0.0
      %v6450 = vmax.f32 %v6418, 0.0
      %v6451 = vmax.f32 %v6419, 0.0
      %v6452 = vmax.f32 %v6420, 0.0
      %v6453 = vmax.f32 %v6421, 0.0
      %v6454 = vmax.f32 %v6422, 0.0
      %v6455 = vmax.f32 %v6423, 0.0
      %6456 = vst [vmem:[%s248] sm:$0xff] %v6424
      %6457 = vst [vmem:[%s248 + $0x8] sm:$0xff] %v6425
      %6458 = vst [vmem:[%s248 + $0x10] sm:$0xff] %v6426
      %6459 = vst [vmem:[%s248 + $0x18] sm:$0xff] %v6427
      %6460 = vst [vmem:[%s248 + $0x20] sm:$0xff] %v6428
      %6461 = vst [vmem:[%s248 + $0x28] sm:$0xff] %v6429
      %6462 = vst [vmem:[%s248 + $0x30] sm:$0xff] %v6430
      %6463 = vst [vmem:[%s248 + $0x38] sm:$0xff] %v6431
      %6464 = vst [vmem:[%s248 + $0x40] sm:$0xff] %v6432
      %6465 = vst [vmem:[%s248 + $0x48] sm:$0xff] %v6433
      %6466 = vst [vmem:[%s248 + $0x50] sm:$0xff] %v6434
      %6467 = vst [vmem:[%s248 + $0x58] sm:$0xff] %v6435
      %6468 = vst [vmem:[%s248 + $0x60] sm:$0xff] %v6436
      %6469 = vst [vmem:[%s248 + $0x68] sm:$0xff] %v6437
      %6470 = vst [vmem:[%s248 + $0x70] sm:$0xff] %v6438
      %6471 = vst [vmem:[%s248 + $0x78] sm:$0xff] %v6439
      %6472 = vst [vmem:[%s248 + $0x80] sm:$0xff] %v6440
      %6473 = vst [vmem:[%s248 + $0x88] sm:$0xff] %v6441
      %6474 = vst [vmem:[%s248 + $0x90] sm:$0xff] %v6442
      %6475 = vst [vmem:[%s248 + $0x98] sm:$0xff] %v6443
      %6476 = vst [vmem:[%s248 + $0xa0] sm:$0xff] %v6444
      %6477 = vst [vmem:[%s248 + $0xa8] sm:$0xff] %v6445
      %6478 = vst [vmem:[%s248 + $0xb0] sm:$0xff] %v6446
      %6479 = vst [vmem:[%s248 + $0xb8] sm:$0xff] %v6447
      %6480 = vst [vmem:[%s248 + $0xc0] sm:$0xff] %v6448
      %6481 = vst [vmem:[%s248 + $0xc8] sm:$0xff] %v6449
      %6482 = vst [vmem:[%s248 + $0xd0] sm:$0xff] %v6450
      %6483 = vst [vmem:[%s248 + $0xd8] sm:$0xff] %v6451
      %6484 = vst [vmem:[%s248 + $0xe0] sm:$0xff] %v6452
      %6485 = vst [vmem:[%s248 + $0xe8] sm:$0xff] %v6453
      %6486 = vst [vmem:[%s248 + $0xf0] sm:$0xff] %v6454
      %6487 = vst [vmem:[%s248 + $0xf8] sm:$0xff] %v6455
      %s6488 = smul.u32 16, %s21
      %p6489 = scmp.lt.s32.totalorder %s20, 1
      %s6490 = scalar_select %p6489, %s20, 1
      %p6491 = scmp.lt.s32.totalorder %s6488, 15
      %s6492 = scalar_select %p6491, %s6488, 15
      %s6493 = smul.addr %s6492, 2
      %s6494 = smul.addr %s6490, 32
      %s6495 = sadd.s32 %s6493, %s6494
      %s6496 = smul.addr %s6495, 8
      %s6497 = scalar_lea.vmem %s5, %s6496
      // Predicated region
      $region45: #{double_conv.1} parent=39 // pred_check
        %p6498 = pneg %p158
      $region46: #{double_conv.1} parent=39 // pred_check_branch
        %6500 = sbr.rel (%p6498) target = $region48
      $region47: #{double_conv.1} parent=39 // pred_region
        %s6501 = smul.u32 16, %s21
      $region48: #{double_conv.1} parent=39 // pred_fallthru
        _
    $region40: #{double_conv.1} parent=5 // pred_fallthru
      _
    %p6502 = scmp.le.s32.totalorder 2, %s11
    // Predicated region
    $region49: #{double_conv.1} parent=5 // pred_check
      %p6503 = pneg %p6502
    $region50: #{double_conv.1} parent=5 // pred_check_branch
      %6505 = sbr.rel (%p6503) target = $region52
    $region51: #{double_conv.1} parent=5 // pred_region
      %s6506 = ssub.s32 %s11, 2
      // Predicated region
      $region53: #{double_conv.1} parent=51 // pred_check
        %p6507 = pneg %p164
      $region54: #{double_conv.1} parent=51 // pred_check_branch
        %6509 = sbr.rel (%p6507) target = $region56
      $region55: #{double_conv.1} parent=51 // pred_region
        %s6510 = smul.u32 16, %s23
        %p6511 = scmp.lt.s32.totalorder %s22, 1
        %s6512 = scalar_select %p6511, %s22, 1
        %p6513 = scmp.lt.s32.totalorder %s6510, 15
        %s6514 = scalar_select %p6513, %s6510, 15
        %s6515 = smul.addr %s6514, 2
        %s6516 = smul.addr %s6512, 32
        %s6517 = sadd.s32 %s6515, %s6516
        %s6518 = smul.addr %s6517, 8
        %s6519 = scalar_lea.vmem %s5, %s6518
      $region56: #{double_conv.1} parent=51 // pred_fallthru
        _
    $region52: #{double_conv.1} parent=5 // pred_fallthru
      _
  $region6: #{double_conv.1} parent=0 // loop_footer
    %s15 = sadd.s32 1, %s11
  $region7: #{double_conv.1} parent=0 // loop_footer_branch
    %10 = sbr.rel target = $region3
  $region8: #{double_conv.1} parent=0 // loop_exit
    _

</llo_original>
